<compile_context>
chip_gen: v6e
topology: v6e:2x2x1
jax: 0.10.0
libtpu: 0.0.40
codegen_flags: <defaults>
</compile_context>

<pallas_src>
import functools

import jax
import jax.numpy as jnp
from jax.experimental import pallas as pl
from jax.experimental.pallas import tpu as pltpu

_VMEM = pl.BlockSpec(memory_space=pltpu.MemorySpace.VMEM)
_SMEM = pl.BlockSpec(memory_space=pltpu.MemorySpace.SMEM)


def _bf16(v):
    return v if v.dtype == jnp.bfloat16 else v.astype(jnp.bfloat16)


def _mxdot(a, b):
    # bf16 MXU operands, f32 accumulation (bf16 is MXU-native on v5e/v6e/v7x).
    return jnp.dot(_bf16(a), _bf16(b), preferred_element_type=jnp.float32)


# ----------------------------------------------------------------------------
# Kernel 1: fused per-mode GCN block + node_feature MLP + catParam + mode sum
# ----------------------------------------------------------------------------
def _mode_block_kernel(a_ref, x_ref, w1_ref, b1_ref, w2_ref, b2_ref,
                       cpg_ref, cpn_ref, nf1w_ref, nf1b_ref, nf2w_ref, nf2b_ref,
                       o_ref, *, modenum):
    a = _bf16(a_ref[...])                       # dense normalized adjacency, load once
    nf1w = nf1w_ref[...]
    nf1b = nf1b_ref[...]
    nf2w = nf2w_ref[...]
    nf2b = nf2b_ref[...]
    acc = jnp.zeros(o_ref.shape, jnp.float32)
    for m in range(modenum):                    # modenum is static (2) -> unrolled
        xm = x_ref[m]                           # (NB, slid_win)
        # GCNConv1 (expanding 8->192): (A @ X) @ W1 + b1   (cheaper contraction order)
        ax = _mxdot(a, xm)
        g1 = _mxdot(ax, w1_ref[m]) + b1_ref[m]          # (NB, 192)
        # GCNConv2 (reducing 192->4): A @ (G1 @ W2) + b2
        g2 = _mxdot(a, _mxdot(g1, w2_ref[m])) + b2_ref[m]   # (NB, emb)
        # node_feature MLP: Linear -> ReLU -> Linear
        hid = jnp.maximum(_mxdot(xm, nf1w) + nf1b, 0.0)
        nf = _mxdot(hid, nf2w) + nf2b                        # (NB, emb)
        # cat([g2, nf], 1) @ catParam[m]  ==  g2 @ catParam[:emb] + nf @ catParam[emb:]
        acc = acc + _mxdot(g2, cpg_ref[m]) + _mxdot(nf, cpn_ref[m])
    o_ref[...] = acc


# ----------------------------------------------------------------------------
# Kernel 2: fused 2-layer GRU over the full time axis (PyTorch GRU semantics)
# ----------------------------------------------------------------------------
def _gru2_kernel(seq_ref, h0_ref, wih0_ref, whh0_ref, bi0_ref, bh0_ref,
                 wih1_ref, whh1_ref, bi1_ref, bh1_ref, out_ref, hN_ref, *, T, H):
    wih0 = wih0_ref[...]
    whh0 = whh0_ref[...]
    wih1 = wih1_ref[...]
    whh1 = whh1_ref[...]
    bi0 = bi0_ref[...]
    bh0 = bh0_ref[...]
    bi1 = bi1_ref[...]
    bh1 = bh1_ref[...]

    def cell(x, h, wih, whh, bi, bh):
        # single fused dot per operand; r/z/n gates sliced in-kernel (f32 gate math)
        gi = jnp.dot(x, wih, preferred_element_type=jnp.float32) + bi
        gh = jnp.dot(h, whh, preferred_element_type=jnp.float32) + bh
        r = jax.nn.sigmoid(gi[:, 0:H] + gh[:, 0:H])
        z = jax.nn.sigmoid(gi[:, H:2 * H] + gh[:, H:2 * H])
        n = jnp.tanh(gi[:, 2 * H:3 * H] + r * gh[:, 2 * H:3 * H])
        return (1.0 - z) * n + z * h

    def step(t, carry):
        h0, h1 = carry
        h0n = cell(seq_ref[t], h0, wih0, whh0, bi0, bh0)   # layer 0
        h1n = cell(h0n, h1, wih1, whh1, bi1, bh1)          # layer 1
        out_ref[t] = h1n
        return (h0n, h1n)

    h0f, h1f = jax.lax.fori_loop(0, T, step, (h0_ref[0], h0_ref[1]), unroll=True)
    hN_ref[0] = h0f
    hN_ref[1] = h1f


def pallas_gru2(seq_tbi, H0, gru_params):
    """seq_tbi:(T,B,in), H0:(2,B,H) -> (out (T,B,H), new_H (2,B,H))."""
    (wih0, bih0, whh0, bhh0), (wih1, bih1, whh1, bhh1) = gru_params
    T, B, _ = seq_tbi.shape
    H = whh0.shape[0]
    out, hN = pl.pallas_call(
        functools.partial(_gru2_kernel, T=T, H=H),
        out_shape=(jax.ShapeDtypeStruct((T, B, H), jnp.float32),
                   jax.ShapeDtypeStruct((2, B, H), jnp.float32)),
        in_specs=[_VMEM] * 10,
        out_specs=(_VMEM, _VMEM),
    )(seq_tbi, H0.astype(jnp.float32),
      wih0, whh0, bih0.reshape(1, -1), bhh0.reshape(1, -1),
      wih1, whh1, bih1.reshape(1, -1), bhh1.reshape(1, -1))
    return out, hN


# ----------------------------------------------------------------------------
# Kernel 3: fused reconstruction branch
#   mid_linear -> re_node_feature (shared) -> per-mode regnn1/regnn2 -> rec_linear
# ----------------------------------------------------------------------------
def _recon_kernel(a_ref, gof_ref, mrf_ref,
                  m1wg_ref, m1wm_ref, m1b_ref, m2w_ref, m2b_ref,
                  rg1w_ref, rg1b_ref, rg2w_ref, rg2b_ref,
                  rn1w_ref, rn1b_ref, rn2w_ref, rn2b_ref,
                  rlwg_ref, rlwn_ref, rlb_ref, o_ref, *, modenum):
    a = _bf16(a_ref[...])
    # mid_linear on cat([gru_out, mid_result], 1), concat folded into split weights
    hid = jnp.maximum(_mxdot(gof_ref[...], m1wg_ref[...])
                      + _mxdot(mrf_ref[...], m1wm_ref[...]) + m1b_ref[...], 0.0)
    re_line = _mxdot(hid, m2w_ref[...]) + m2b_ref[...]              # (NB, S)
    # re_node_feature(re_line) is identical for every mode -> compute once
    rh = jnp.maximum(_mxdot(re_line, rn1w_ref[...]) + rn1b_ref[...], 0.0)
    renf = _mxdot(rh, rn2w_ref[...]) + rn2b_ref[...]                # (NB, S)
    renf_rl = _mxdot(renf, rlwn_ref[...])                           # rec_linear, renf half
    a_re = _mxdot(a, re_line)                                       # hoisted out of mode loop
    rlb = rlb_ref[...]
    for m in range(modenum):
        r1 = _mxdot(a_re, rg1w_ref[m]) + rg1b_ref[m]                # GCN1 (8 -> 192)
        r2 = _mxdot(a, _mxdot(r1, rg2w_ref[m])) + rg2b_ref[m]       # GCN2 (192 -> 8)
        # rec_linear(cat([r2, renf], 1)) == r2 @ W[:S] + renf @ W[S:] + b
        o_ref[m] = _mxdot(r2, rlwg_ref[...]) + renf_rl + rlb


# ----------------------------------------------------------------------------
# Kernel 4: fused classifier head + readout + sigmoid combine
# ----------------------------------------------------------------------------
def _head_kernel(gf_ref, cf1w_ref, cf1b_ref, cf2w_ref, cf2b_ref, cf3w_ref, cf3b_ref,
                 rec3_ref, ro1w_ref, ro2w_ref, ro2b_ref, ro1b_ref, comb_ref, o_ref):
    # cf_linear: 80 -> 256 -> 64 -> 2
    h = jnp.maximum(_mxdot(gf_ref[...], cf1w_ref[...]) + cf1b_ref[...], 0.0)
    h = jnp.maximum(_mxdot(h, cf2w_ref[...]) + cf2b_ref[...], 0.0)
    cf_res = jnp.dot(h, cf3w_ref[...], preferred_element_type=jnp.float32) + cf3b_ref[...]
    # readout1f per row of rec_out, presented as (batch, modenum*nodenum, slid_win)
    ro = jnp.sum(rec3_ref[...] * ro1w_ref[...], axis=-1) + ro1b_ref[0]   # (B, MN)
    readout = jnp.dot(ro, ro2w_ref[...], preferred_element_type=jnp.float32) + ro2b_ref[...]
    o_ref[...] = jax.nn.sigmoid(cf_res * comb_ref[0] + readout * comb_ref[1])


# ----------------------------------------------------------------------------
# Glue: adjacency normalization, parameter init, forward pass
# ----------------------------------------------------------------------------
def normalized_adj(edge_index, edge_weight, num_nodes):
    """Dense D^-1/2 (A + I) D^-1/2  (PyG gcn_norm with self-loops, weight 1)."""
    src, dst = edge_index[0], edge_index[1]
    A = jnp.zeros((num_nodes, num_nodes), jnp.float32).at[dst, src].add(edge_weight)
    A = A + jnp.eye(num_nodes, dtype=jnp.float32)
    deg = A.sum(axis=1)
    dinv = jnp.where(deg > 0, 1.0 / jnp.sqrt(deg), 0.0)
    return dinv[:, None] * A * dinv[None, :]


def init_params(key, modenum, nodenum, slid_win):
    emb, heads, hid, gru_emb = 4, 6, 32, 16
    d1 = hid * heads  # 192
    keys = iter(jax.random.split(key, 64))

    def lin(nin, nout):
        w = jax.random.normal(next(keys), (nin, nout), jnp.float32) / jnp.sqrt(float(nin))
        b = jax.random.normal(next(keys), (nout,), jnp.float32) * 0.01
        return w, b

    p = {}
    p["gnns1f"] = [lin(slid_win, d1) for _ in range(modenum)]
    p["gnns2f"] = [lin(d1, emb) for _ in range(modenum)]
    p["regnn1f"] = [lin(slid_win, d1) for _ in range(modenum)]
    p["regnn2f"] = [lin(d1, slid_win) for _ in range(modenum)]
    p["catParam"] = [jnp.ones((2 * emb, 2 * emb), jnp.float32) for _ in range(modenum)]
    p["combineParam"] = jnp.ones((2,), jnp.float32)
    gru = []
    for layer in range(2):
        in_sz = 2 * emb if layer == 0 else gru_emb
        wih, bih = lin(in_sz, 3 * gru_emb)
        whh, bhh = lin(gru_emb, 3 * gru_emb)
        gru.append((wih, bih, whh, bhh))
    p["gru"] = gru
    p["cf1"] = lin(nodenum * gru_emb, 256)
    p["cf2"] = lin(256, 64)
    p["cf3"] = lin(64, 2)
    p["nf1"] = lin(slid_win, 128)
    p["nf2"] = lin(128, emb)
    p["renf1"] = lin(slid_win, 128)
    p["renf2"] = lin(128, slid_win)
    p["mid1"] = lin(2 * emb + gru_emb, 128)
    p["mid2"] = lin(128, slid_win)
    p["readout1f"] = lin(slid_win, 1)
    p["readout2f"] = lin(modenum * nodenum, 2)
    p["rec_linear"] = lin(2 * slid_win, slid_win)
    return p


def gnn_forward(params, x, adj, wei, H_, *, modenum, nodenum, slid_win):
    emb, gru_emb = 4, 16
    batch = x.shape[0] // (nodenum * modenum)
    NB = nodenum * batch
    a_hat = normalized_adj(adj, wei, NB)
    x3 = x.astype(jnp.float32).reshape(modenum, NB, slid_win)

    # ---- kernel 1: per-mode GCN + node_feature + catParam + mode sum --------
    w1 = jnp.stack([w for (w, _) in params["gnns1f"]])                 # (M, S, 192)
    b1 = jnp.stack([b for (_, b) in params["gnns1f"]])[:, None, :]     # (M, 1, 192)
    w2 = jnp.stack([w for (w, _) in params["gnns2f"]])                 # (M, 192, emb)
    b2 = jnp.stack([b for (_, b) in params["gnns2f"]])[:, None, :]
    catp = jnp.stack(params["catParam"])                               # (M, 2emb, 2emb)
    cpg, cpn = catp[:, :emb, :], catp[:, emb:, :]
    nf1w, nf1b = params["nf1"]
    nf2w, nf2b = params["nf2"]

    cat_tensor = pl.pallas_call(
        functools.partial(_mode_block_kernel, modenum=modenum),
        out_shape=jax.ShapeDtypeStruct((NB, 2 * emb), jnp.float32),
        in_specs=[_VMEM] * 12,
        out_specs=_VMEM,
    )(a_hat, x3, w1, b1, w2, b2, cpg, cpn,
      nf1w, nf1b.reshape(1, -1), nf2w, nf2b.reshape(1, -1))

    # ---- kernel 2: fused 2-layer GRU over all timesteps ---------------------
    mid_result = cat_tensor.reshape(batch, nodenum, 2 * emb)
    seq_tbi = jnp.transpose(mid_result, (1, 0, 2))                     # (T, B, 2*emb)
    out_tbh, new_H = pallas_gru2(seq_tbi, H_, params["gru"])
    gru_out = jnp.transpose(out_tbh, (1, 0, 2))                        # (B, T, H)

    gru_flat = gru_out.reshape(batch * nodenum, gru_emb)               # (NB, 16)
    mid_flat = cat_tensor                                              # (NB, 8)

    # ---- kernel 3: reconstruction branch ------------------------------------
    rw1 = jnp.stack([w for (w, _) in params["regnn1f"]])
    rb1 = jnp.stack([b for (_, b) in params["regnn1f"]])[:, None, :]
    rw2 = jnp.stack([w for (w, _) in params["regnn2f"]])
    rb2 = jnp.stack([b for (_, b) in params["regnn2f"]])[:, None, :]
    m1w, m1b = params["mid1"]
    m2w, m2b = params["mid2"]
    m1w_g, m1w_m = m1w[:gru_emb], m1w[gru_emb:]
    rn1w, rn1b = params["renf1"]
    rn2w, rn2b = params["renf2"]
    rlw, rlb = params["rec_linear"]
    rlw_g, rlw_n = rlw[:slid_win], rlw[slid_win:]

    rec3m = pl.pallas_call(
        functools.partial(_recon_kernel, modenum=modenum),
        out_shape=jax.ShapeDtypeStruct((modenum, NB, slid_win), jnp.float32),
        in_specs=[_VMEM] * 19,
        out_specs=_VMEM,
    )(a_hat, gru_flat, mid_flat,
      m1w_g, m1w_m, m1b.reshape(1, -1), m2w, m2b.reshape(1, -1),
      rw1, rb1, rw2, rb2,
      rn1w, rn1b.reshape(1, -1), rn2w, rn2b.reshape(1, -1),
      rlw_g, rlw_n, rlb.reshape(1, -1))
    rec_out = rec3m.reshape(modenum * NB, slid_win)

    # ---- kernel 4: classifier + readout + combine ----------------------------
    cf1w, cf1b = params["cf1"]
    cf2w, cf2b = params["cf2"]
    cf3w, cf3b = params["cf3"]
    ro1w, ro1b = params["readout1f"]
    ro2w, ro2b = params["readout2f"]
    rec3 = rec_out.reshape(batch, modenum * nodenum, slid_win)
    gru_flat_b = gru_out.reshape(batch, nodenum * gru_emb)

    cf_out = pl.pallas_call(
        _head_kernel,
        out_shape=jax.ShapeDtypeStruct((batch, 2), jnp.float32),
        in_specs=[_VMEM] * 11 + [_SMEM] * 2,
        out_specs=_VMEM,
    )(gru_flat_b, cf1w, cf1b.reshape(1, -1), cf2w, cf2b.reshape(1, -1),
      cf3w, cf3b.reshape(1, -1), rec3, ro1w.reshape(1, slid_win),
      ro2w, ro2b.reshape(1, -1), ro1b, params["combineParam"])

    return cf_out, rec_out, new_H, gru_out


# ----------------------------------------------------------------------------
if __name__ == "__main__":
    # TODO(synk): only the base_gnn='GCN' branch is implemented; GAT/GIN/SuperGAT
    # neighbor-softmax attention has no clean dense-Pallas equivalent here.
    modenum, nodenum, slid_win, batch = 2, 5, 8, 2
    gru_emb = 16
    NB = nodenum * batch
    N = modenum * NB

    key = jax.random.PRNGKey(0)
    kx, kw, kh, kp = jax.random.split(key, 4)

    x = jax.random.normal(kx, (N, slid_win), jnp.float32)
    # deterministic bidirectional ring graph over the NB graph nodes
    src = jnp.arange(NB, dtype=jnp.int32)
    dst = (src + 1) % NB
    adj = jnp.stack([jnp.concatenate([src, dst]), jnp.concatenate([dst, src])], axis=0)
    wei = jnp.abs(jax.random.normal(kw, (adj.shape[1],), jnp.float32)) + 0.5
    H_ = jax.random.normal(kh, (2, batch, gru_emb), jnp.float32) * 0.1

    params = init_params(kp, modenum, nodenum, slid_win)

    fwd = jax.jit(functools.partial(
        gnn_forward, modenum=modenum, nodenum=nodenum, slid_win=slid_win))
    cf_out, rec_out, new_H, gru_out = fwd(params, x, adj, wei, H_)
    jax.block_until_ready((cf_out, rec_out, new_H, gru_out))

    assert cf_out.shape == (batch, 2)
    assert rec_out.shape == (modenum * NB, slid_win)
    assert new_H.shape == (2, batch, gru_emb)
    assert gru_out.shape == (batch, nodenum, gru_emb)
    print("KERNEL_OK")
</pallas_src>

<mosaic_0001>
module attributes {stable_mosaic.version = 11 : i64} {
  func.func @_mode_block_kernel(%arg0: memref<10x10xf32, #tpu.memory_space<vmem>>, %arg1: memref<2x10x8xf32, #tpu.memory_space<vmem>>, %arg2: memref<2x8x192xf32, #tpu.memory_space<vmem>>, %arg3: memref<2x1x192xf32, #tpu.memory_space<vmem>>, %arg4: memref<2x192x4xf32, #tpu.memory_space<vmem>>, %arg5: memref<2x1x4xf32, #tpu.memory_space<vmem>>, %arg6: memref<2x4x8xf32, #tpu.memory_space<vmem>>, %arg7: memref<2x4x8xf32, #tpu.memory_space<vmem>>, %arg8: memref<8x128xf32, #tpu.memory_space<vmem>>, %arg9: memref<1x128xf32, #tpu.memory_space<vmem>>, %arg10: memref<128x4xf32, #tpu.memory_space<vmem>>, %arg11: memref<1x4xf32, #tpu.memory_space<vmem>>, %arg12: memref<10x8xf32, #tpu.memory_space<vmem>>) attributes {dimension_semantics = [], scalar_prefetch = 0 : i64, scratch_operands = 0 : i64, tpu.core_type = #tpu.core_type<tc>} {
    %c0 = arith.constant 0 : index
    %c0_0 = arith.constant 0 : index
    %0 = vector.load %arg0[%c0, %c0_0] : memref<10x10xf32, #tpu.memory_space<vmem>>, vector<10x10xf32>
    %1 = arith.truncf %0 : vector<10x10xf32> to vector<10x10xbf16>
    %c0_1 = arith.constant 0 : index
    %c0_2 = arith.constant 0 : index
    %2 = vector.load %arg8[%c0_1, %c0_2] : memref<8x128xf32, #tpu.memory_space<vmem>>, vector<8x128xf32>
    %c0_3 = arith.constant 0 : index
    %c0_4 = arith.constant 0 : index
    %3 = vector.load %arg9[%c0_3, %c0_4] : memref<1x128xf32, #tpu.memory_space<vmem>>, vector<1x128xf32>
    %c0_5 = arith.constant 0 : index
    %c0_6 = arith.constant 0 : index
    %4 = vector.load %arg10[%c0_5, %c0_6] : memref<128x4xf32, #tpu.memory_space<vmem>>, vector<128x4xf32>
    %c0_7 = arith.constant 0 : index
    %c0_8 = arith.constant 0 : index
    %5 = vector.load %arg11[%c0_7, %c0_8] : memref<1x4xf32, #tpu.memory_space<vmem>>, vector<1x4xf32>
    %cst = arith.constant 0.000000e+00 : f32
    %6 = vector.broadcast %cst : f32 to vector<10x8xf32>
    %c0_9 = arith.constant 0 : index
    %c0_10 = arith.constant 0 : index
    %c0_11 = arith.constant 0 : index
    %7 = vector.load %arg1[%c0_9, %c0_10, %c0_11] : memref<2x10x8xf32, #tpu.memory_space<vmem>>, vector<1x10x8xf32>
    %8 = vector.shape_cast %7 : vector<1x10x8xf32> to vector<10x8xf32>
    %9 = arith.truncf %8 : vector<10x8xf32> to vector<10x8xbf16>
    %cst_12 = arith.constant dense<0.000000e+00> : vector<10x8xf32>
    %10 = tpu.matmul %1, %9, %cst_12 {dimension_numbers = #tpu.dot_dimension_numbers<[1], [0], [0], [1], [0, 0, 1, 1], [], []>} : vector<10x10xbf16>, vector<10x8xbf16>, vector<10x8xf32> -> vector<10x8xf32>
    %c0_13 = arith.constant 0 : index
    %c0_14 = arith.constant 0 : index
    %c0_15 = arith.constant 0 : index
    %11 = vector.load %arg2[%c0_13, %c0_14, %c0_15] : memref<2x8x192xf32, #tpu.memory_space<vmem>>, vector<1x8x192xf32>
    %12 = vector.shape_cast %11 : vector<1x8x192xf32> to vector<8x192xf32>
    %13 = arith.truncf %10 : vector<10x8xf32> to vector<10x8xbf16>
    %14 = arith.truncf %12 : vector<8x192xf32> to vector<8x192xbf16>
    %cst_16 = arith.constant dense<0.000000e+00> : vector<10x192xf32>
    %15 = tpu.matmul %13, %14, %cst_16 {dimension_numbers = #tpu.dot_dimension_numbers<[1], [0], [0], [1], [0, 0, 1, 1], [], []>} : vector<10x8xbf16>, vector<8x192xbf16>, vector<10x192xf32> -> vector<10x192xf32>
    %c0_17 = arith.constant 0 : index
    %c0_18 = arith.constant 0 : index
    %c0_19 = arith.constant 0 : index
    %16 = vector.load %arg3[%c0_17, %c0_18, %c0_19] : memref<2x1x192xf32, #tpu.memory_space<vmem>>, vector<1x1x192xf32>
    %17 = vector.shape_cast %16 : vector<1x1x192xf32> to vector<1x192xf32>
    %18 = vector.broadcast %17 : vector<1x192xf32> to vector<10x192xf32>
    %19 = arith.addf %15, %18 : vector<10x192xf32>
    %c0_20 = arith.constant 0 : index
    %c0_21 = arith.constant 0 : index
    %c0_22 = arith.constant 0 : index
    %20 = vector.load %arg4[%c0_20, %c0_21, %c0_22] : memref<2x192x4xf32, #tpu.memory_space<vmem>>, vector<1x192x4xf32>
    %21 = vector.shape_cast %20 : vector<1x192x4xf32> to vector<192x4xf32>
    %22 = arith.truncf %19 : vector<10x192xf32> to vector<10x192xbf16>
    %23 = arith.truncf %21 : vector<192x4xf32> to vector<192x4xbf16>
    %cst_23 = arith.constant dense<0.000000e+00> : vector<10x4xf32>
    %24 = tpu.matmul %22, %23, %cst_23 {dimension_numbers = #tpu.dot_dimension_numbers<[1], [0], [0], [1], [0, 0, 1, 1], [], []>} : vector<10x192xbf16>, vector<192x4xbf16>, vector<10x4xf32> -> vector<10x4xf32>
    %25 = arith.truncf %24 : vector<10x4xf32> to vector<10x4xbf16>
    %cst_24 = arith.constant dense<0.000000e+00> : vector<10x4xf32>
    %26 = tpu.matmul %1, %25, %cst_24 {dimension_numbers = #tpu.dot_dimension_numbers<[1], [0], [0], [1], [0, 0, 1, 1], [], []>} : vector<10x10xbf16>, vector<10x4xbf16>, vector<10x4xf32> -> vector<10x4xf32>
    %c0_25 = arith.constant 0 : index
    %c0_26 = arith.constant 0 : index
    %c0_27 = arith.constant 0 : index
    %27 = vector.load %arg5[%c0_25, %c0_26, %c0_27] : memref<2x1x4xf32, #tpu.memory_space<vmem>>, vector<1x1x4xf32>
    %28 = vector.shape_cast %27 : vector<1x1x4xf32> to vector<1x4xf32>
    %29 = vector.broadcast %28 : vector<1x4xf32> to vector<10x4xf32>
    %30 = arith.addf %26, %29 : vector<10x4xf32>
    %31 = arith.truncf %8 : vector<10x8xf32> to vector<10x8xbf16>
    %32 = arith.truncf %2 : vector<8x128xf32> to vector<8x128xbf16>
    %cst_28 = arith.constant dense<0.000000e+00> : vector<10x128xf32>
    %33 = tpu.matmul %31, %32, %cst_28 {dimension_numbers = #tpu.dot_dimension_numbers<[1], [0], [0], [1], [0, 0, 1, 1], [], []>} : vector<10x8xbf16>, vector<8x128xbf16>, vector<10x128xf32> -> vector<10x128xf32>
    %34 = vector.broadcast %3 : vector<1x128xf32> to vector<10x128xf32>
    %35 = arith.addf %33, %34 : vector<10x128xf32>
    %cst_29 = arith.constant 0.000000e+00 : f32
    %36 = vector.broadcast %cst_29 : f32 to vector<10x128xf32>
    %37 = arith.maximumf %35, %36 : vector<10x128xf32>
    %38 = arith.truncf %37 : vector<10x128xf32> to vector<10x128xbf16>
    %39 = arith.truncf %4 : vector<128x4xf32> to vector<128x4xbf16>
    %cst_30 = arith.constant dense<0.000000e+00> : vector<10x4xf32>
    %40 = tpu.matmul %38, %39, %cst_30 {dimension_numbers = #tpu.dot_dimension_numbers<[1], [0], [0], [1], [0, 0, 1, 1], [], []>} : vector<10x128xbf16>, vector<128x4xbf16>, vector<10x4xf32> -> vector<10x4xf32>
    %41 = vector.broadcast %5 : vector<1x4xf32> to vector<10x4xf32>
    %42 = arith.addf %40, %41 : vector<10x4xf32>
    %c0_31 = arith.constant 0 : index
    %c0_32 = arith.constant 0 : index
    %c0_33 = arith.constant 0 : index
    %43 = vector.load %arg6[%c0_31, %c0_32, %c0_33] : memref<2x4x8xf32, #tpu.memory_space<vmem>>, vector<1x4x8xf32>
    %44 = vector.shape_cast %43 : vector<1x4x8xf32> to vector<4x8xf32>
    %45 = arith.truncf %30 : vector<10x4xf32> to vector<10x4xbf16>
    %46 = arith.truncf %44 : vector<4x8xf32> to vector<4x8xbf16>
    %cst_34 = arith.constant dense<0.000000e+00> : vector<10x8xf32>
    %47 = tpu.matmul %45, %46, %cst_34 {dimension_numbers = #tpu.dot_dimension_numbers<[1], [0], [0], [1], [0, 0, 1, 1], [], []>} : vector<10x4xbf16>, vector<4x8xbf16>, vector<10x8xf32> -> vector<10x8xf32>
    %48 = arith.addf %6, %47 : vector<10x8xf32>
    %c0_35 = arith.constant 0 : index
    %c0_36 = arith.constant 0 : index
    %c0_37 = arith.constant 0 : index
    %49 = vector.load %arg7[%c0_35, %c0_36, %c0_37] : memref<2x4x8xf32, #tpu.memory_space<vmem>>, vector<1x4x8xf32>
    %50 = vector.shape_cast %49 : vector<1x4x8xf32> to vector<4x8xf32>
    %51 = arith.truncf %42 : vector<10x4xf32> to vector<10x4xbf16>
    %52 = arith.truncf %50 : vector<4x8xf32> to vector<4x8xbf16>
    %cst_38 = arith.constant dense<0.000000e+00> : vector<10x8xf32>
    %53 = tpu.matmul %51, %52, %cst_38 {dimension_numbers = #tpu.dot_dimension_numbers<[1], [0], [0], [1], [0, 0, 1, 1], [], []>} : vector<10x4xbf16>, vector<4x8xbf16>, vector<10x8xf32> -> vector<10x8xf32>
    %54 = arith.addf %48, %53 : vector<10x8xf32>
    %c1 = arith.constant 1 : index
    %c0_39 = arith.constant 0 : index
    %c0_40 = arith.constant 0 : index
    %55 = vector.load %arg1[%c1, %c0_39, %c0_40] : memref<2x10x8xf32, #tpu.memory_space<vmem>>, vector<1x10x8xf32>
    %56 = vector.shape_cast %55 : vector<1x10x8xf32> to vector<10x8xf32>
    %57 = arith.truncf %56 : vector<10x8xf32> to vector<10x8xbf16>
    %cst_41 = arith.constant dense<0.000000e+00> : vector<10x8xf32>
    %58 = tpu.matmul %1, %57, %cst_41 {dimension_numbers = #tpu.dot_dimension_numbers<[1], [0], [0], [1], [0, 0, 1, 1], [], []>} : vector<10x10xbf16>, vector<10x8xbf16>, vector<10x8xf32> -> vector<10x8xf32>
    %c1_42 = arith.constant 1 : index
    %c0_43 = arith.constant 0 : index
    %c0_44 = arith.constant 0 : index
    %59 = vector.load %arg2[%c1_42, %c0_43, %c0_44] : memref<2x8x192xf32, #tpu.memory_space<vmem>>, vector<1x8x192xf32>
    %60 = vector.shape_cast %59 : vector<1x8x192xf32> to vector<8x192xf32>
    %61 = arith.truncf %58 : vector<10x8xf32> to vector<10x8xbf16>
    %62 = arith.truncf %60 : vector<8x192xf32> to vector<8x192xbf16>
    %cst_45 = arith.constant dense<0.000000e+00> : vector<10x192xf32>
    %63 = tpu.matmul %61, %62, %cst_45 {dimension_numbers = #tpu.dot_dimension_numbers<[1], [0], [0], [1], [0, 0, 1, 1], [], []>} : vector<10x8xbf16>, vector<8x192xbf16>, vector<10x192xf32> -> vector<10x192xf32>
    %c1_46 = arith.constant 1 : index
    %c0_47 = arith.constant 0 : index
    %c0_48 = arith.constant 0 : index
    %64 = vector.load %arg3[%c1_46, %c0_47, %c0_48] : memref<2x1x192xf32, #tpu.memory_space<vmem>>, vector<1x1x192xf32>
    %65 = vector.shape_cast %64 : vector<1x1x192xf32> to vector<1x192xf32>
    %66 = vector.broadcast %65 : vector<1x192xf32> to vector<10x192xf32>
    %67 = arith.addf %63, %66 : vector<10x192xf32>
    %c1_49 = arith.constant 1 : index
    %c0_50 = arith.constant 0 : index
    %c0_51 = arith.constant 0 : index
    %68 = vector.load %arg4[%c1_49, %c0_50, %c0_51] : memref<2x192x4xf32, #tpu.memory_space<vmem>>, vector<1x192x4xf32>
    %69 = vector.shape_cast %68 : vector<1x192x4xf32> to vector<192x4xf32>
    %70 = arith.truncf %67 : vector<10x192xf32> to vector<10x192xbf16>
    %71 = arith.truncf %69 : vector<192x4xf32> to vector<192x4xbf16>
    %cst_52 = arith.constant dense<0.000000e+00> : vector<10x4xf32>
    %72 = tpu.matmul %70, %71, %cst_52 {dimension_numbers = #tpu.dot_dimension_numbers<[1], [0], [0], [1], [0, 0, 1, 1], [], []>} : vector<10x192xbf16>, vector<192x4xbf16>, vector<10x4xf32> -> vector<10x4xf32>
    %73 = arith.truncf %72 : vector<10x4xf32> to vector<10x4xbf16>
    %cst_53 = arith.constant dense<0.000000e+00> : vector<10x4xf32>
    %74 = tpu.matmul %1, %73, %cst_53 {dimension_numbers = #tpu.dot_dimension_numbers<[1], [0], [0], [1], [0, 0, 1, 1], [], []>} : vector<10x10xbf16>, vector<10x4xbf16>, vector<10x4xf32> -> vector<10x4xf32>
    %c1_54 = arith.constant 1 : index
    %c0_55 = arith.constant 0 : index
    %c0_56 = arith.constant 0 : index
    %75 = vector.load %arg5[%c1_54, %c0_55, %c0_56] : memref<2x1x4xf32, #tpu.memory_space<vmem>>, vector<1x1x4xf32>
    %76 = vector.shape_cast %75 : vector<1x1x4xf32> to vector<1x4xf32>
    %77 = vector.broadcast %76 : vector<1x4xf32> to vector<10x4xf32>
    %78 = arith.addf %74, %77 : vector<10x4xf32>
    %79 = arith.truncf %56 : vector<10x8xf32> to vector<10x8xbf16>
    %80 = arith.truncf %2 : vector<8x128xf32> to vector<8x128xbf16>
    %cst_57 = arith.constant dense<0.000000e+00> : vector<10x128xf32>
    %81 = tpu.matmul %79, %80, %cst_57 {dimension_numbers = #tpu.dot_dimension_numbers<[1], [0], [0], [1], [0, 0, 1, 1], [], []>} : vector<10x8xbf16>, vector<8x128xbf16>, vector<10x128xf32> -> vector<10x128xf32>
    %82 = vector.broadcast %3 : vector<1x128xf32> to vector<10x128xf32>
    %83 = arith.addf %81, %82 : vector<10x128xf32>
    %cst_58 = arith.constant 0.000000e+00 : f32
    %84 = vector.broadcast %cst_58 : f32 to vector<10x128xf32>
    %85 = arith.maximumf %83, %84 : vector<10x128xf32>
    %86 = arith.truncf %85 : vector<10x128xf32> to vector<10x128xbf16>
    %87 = arith.truncf %4 : vector<128x4xf32> to vector<128x4xbf16>
    %cst_59 = arith.constant dense<0.000000e+00> : vector<10x4xf32>
    %88 = tpu.matmul %86, %87, %cst_59 {dimension_numbers = #tpu.dot_dimension_numbers<[1], [0], [0], [1], [0, 0, 1, 1], [], []>} : vector<10x128xbf16>, vector<128x4xbf16>, vector<10x4xf32> -> vector<10x4xf32>
    %89 = vector.broadcast %5 : vector<1x4xf32> to vector<10x4xf32>
    %90 = arith.addf %88, %89 : vector<10x4xf32>
    %c1_60 = arith.constant 1 : index
    %c0_61 = arith.constant 0 : index
    %c0_62 = arith.constant 0 : index
    %91 = vector.load %arg6[%c1_60, %c0_61, %c0_62] : memref<2x4x8xf32, #tpu.memory_space<vmem>>, vector<1x4x8xf32>
    %92 = vector.shape_cast %91 : vector<1x4x8xf32> to vector<4x8xf32>
    %93 = arith.truncf %78 : vector<10x4xf32> to vector<10x4xbf16>
    %94 = arith.truncf %92 : vector<4x8xf32> to vector<4x8xbf16>
    %cst_63 = arith.constant dense<0.000000e+00> : vector<10x8xf32>
    %95 = tpu.matmul %93, %94, %cst_63 {dimension_numbers = #tpu.dot_dimension_numbers<[1], [0], [0], [1], [0, 0, 1, 1], [], []>} : vector<10x4xbf16>, vector<4x8xbf16>, vector<10x8xf32> -> vector<10x8xf32>
    %96 = arith.addf %54, %95 : vector<10x8xf32>
    %c1_64 = arith.constant 1 : index
    %c0_65 = arith.constant 0 : index
    %c0_66 = arith.constant 0 : index
    %97 = vector.load %arg7[%c1_64, %c0_65, %c0_66] : memref<2x4x8xf32, #tpu.memory_space<vmem>>, vector<1x4x8xf32>
    %98 = vector.shape_cast %97 : vector<1x4x8xf32> to vector<4x8xf32>
    %99 = arith.truncf %90 : vector<10x4xf32> to vector<10x4xbf16>
    %100 = arith.truncf %98 : vector<4x8xf32> to vector<4x8xbf16>
    %cst_67 = arith.constant dense<0.000000e+00> : vector<10x8xf32>
    %101 = tpu.matmul %99, %100, %cst_67 {dimension_numbers = #tpu.dot_dimension_numbers<[1], [0], [0], [1], [0, 0, 1, 1], [], []>} : vector<10x4xbf16>, vector<4x8xbf16>, vector<10x8xf32> -> vector<10x8xf32>
    %102 = arith.addf %96, %101 : vector<10x8xf32>
    %c0_68 = arith.constant 0 : index
    %c0_69 = arith.constant 0 : index
    %103 = vector.load %arg12[%c0_68, %c0_69] : memref<10x8xf32, #tpu.memory_space<vmem>>, vector<10x8xf32>
    tpu.vector_store %arg12[%c0_68, %c0_69], %102 {strides = array<i32>} : memref<10x8xf32, #tpu.memory_space<vmem>>, vector<10x8xf32>,
    return
  }
}

module attributes {stable_mosaic.version = 11 : i64} {
  func.func @_gru2_kernel(%arg0: memref<5x2x8xf32, #tpu.memory_space<vmem>>, %arg1: memref<2x2x16xf32, #tpu.memory_space<vmem>>, %arg2: memref<8x48xf32, #tpu.memory_space<vmem>>, %arg3: memref<16x48xf32, #tpu.memory_space<vmem>>, %arg4: memref<1x48xf32, #tpu.memory_space<vmem>>, %arg5: memref<1x48xf32, #tpu.memory_space<vmem>>, %arg6: memref<16x48xf32, #tpu.memory_space<vmem>>, %arg7: memref<16x48xf32, #tpu.memory_space<vmem>>, %arg8: memref<1x48xf32, #tpu.memory_space<vmem>>, %arg9: memref<1x48xf32, #tpu.memory_space<vmem>>, %arg10: memref<5x2x16xf32, #tpu.memory_space<vmem>>, %arg11: memref<2x2x16xf32, #tpu.memory_space<vmem>>) attributes {dimension_semantics = [], scalar_prefetch = 0 : i64, scratch_operands = 0 : i64, tpu.core_type = #tpu.core_type<tc>} {
    %c0 = arith.constant 0 : index
    %c0_0 = arith.constant 0 : index
    %0 = vector.load %arg2[%c0, %c0_0] : memref<8x48xf32, #tpu.memory_space<vmem>>, vector<8x48xf32>
    %c0_1 = arith.constant 0 : index
    %c0_2 = arith.constant 0 : index
    %1 = vector.load %arg3[%c0_1, %c0_2] : memref<16x48xf32, #tpu.memory_space<vmem>>, vector<16x48xf32>
    %c0_3 = arith.constant 0 : index
    %c0_4 = arith.constant 0 : index
    %2 = vector.load %arg6[%c0_3, %c0_4] : memref<16x48xf32, #tpu.memory_space<vmem>>, vector<16x48xf32>
    %c0_5 = arith.constant 0 : index
    %c0_6 = arith.constant 0 : index
    %3 = vector.load %arg7[%c0_5, %c0_6] : memref<16x48xf32, #tpu.memory_space<vmem>>, vector<16x48xf32>
    %c0_7 = arith.constant 0 : index
    %c0_8 = arith.constant 0 : index
    %4 = vector.load %arg4[%c0_7, %c0_8] : memref<1x48xf32, #tpu.memory_space<vmem>>, vector<1x48xf32>
    %c0_9 = arith.constant 0 : index
    %c0_10 = arith.constant 0 : index
    %5 = vector.load %arg5[%c0_9, %c0_10] : memref<1x48xf32, #tpu.memory_space<vmem>>, vector<1x48xf32>
    %c0_11 = arith.constant 0 : index
    %c0_12 = arith.constant 0 : index
    %6 = vector.load %arg8[%c0_11, %c0_12] : memref<1x48xf32, #tpu.memory_space<vmem>>, vector<1x48xf32>
    %c0_13 = arith.constant 0 : index
    %c0_14 = arith.constant 0 : index
    %7 = vector.load %arg9[%c0_13, %c0_14] : memref<1x48xf32, #tpu.memory_space<vmem>>, vector<1x48xf32>
    %c0_15 = arith.constant 0 : index
    %c0_16 = arith.constant 0 : index
    %c0_17 = arith.constant 0 : index
    %8 = vector.load %arg1[%c0_15, %c0_16, %c0_17] : memref<2x2x16xf32, #tpu.memory_space<vmem>>, vector<1x2x16xf32>
    %9 = vector.shape_cast %8 : vector<1x2x16xf32> to vector<2x16xf32>
    %c1 = arith.constant 1 : index
    %c0_18 = arith.constant 0 : index
    %c0_19 = arith.constant 0 : index
    %10 = vector.load %arg1[%c1, %c0_18, %c0_19] : memref<2x2x16xf32, #tpu.memory_space<vmem>>, vector<1x2x16xf32>
    %11 = vector.shape_cast %10 : vector<1x2x16xf32> to vector<2x16xf32>
    %c0_i32 = arith.constant 0 : i32
    %12 = arith.index_cast %c0_i32 : i32 to index
    %c0_20 = arith.constant 0 : index
    %c0_21 = arith.constant 0 : index
    %13 = vector.load %arg0[%12, %c0_20, %c0_21] : memref<5x2x8xf32, #tpu.memory_space<vmem>>, vector<1x2x8xf32>
    %14 = vector.shape_cast %13 : vector<1x2x8xf32> to vector<2x8xf32>
    %cst = arith.constant dense<0.000000e+00> : vector<2x48xf32>
    %15 = tpu.matmul %14, %0, %cst {dimension_numbers = #tpu.dot_dimension_numbers<[1], [0], [0], [1], [0, 0, 1, 1], [], []>} : vector<2x8xf32>, vector<8x48xf32>, vector<2x48xf32> -> vector<2x48xf32>
    %16 = vector.broadcast %4 : vector<1x48xf32> to vector<2x48xf32>
    %17 = arith.addf %15, %16 : vector<2x48xf32>
    %cst_22 = arith.constant dense<0.000000e+00> : vector<2x48xf32>
    %18 = tpu.matmul %9, %1, %cst_22 {dimension_numbers = #tpu.dot_dimension_numbers<[1], [0], [0], [1], [0, 0, 1, 1], [], []>} : vector<2x16xf32>, vector<16x48xf32>, vector<2x48xf32> -> vector<2x48xf32>
    %19 = vector.broadcast %5 : vector<1x48xf32> to vector<2x48xf32>
    %20 = arith.addf %18, %19 : vector<2x48xf32>
    %21 = vector.extract_strided_slice %17 {offsets = [0, 0], sizes = [2, 16], strides = [1, 1]} : vector<2x48xf32> to vector<2x16xf32>
    %22 = vector.extract_strided_slice %20 {offsets = [0, 0], sizes = [2, 16], strides = [1, 1]} : vector<2x48xf32> to vector<2x16xf32>
    %23 = arith.addf %21, %22 : vector<2x16xf32>
    %24 = arith.negf %23 : vector<2x16xf32>
    %25 = math.exp %24 : vector<2x16xf32>
    %cst_23 = arith.constant 1.000000e+00 : f32
    %26 = vector.broadcast %cst_23 : f32 to vector<2x16xf32>
    %27 = arith.addf %26, %25 : vector<2x16xf32>
    %28 = arith.divf %26, %27 : vector<2x16xf32>
    %29 = vector.extract_strided_slice %17 {offsets = [0, 16], sizes = [2, 16], strides = [1, 1]} : vector<2x48xf32> to vector<2x16xf32>
    %30 = vector.extract_strided_slice %20 {offsets = [0, 16], sizes = [2, 16], strides = [1, 1]} : vector<2x48xf32> to vector<2x16xf32>
    %31 = arith.addf %29, %30 : vector<2x16xf32>
    %32 = arith.negf %31 : vector<2x16xf32>
    %33 = math.exp %32 : vector<2x16xf32>
    %cst_24 = arith.constant 1.000000e+00 : f32
    %34 = vector.broadcast %cst_24 : f32 to vector<2x16xf32>
    %35 = arith.addf %34, %33 : vector<2x16xf32>
    %36 = arith.divf %34, %35 : vector<2x16xf32>
    %37 = vector.extract_strided_slice %17 {offsets = [0, 32], sizes = [2, 16], strides = [1, 1]} : vector<2x48xf32> to vector<2x16xf32>
    %38 = vector.extract_strided_slice %20 {offsets = [0, 32], sizes = [2, 16], strides = [1, 1]} : vector<2x48xf32> to vector<2x16xf32>
    %39 = arith.mulf %28, %38 : vector<2x16xf32>
    %40 = arith.addf %37, %39 : vector<2x16xf32>
    %41 = math.tanh %40 : vector<2x16xf32>
    %cst_25 = arith.constant 1.000000e+00 : f32
    %42 = vector.broadcast %cst_25 : f32 to vector<2x16xf32>
    %43 = arith.subf %42, %36 : vector<2x16xf32>
    %44 = arith.mulf %43, %41 : vector<2x16xf32>
    %45 = arith.mulf %36, %9 : vector<2x16xf32>
    %46 = arith.addf %44, %45 : vector<2x16xf32>
    %cst_26 = arith.constant dense<0.000000e+00> : vector<2x48xf32>
    %47 = tpu.matmul %46, %2, %cst_26 {dimension_numbers = #tpu.dot_dimension_numbers<[1], [0], [0], [1], [0, 0, 1, 1], [], []>} : vector<2x16xf32>, vector<16x48xf32>, vector<2x48xf32> -> vector<2x48xf32>
    %48 = vector.broadcast %6 : vector<1x48xf32> to vector<2x48xf32>
    %49 = arith.addf %47, %48 : vector<2x48xf32>
    %cst_27 = arith.constant dense<0.000000e+00> : vector<2x48xf32>
    %50 = tpu.matmul %11, %3, %cst_27 {dimension_numbers = #tpu.dot_dimension_numbers<[1], [0], [0], [1], [0, 0, 1, 1], [], []>} : vector<2x16xf32>, vector<16x48xf32>, vector<2x48xf32> -> vector<2x48xf32>
    %51 = vector.broadcast %7 : vector<1x48xf32> to vector<2x48xf32>
    %52 = arith.addf %50, %51 : vector<2x48xf32>
    %53 = vector.extract_strided_slice %49 {offsets = [0, 0], sizes = [2, 16], strides = [1, 1]} : vector<2x48xf32> to vector<2x16xf32>
    %54 = vector.extract_strided_slice %52 {offsets = [0, 0], sizes = [2, 16], strides = [1, 1]} : vector<2x48xf32> to vector<2x16xf32>
    %55 = arith.addf %53, %54 : vector<2x16xf32>
    %56 = arith.negf %55 : vector<2x16xf32>
    %57 = math.exp %56 : vector<2x16xf32>
    %cst_28 = arith.constant 1.000000e+00 : f32
    %58 = vector.broadcast %cst_28 : f32 to vector<2x16xf32>
    %59 = arith.addf %58, %57 : vector<2x16xf32>
    %60 = arith.divf %58, %59 : vector<2x16xf32>
    %61 = vector.extract_strided_slice %49 {offsets = [0, 16], sizes = [2, 16], strides = [1, 1]} : vector<2x48xf32> to vector<2x16xf32>
    %62 = vector.extract_strided_slice %52 {offsets = [0, 16], sizes = [2, 16], strides = [1, 1]} : vector<2x48xf32> to vector<2x16xf32>
    %63 = arith.addf %61, %62 : vector<2x16xf32>
    %64 = arith.negf %63 : vector<2x16xf32>
    %65 = math.exp %64 : vector<2x16xf32>
    %cst_29 = arith.constant 1.000000e+00 : f32
    %66 = vector.broadcast %cst_29 : f32 to vector<2x16xf32>
    %67 = arith.addf %66, %65 : vector<2x16xf32>
    %68 = arith.divf %66, %67 : vector<2x16xf32>
    %69 = vector.extract_strided_slice %49 {offsets = [0, 32], sizes = [2, 16], strides = [1, 1]} : vector<2x48xf32> to vector<2x16xf32>
    %70 = vector.extract_strided_slice %52 {offsets = [0, 32], sizes = [2, 16], strides = [1, 1]} : vector<2x48xf32> to vector<2x16xf32>
    %71 = arith.mulf %60, %70 : vector<2x16xf32>
    %72 = arith.addf %69, %71 : vector<2x16xf32>
    %73 = math.tanh %72 : vector<2x16xf32>
    %cst_30 = arith.constant 1.000000e+00 : f32
    %74 = vector.broadcast %cst_30 : f32 to vector<2x16xf32>
    %75 = arith.subf %74, %68 : vector<2x16xf32>
    %76 = arith.mulf %75, %73 : vector<2x16xf32>
    %77 = arith.mulf %68, %11 : vector<2x16xf32>
    %78 = arith.addf %76, %77 : vector<2x16xf32>
    %79 = arith.index_cast %c0_i32 : i32 to index
    %c0_31 = arith.constant 0 : index
    %c0_32 = arith.constant 0 : index
    %80 = vector.load %arg10[%79, %c0_31, %c0_32] : memref<5x2x16xf32, #tpu.memory_space<vmem>>, vector<1x2x16xf32>
    %81 = vector.shape_cast %80 : vector<1x2x16xf32> to vector<2x16xf32>
    %82 = vector.shape_cast %78 : vector<2x16xf32> to vector<1x2x16xf32>
    tpu.vector_store %arg10[%79, %c0_31, %c0_32], %82 {strides = array<i32>} : memref<5x2x16xf32, #tpu.memory_space<vmem>>, vector<1x2x16xf32>,
    %c1_i32 = arith.constant 1 : i32
    %83 = arith.index_cast %c1_i32 : i32 to index
    %c0_33 = arith.constant 0 : index
    %c0_34 = arith.constant 0 : index
    %84 = vector.load %arg0[%83, %c0_33, %c0_34] : memref<5x2x8xf32, #tpu.memory_space<vmem>>, vector<1x2x8xf32>
    %85 = vector.shape_cast %84 : vector<1x2x8xf32> to vector<2x8xf32>
    %cst_35 = arith.constant dense<0.000000e+00> : vector<2x48xf32>
    %86 = tpu.matmul %85, %0, %cst_35 {dimension_numbers = #tpu.dot_dimension_numbers<[1], [0], [0], [1], [0, 0, 1, 1], [], []>} : vector<2x8xf32>, vector<8x48xf32>, vector<2x48xf32> -> vector<2x48xf32>
    %87 = vector.broadcast %4 : vector<1x48xf32> to vector<2x48xf32>
    %88 = arith.addf %86, %87 : vector<2x48xf32>
    %cst_36 = arith.constant dense<0.000000e+00> : vector<2x48xf32>
    %89 = tpu.matmul %46, %1, %cst_36 {dimension_numbers = #tpu.dot_dimension_numbers<[1], [0], [0], [1], [0, 0, 1, 1], [], []>} : vector<2x16xf32>, vector<16x48xf32>, vector<2x48xf32> -> vector<2x48xf32>
    %90 = vector.broadcast %5 : vector<1x48xf32> to vector<2x48xf32>
    %91 = arith.addf %89, %90 : vector<2x48xf32>
    %92 = vector.extract_strided_slice %88 {offsets = [0, 0], sizes = [2, 16], strides = [1, 1]} : vector<2x48xf32> to vector<2x16xf32>
    %93 = vector.extract_strided_slice %91 {offsets = [0, 0], sizes = [2, 16], strides = [1, 1]} : vector<2x48xf32> to vector<2x16xf32>
    %94 = arith.addf %92, %93 : vector<2x16xf32>
    %95 = arith.negf %94 : vector<2x16xf32>
    %96 = math.exp %95 : vector<2x16xf32>
    %cst_37 = arith.constant 1.000000e+00 : f32
    %97 = vector.broadcast %cst_37 : f32 to vector<2x16xf32>
    %98 = arith.addf %97, %96 : vector<2x16xf32>
    %99 = arith.divf %97, %98 : vector<2x16xf32>
    %100 = vector.extract_strided_slice %88 {offsets = [0, 16], sizes = [2, 16], strides = [1, 1]} : vector<2x48xf32> to vector<2x16xf32>
    %101 = vector.extract_strided_slice %91 {offsets = [0, 16], sizes = [2, 16], strides = [1, 1]} : vector<2x48xf32> to vector<2x16xf32>
    %102 = arith.addf %100, %101 : vector<2x16xf32>
    %103 = arith.negf %102 : vector<2x16xf32>
    %104 = math.exp %103 : vector<2x16xf32>
    %cst_38 = arith.constant 1.000000e+00 : f32
    %105 = vector.broadcast %cst_38 : f32 to vector<2x16xf32>
    %106 = arith.addf %105, %104 : vector<2x16xf32>
    %107 = arith.divf %105, %106 : vector<2x16xf32>
    %108 = vector.extract_strided_slice %88 {offsets = [0, 32], sizes = [2, 16], strides = [1, 1]} : vector<2x48xf32> to vector<2x16xf32>
    %109 = vector.extract_strided_slice %91 {offsets = [0, 32], sizes = [2, 16], strides = [1, 1]} : vector<2x48xf32> to vector<2x16xf32>
    %110 = arith.mulf %99, %109 : vector<2x16xf32>
    %111 = arith.addf %108, %110 : vector<2x16xf32>
    %112 = math.tanh %111 : vector<2x16xf32>
    %cst_39 = arith.constant 1.000000e+00 : f32
    %113 = vector.broadcast %cst_39 : f32 to vector<2x16xf32>
    %114 = arith.subf %113, %107 : vector<2x16xf32>
    %115 = arith.mulf %114, %112 : vector<2x16xf32>
    %116 = arith.mulf %107, %46 : vector<2x16xf32>
    %117 = arith.addf %115, %116 : vector<2x16xf32>
    %cst_40 = arith.constant dense<0.000000e+00> : vector<2x48xf32>
    %118 = tpu.matmul %117, %2, %cst_40 {dimension_numbers = #tpu.dot_dimension_numbers<[1], [0], [0], [1], [0, 0, 1, 1], [], []>} : vector<2x16xf32>, vector<16x48xf32>, vector<2x48xf32> -> vector<2x48xf32>
    %119 = vector.broadcast %6 : vector<1x48xf32> to vector<2x48xf32>
    %120 = arith.addf %118, %119 : vector<2x48xf32>
    %cst_41 = arith.constant dense<0.000000e+00> : vector<2x48xf32>
    %121 = tpu.matmul %78, %3, %cst_41 {dimension_numbers = #tpu.dot_dimension_numbers<[1], [0], [0], [1], [0, 0, 1, 1], [], []>} : vector<2x16xf32>, vector<16x48xf32>, vector<2x48xf32> -> vector<2x48xf32>
    %122 = vector.broadcast %7 : vector<1x48xf32> to vector<2x48xf32>
    %123 = arith.addf %121, %122 : vector<2x48xf32>
    %124 = vector.extract_strided_slice %120 {offsets = [0, 0], sizes = [2, 16], strides = [1, 1]} : vector<2x48xf32> to vector<2x16xf32>
    %125 = vector.extract_strided_slice %123 {offsets = [0, 0], sizes = [2, 16], strides = [1, 1]} : vector<2x48xf32> to vector<2x16xf32>
    %126 = arith.addf %124, %125 : vector<2x16xf32>
    %127 = arith.negf %126 : vector<2x16xf32>
    %128 = math.exp %127 : vector<2x16xf32>
    %cst_42 = arith.constant 1.000000e+00 : f32
    %129 = vector.broadcast %cst_42 : f32 to vector<2x16xf32>
    %130 = arith.addf %129, %128 : vector<2x16xf32>
    %131 = arith.divf %129, %130 : vector<2x16xf32>
    %132 = vector.extract_strided_slice %120 {offsets = [0, 16], sizes = [2, 16], strides = [1, 1]} : vector<2x48xf32> to vector<2x16xf32>
    %133 = vector.extract_strided_slice %123 {offsets = [0, 16], sizes = [2, 16], strides = [1, 1]} : vector<2x48xf32> to vector<2x16xf32>
    %134 = arith.addf %132, %133 : vector<2x16xf32>
    %135 = arith.negf %134 : vector<2x16xf32>
    %136 = math.exp %135 : vector<2x16xf32>
    %cst_43 = arith.constant 1.000000e+00 : f32
    %137 = vector.broadcast %cst_43 : f32 to vector<2x16xf32>
    %138 = arith.addf %137, %136 : vector<2x16xf32>
    %139 = arith.divf %137, %138 : vector<2x16xf32>
    %140 = vector.extract_strided_slice %120 {offsets = [0, 32], sizes = [2, 16], strides = [1, 1]} : vector<2x48xf32> to vector<2x16xf32>
    %141 = vector.extract_strided_slice %123 {offsets = [0, 32], sizes = [2, 16], strides = [1, 1]} : vector<2x48xf32> to vector<2x16xf32>
    %142 = arith.mulf %131, %141 : vector<2x16xf32>
    %143 = arith.addf %140, %142 : vector<2x16xf32>
    %144 = math.tanh %143 : vector<2x16xf32>
    %cst_44 = arith.constant 1.000000e+00 : f32
    %145 = vector.broadcast %cst_44 : f32 to vector<2x16xf32>
    %146 = arith.subf %145, %139 : vector<2x16xf32>
    %147 = arith.mulf %146, %144 : vector<2x16xf32>
    %148 = arith.mulf %139, %78 : vector<2x16xf32>
    %149 = arith.addf %147, %148 : vector<2x16xf32>
    %150 = arith.index_cast %c1_i32 : i32 to index
    %c0_45 = arith.constant 0 : index
    %c0_46 = arith.constant 0 : index
    %151 = vector.load %arg10[%150, %c0_45, %c0_46] : memref<5x2x16xf32, #tpu.memory_space<vmem>>, vector<1x2x16xf32>
    %152 = vector.shape_cast %151 : vector<1x2x16xf32> to vector<2x16xf32>
    %153 = vector.shape_cast %149 : vector<2x16xf32> to vector<1x2x16xf32>
    tpu.vector_store %arg10[%150, %c0_45, %c0_46], %153 {strides = array<i32>} : memref<5x2x16xf32, #tpu.memory_space<vmem>>, vector<1x2x16xf32>,
    %c2_i32 = arith.constant 2 : i32
    %154 = arith.index_cast %c2_i32 : i32 to index
    %c0_47 = arith.constant 0 : index
    %c0_48 = arith.constant 0 : index
    %155 = vector.load %arg0[%154, %c0_47, %c0_48] : memref<5x2x8xf32, #tpu.memory_space<vmem>>, vector<1x2x8xf32>
    %156 = vector.shape_cast %155 : vector<1x2x8xf32> to vector<2x8xf32>
    %cst_49 = arith.constant dense<0.000000e+00> : vector<2x48xf32>
    %157 = tpu.matmul %156, %0, %cst_49 {dimension_numbers = #tpu.dot_dimension_numbers<[1], [0], [0], [1], [0, 0, 1, 1], [], []>} : vector<2x8xf32>, vector<8x48xf32>, vector<2x48xf32> -> vector<2x48xf32>
    %158 = vector.broadcast %4 : vector<1x48xf32> to vector<2x48xf32>
    %159 = arith.addf %157, %158 : vector<2x48xf32>
    %cst_50 = arith.constant dense<0.000000e+00> : vector<2x48xf32>
    %160 = tpu.matmul %117, %1, %cst_50 {dimension_numbers = #tpu.dot_dimension_numbers<[1], [0], [0], [1], [0, 0, 1, 1], [], []>} : vector<2x16xf32>, vector<16x48xf32>, vector<2x48xf32> -> vector<2x48xf32>
    %161 = vector.broadcast %5 : vector<1x48xf32> to vector<2x48xf32>
    %162 = arith.addf %160, %161 : vector<2x48xf32>
    %163 = vector.extract_strided_slice %159 {offsets = [0, 0], sizes = [2, 16], strides = [1, 1]} : vector<2x48xf32> to vector<2x16xf32>
    %164 = vector.extract_strided_slice %162 {offsets = [0, 0], sizes = [2, 16], strides = [1, 1]} : vector<2x48xf32> to vector<2x16xf32>
    %165 = arith.addf %163, %164 : vector<2x16xf32>
    %166 = arith.negf %165 : vector<2x16xf32>
    %167 = math.exp %166 : vector<2x16xf32>
    %cst_51 = arith.constant 1.000000e+00 : f32
    %168 = vector.broadcast %cst_51 : f32 to vector<2x16xf32>
    %169 = arith.addf %168, %167 : vector<2x16xf32>
    %170 = arith.divf %168, %169 : vector<2x16xf32>
    %171 = vector.extract_strided_slice %159 {offsets = [0, 16], sizes = [2, 16], strides = [1, 1]} : vector<2x48xf32> to vector<2x16xf32>
    %172 = vector.extract_strided_slice %162 {offsets = [0, 16], sizes = [2, 16], strides = [1, 1]} : vector<2x48xf32> to vector<2x16xf32>
    %173 = arith.addf %171, %172 : vector<2x16xf32>
    %174 = arith.negf %173 : vector<2x16xf32>
    %175 = math.exp %174 : vector<2x16xf32>
    %cst_52 = arith.constant 1.000000e+00 : f32
    %176 = vector.broadcast %cst_52 : f32 to vector<2x16xf32>
    %177 = arith.addf %176, %175 : vector<2x16xf32>
    %178 = arith.divf %176, %177 : vector<2x16xf32>
    %179 = vector.extract_strided_slice %159 {offsets = [0, 32], sizes = [2, 16], strides = [1, 1]} : vector<2x48xf32> to vector<2x16xf32>
    %180 = vector.extract_strided_slice %162 {offsets = [0, 32], sizes = [2, 16], strides = [1, 1]} : vector<2x48xf32> to vector<2x16xf32>
    %181 = arith.mulf %170, %180 : vector<2x16xf32>
    %182 = arith.addf %179, %181 : vector<2x16xf32>
    %183 = math.tanh %182 : vector<2x16xf32>
    %cst_53 = arith.constant 1.000000e+00 : f32
    %184 = vector.broadcast %cst_53 : f32 to vector<2x16xf32>
    %185 = arith.subf %184, %178 : vector<2x16xf32>
    %186 = arith.mulf %185, %183 : vector<2x16xf32>
    %187 = arith.mulf %178, %117 : vector<2x16xf32>
    %188 = arith.addf %186, %187 : vector<2x16xf32>
    %cst_54 = arith.constant dense<0.000000e+00> : vector<2x48xf32>
    %189 = tpu.matmul %188, %2, %cst_54 {dimension_numbers = #tpu.dot_dimension_numbers<[1], [0], [0], [1], [0, 0, 1, 1], [], []>} : vector<2x16xf32>, vector<16x48xf32>, vector<2x48xf32> -> vector<2x48xf32>
    %190 = vector.broadcast %6 : vector<1x48xf32> to vector<2x48xf32>
    %191 = arith.addf %189, %190 : vector<2x48xf32>
    %cst_55 = arith.constant dense<0.000000e+00> : vector<2x48xf32>
    %192 = tpu.matmul %149, %3, %cst_55 {dimension_numbers = #tpu.dot_dimension_numbers<[1], [0], [0], [1], [0, 0, 1, 1], [], []>} : vector<2x16xf32>, vector<16x48xf32>, vector<2x48xf32> -> vector<2x48xf32>
    %193 = vector.broadcast %7 : vector<1x48xf32> to vector<2x48xf32>
    %194 = arith.addf %192, %193 : vector<2x48xf32>
    %195 = vector.extract_strided_slice %191 {offsets = [0, 0], sizes = [2, 16], strides = [1, 1]} : vector<2x48xf32> to vector<2x16xf32>
    %196 = vector.extract_strided_slice %194 {offsets = [0, 0], sizes = [2, 16], strides = [1, 1]} : vector<2x48xf32> to vector<2x16xf32>
    %197 = arith.addf %195, %196 : vector<2x16xf32>
    %198 = arith.negf %197 : vector<2x16xf32>
    %199 = math.exp %198 : vector<2x16xf32>
    %cst_56 = arith.constant 1.000000e+00 : f32
    %200 = vector.broadcast %cst_56 : f32 to vector<2x16xf32>
    %201 = arith.addf %200, %199 : vector<2x16xf32>
    %202 = arith.divf %200, %201 : vector<2x16xf32>
    %203 = vector.extract_strided_slice %191 {offsets = [0, 16], sizes = [2, 16], strides = [1, 1]} : vector<2x48xf32> to vector<2x16xf32>
    %204 = vector.extract_strided_slice %194 {offsets = [0, 16], sizes = [2, 16], strides = [1, 1]} : vector<2x48xf32> to vector<2x16xf32>
    %205 = arith.addf %203, %204 : vector<2x16xf32>
    %206 = arith.negf %205 : vector<2x16xf32>
    %207 = math.exp %206 : vector<2x16xf32>
    %cst_57 = arith.constant 1.000000e+00 : f32
    %208 = vector.broadcast %cst_57 : f32 to vector<2x16xf32>
    %209 = arith.addf %208, %207 : vector<2x16xf32>
    %210 = arith.divf %208, %209 : vector<2x16xf32>
    %211 = vector.extract_strided_slice %191 {offsets = [0, 32], sizes = [2, 16], strides = [1, 1]} : vector<2x48xf32> to vector<2x16xf32>
    %212 = vector.extract_strided_slice %194 {offsets = [0, 32], sizes = [2, 16], strides = [1, 1]} : vector<2x48xf32> to vector<2x16xf32>
    %213 = arith.mulf %202, %212 : vector<2x16xf32>
    %214 = arith.addf %211, %213 : vector<2x16xf32>
    %215 = math.tanh %214 : vector<2x16xf32>
    %cst_58 = arith.constant 1.000000e+00 : f32
    %216 = vector.broadcast %cst_58 : f32 to vector<2x16xf32>
    %217 = arith.subf %216, %210 : vector<2x16xf32>
    %218 = arith.mulf %217, %215 : vector<2x16xf32>
    %219 = arith.mulf %210, %149 : vector<2x16xf32>
    %220 = arith.addf %218, %219 : vector<2x16xf32>
    %221 = arith.index_cast %c2_i32 : i32 to index
    %c0_59 = arith.constant 0 : index
    %c0_60 = arith.constant 0 : index
    %222 = vector.load %arg10[%221, %c0_59, %c0_60] : memref<5x2x16xf32, #tpu.memory_space<vmem>>, vector<1x2x16xf32>
    %223 = vector.shape_cast %222 : vector<1x2x16xf32> to vector<2x16xf32>
    %224 = vector.shape_cast %220 : vector<2x16xf32> to vector<1x2x16xf32>
    tpu.vector_store %arg10[%221, %c0_59, %c0_60], %224 {strides = array<i32>} : memref<5x2x16xf32, #tpu.memory_space<vmem>>, vector<1x2x16xf32>,
    %c3_i32 = arith.constant 3 : i32
    %225 = arith.index_cast %c3_i32 : i32 to index
    %c0_61 = arith.constant 0 : index
    %c0_62 = arith.constant 0 : index
    %226 = vector.load %arg0[%225, %c0_61, %c0_62] : memref<5x2x8xf32, #tpu.memory_space<vmem>>, vector<1x2x8xf32>
    %227 = vector.shape_cast %226 : vector<1x2x8xf32> to vector<2x8xf32>
    %cst_63 = arith.constant dense<0.000000e+00> : vector<2x48xf32>
    %228 = tpu.matmul %227, %0, %cst_63 {dimension_numbers = #tpu.dot_dimension_numbers<[1], [0], [0], [1], [0, 0, 1, 1], [], []>} : vector<2x8xf32>, vector<8x48xf32>, vector<2x48xf32> -> vector<2x48xf32>
    %229 = vector.broadcast %4 : vector<1x48xf32> to vector<2x48xf32>
    %230 = arith.addf %228, %229 : vector<2x48xf32>
    %cst_64 = arith.constant dense<0.000000e+00> : vector<2x48xf32>
    %231 = tpu.matmul %188, %1, %cst_64 {dimension_numbers = #tpu.dot_dimension_numbers<[1], [0], [0], [1], [0, 0, 1, 1], [], []>} : vector<2x16xf32>, vector<16x48xf32>, vector<2x48xf32> -> vector<2x48xf32>
    %232 = vector.broadcast %5 : vector<1x48xf32> to vector<2x48xf32>
    %233 = arith.addf %231, %232 : vector<2x48xf32>
    %234 = vector.extract_strided_slice %230 {offsets = [0, 0], sizes = [2, 16], strides = [1, 1]} : vector<2x48xf32> to vector<2x16xf32>
    %235 = vector.extract_strided_slice %233 {offsets = [0, 0], sizes = [2, 16], strides = [1, 1]} : vector<2x48xf32> to vector<2x16xf32>
    %236 = arith.addf %234, %235 : vector<2x16xf32>
    %237 = arith.negf %236 : vector<2x16xf32>
    %238 = math.exp %237 : vector<2x16xf32>
    %cst_65 = arith.constant 1.000000e+00 : f32
    %239 = vector.broadcast %cst_65 : f32 to vector<2x16xf32>
    %240 = arith.addf %239, %238 : vector<2x16xf32>
    %241 = arith.divf %239, %240 : vector<2x16xf32>
    %242 = vector.extract_strided_slice %230 {offsets = [0, 16], sizes = [2, 16], strides = [1, 1]} : vector<2x48xf32> to vector<2x16xf32>
    %243 = vector.extract_strided_slice %233 {offsets = [0, 16], sizes = [2, 16], strides = [1, 1]} : vector<2x48xf32> to vector<2x16xf32>
    %244 = arith.addf %242, %243 : vector<2x16xf32>
    %245 = arith.negf %244 : vector<2x16xf32>
    %246 = math.exp %245 : vector<2x16xf32>
    %cst_66 = arith.constant 1.000000e+00 : f32
    %247 = vector.broadcast %cst_66 : f32 to vector<2x16xf32>
    %248 = arith.addf %247, %246 : vector<2x16xf32>
    %249 = arith.divf %247, %248 : vector<2x16xf32>
    %250 = vector.extract_strided_slice %230 {offsets = [0, 32], sizes = [2, 16], strides = [1, 1]} : vector<2x48xf32> to vector<2x16xf32>
    %251 = vector.extract_strided_slice %233 {offsets = [0, 32], sizes = [2, 16], strides = [1, 1]} : vector<2x48xf32> to vector<2x16xf32>
    %252 = arith.mulf %241, %251 : vector<2x16xf32>
    %253 = arith.addf %250, %252 : vector<2x16xf32>
    %254 = math.tanh %253 : vector<2x16xf32>
    %cst_67 = arith.constant 1.000000e+00 : f32
    %255 = vector.broadcast %cst_67 : f32 to vector<2x16xf32>
    %256 = arith.subf %255, %249 : vector<2x16xf32>
    %257 = arith.mulf %256, %254 : vector<2x16xf32>
    %258 = arith.mulf %249, %188 : vector<2x16xf32>
    %259 = arith.addf %257, %258 : vector<2x16xf32>
    %cst_68 = arith.constant dense<0.000000e+00> : vector<2x48xf32>
    %260 = tpu.matmul %259, %2, %cst_68 {dimension_numbers = #tpu.dot_dimension_numbers<[1], [0], [0], [1], [0, 0, 1, 1], [], []>} : vector<2x16xf32>, vector<16x48xf32>, vector<2x48xf32> -> vector<2x48xf32>
    %261 = vector.broadcast %6 : vector<1x48xf32> to vector<2x48xf32>
    %262 = arith.addf %260, %261 : vector<2x48xf32>
    %cst_69 = arith.constant dense<0.000000e+00> : vector<2x48xf32>
    %263 = tpu.matmul %220, %3, %cst_69 {dimension_numbers = #tpu.dot_dimension_numbers<[1], [0], [0], [1], [0, 0, 1, 1], [], []>} : vector<2x16xf32>, vector<16x48xf32>, vector<2x48xf32> -> vector<2x48xf32>
    %264 = vector.broadcast %7 : vector<1x48xf32> to vector<2x48xf32>
    %265 = arith.addf %263, %264 : vector<2x48xf32>
    %266 = vector.extract_strided_slice %262 {offsets = [0, 0], sizes = [2, 16], strides = [1, 1]} : vector<2x48xf32> to vector<2x16xf32>
    %267 = vector.extract_strided_slice %265 {offsets = [0, 0], sizes = [2, 16], strides = [1, 1]} : vector<2x48xf32> to vector<2x16xf32>
    %268 = arith.addf %266, %267 : vector<2x16xf32>
    %269 = arith.negf %268 : vector<2x16xf32>
    %270 = math.exp %269 : vector<2x16xf32>
    %cst_70 = arith.constant 1.000000e+00 : f32
    %271 = vector.broadcast %cst_70 : f32 to vector<2x16xf32>
    %272 = arith.addf %271, %270 : vector<2x16xf32>
    %273 = arith.divf %271, %272 : vector<2x16xf32>
    %274 = vector.extract_strided_slice %262 {offsets = [0, 16], sizes = [2, 16], strides = [1, 1]} : vector<2x48xf32> to vector<2x16xf32>
    %275 = vector.extract_strided_slice %265 {offsets = [0, 16], sizes = [2, 16], strides = [1, 1]} : vector<2x48xf32> to vector<2x16xf32>
    %276 = arith.addf %274, %275 : vector<2x16xf32>
    %277 = arith.negf %276 : vector<2x16xf32>
    %278 = math.exp %277 : vector<2x16xf32>
    %cst_71 = arith.constant 1.000000e+00 : f32
    %279 = vector.broadcast %cst_71 : f32 to vector<2x16xf32>
    %280 = arith.addf %279, %278 : vector<2x16xf32>
    %281 = arith.divf %279, %280 : vector<2x16xf32>
    %282 = vector.extract_strided_slice %262 {offsets = [0, 32], sizes = [2, 16], strides = [1, 1]} : vector<2x48xf32> to vector<2x16xf32>
    %283 = vector.extract_strided_slice %265 {offsets = [0, 32], sizes = [2, 16], strides = [1, 1]} : vector<2x48xf32> to vector<2x16xf32>
    %284 = arith.mulf %273, %283 : vector<2x16xf32>
    %285 = arith.addf %282, %284 : vector<2x16xf32>
    %286 = math.tanh %285 : vector<2x16xf32>
    %cst_72 = arith.constant 1.000000e+00 : f32
    %287 = vector.broadcast %cst_72 : f32 to vector<2x16xf32>
    %288 = arith.subf %287, %281 : vector<2x16xf32>
    %289 = arith.mulf %288, %286 : vector<2x16xf32>
    %290 = arith.mulf %281, %220 : vector<2x16xf32>
    %291 = arith.addf %289, %290 : vector<2x16xf32>
    %292 = arith.index_cast %c3_i32 : i32 to index
    %c0_73 = arith.constant 0 : index
    %c0_74 = arith.constant 0 : index
    %293 = vector.load %arg10[%292, %c0_73, %c0_74] : memref<5x2x16xf32, #tpu.memory_space<vmem>>, vector<1x2x16xf32>
    %294 = vector.shape_cast %293 : vector<1x2x16xf32> to vector<2x16xf32>
    %295 = vector.shape_cast %291 : vector<2x16xf32> to vector<1x2x16xf32>
    tpu.vector_store %arg10[%292, %c0_73, %c0_74], %295 {strides = array<i32>} : memref<5x2x16xf32, #tpu.memory_space<vmem>>, vector<1x2x16xf32>,
    %c4_i32 = arith.constant 4 : i32
    %296 = arith.index_cast %c4_i32 : i32 to index
    %c0_75 = arith.constant 0 : index
    %c0_76 = arith.constant 0 : index
    %297 = vector.load %arg0[%296, %c0_75, %c0_76] : memref<5x2x8xf32, #tpu.memory_space<vmem>>, vector<1x2x8xf32>
    %298 = vector.shape_cast %297 : vector<1x2x8xf32> to vector<2x8xf32>
    %cst_77 = arith.constant dense<0.000000e+00> : vector<2x48xf32>
    %299 = tpu.matmul %298, %0, %cst_77 {dimension_numbers = #tpu.dot_dimension_numbers<[1], [0], [0], [1], [0, 0, 1, 1], [], []>} : vector<2x8xf32>, vector<8x48xf32>, vector<2x48xf32> -> vector<2x48xf32>
    %300 = vector.broadcast %4 : vector<1x48xf32> to vector<2x48xf32>
    %301 = arith.addf %299, %300 : vector<2x48xf32>
    %cst_78 = arith.constant dense<0.000000e+00> : vector<2x48xf32>
    %302 = tpu.matmul %259, %1, %cst_78 {dimension_numbers = #tpu.dot_dimension_numbers<[1], [0], [0], [1], [0, 0, 1, 1], [], []>} : vector<2x16xf32>, vector<16x48xf32>, vector<2x48xf32> -> vector<2x48xf32>
    %303 = vector.broadcast %5 : vector<1x48xf32> to vector<2x48xf32>
    %304 = arith.addf %302, %303 : vector<2x48xf32>
    %305 = vector.extract_strided_slice %301 {offsets = [0, 0], sizes = [2, 16], strides = [1, 1]} : vector<2x48xf32> to vector<2x16xf32>
    %306 = vector.extract_strided_slice %304 {offsets = [0, 0], sizes = [2, 16], strides = [1, 1]} : vector<2x48xf32> to vector<2x16xf32>
    %307 = arith.addf %305, %306 : vector<2x16xf32>
    %308 = arith.negf %307 : vector<2x16xf32>
    %309 = math.exp %308 : vector<2x16xf32>
    %cst_79 = arith.constant 1.000000e+00 : f32
    %310 = vector.broadcast %cst_79 : f32 to vector<2x16xf32>
    %311 = arith.addf %310, %309 : vector<2x16xf32>
    %312 = arith.divf %310, %311 : vector<2x16xf32>
    %313 = vector.extract_strided_slice %301 {offsets = [0, 16], sizes = [2, 16], strides = [1, 1]} : vector<2x48xf32> to vector<2x16xf32>
    %314 = vector.extract_strided_slice %304 {offsets = [0, 16], sizes = [2, 16], strides = [1, 1]} : vector<2x48xf32> to vector<2x16xf32>
    %315 = arith.addf %313, %314 : vector<2x16xf32>
    %316 = arith.negf %315 : vector<2x16xf32>
    %317 = math.exp %316 : vector<2x16xf32>
    %cst_80 = arith.constant 1.000000e+00 : f32
    %318 = vector.broadcast %cst_80 : f32 to vector<2x16xf32>
    %319 = arith.addf %318, %317 : vector<2x16xf32>
    %320 = arith.divf %318, %319 : vector<2x16xf32>
    %321 = vector.extract_strided_slice %301 {offsets = [0, 32], sizes = [2, 16], strides = [1, 1]} : vector<2x48xf32> to vector<2x16xf32>
    %322 = vector.extract_strided_slice %304 {offsets = [0, 32], sizes = [2, 16], strides = [1, 1]} : vector<2x48xf32> to vector<2x16xf32>
    %323 = arith.mulf %312, %322 : vector<2x16xf32>
    %324 = arith.addf %321, %323 : vector<2x16xf32>
    %325 = math.tanh %324 : vector<2x16xf32>
    %cst_81 = arith.constant 1.000000e+00 : f32
    %326 = vector.broadcast %cst_81 : f32 to vector<2x16xf32>
    %327 = arith.subf %326, %320 : vector<2x16xf32>
    %328 = arith.mulf %327, %325 : vector<2x16xf32>
    %329 = arith.mulf %320, %259 : vector<2x16xf32>
    %330 = arith.addf %328, %329 : vector<2x16xf32>
    %cst_82 = arith.constant dense<0.000000e+00> : vector<2x48xf32>
    %331 = tpu.matmul %330, %2, %cst_82 {dimension_numbers = #tpu.dot_dimension_numbers<[1], [0], [0], [1], [0, 0, 1, 1], [], []>} : vector<2x16xf32>, vector<16x48xf32>, vector<2x48xf32> -> vector<2x48xf32>
    %332 = vector.broadcast %6 : vector<1x48xf32> to vector<2x48xf32>
    %333 = arith.addf %331, %332 : vector<2x48xf32>
    %cst_83 = arith.constant dense<0.000000e+00> : vector<2x48xf32>
    %334 = tpu.matmul %291, %3, %cst_83 {dimension_numbers = #tpu.dot_dimension_numbers<[1], [0], [0], [1], [0, 0, 1, 1], [], []>} : vector<2x16xf32>, vector<16x48xf32>, vector<2x48xf32> -> vector<2x48xf32>
    %335 = vector.broadcast %7 : vector<1x48xf32> to vector<2x48xf32>
    %336 = arith.addf %334, %335 : vector<2x48xf32>
    %337 = vector.extract_strided_slice %333 {offsets = [0, 0], sizes = [2, 16], strides = [1, 1]} : vector<2x48xf32> to vector<2x16xf32>
    %338 = vector.extract_strided_slice %336 {offsets = [0, 0], sizes = [2, 16], strides = [1, 1]} : vector<2x48xf32> to vector<2x16xf32>
    %339 = arith.addf %337, %338 : vector<2x16xf32>
    %340 = arith.negf %339 : vector<2x16xf32>
    %341 = math.exp %340 : vector<2x16xf32>
    %cst_84 = arith.constant 1.000000e+00 : f32
    %342 = vector.broadcast %cst_84 : f32 to vector<2x16xf32>
    %343 = arith.addf %342, %341 : vector<2x16xf32>
    %344 = arith.divf %342, %343 : vector<2x16xf32>
    %345 = vector.extract_strided_slice %333 {offsets = [0, 16], sizes = [2, 16], strides = [1, 1]} : vector<2x48xf32> to vector<2x16xf32>
    %346 = vector.extract_strided_slice %336 {offsets = [0, 16], sizes = [2, 16], strides = [1, 1]} : vector<2x48xf32> to vector<2x16xf32>
    %347 = arith.addf %345, %346 : vector<2x16xf32>
    %348 = arith.negf %347 : vector<2x16xf32>
    %349 = math.exp %348 : vector<2x16xf32>
    %cst_85 = arith.constant 1.000000e+00 : f32
    %350 = vector.broadcast %cst_85 : f32 to vector<2x16xf32>
    %351 = arith.addf %350, %349 : vector<2x16xf32>
    %352 = arith.divf %350, %351 : vector<2x16xf32>
    %353 = vector.extract_strided_slice %333 {offsets = [0, 32], sizes = [2, 16], strides = [1, 1]} : vector<2x48xf32> to vector<2x16xf32>
    %354 = vector.extract_strided_slice %336 {offsets = [0, 32], sizes = [2, 16], strides = [1, 1]} : vector<2x48xf32> to vector<2x16xf32>
    %355 = arith.mulf %344, %354 : vector<2x16xf32>
    %356 = arith.addf %353, %355 : vector<2x16xf32>
    %357 = math.tanh %356 : vector<2x16xf32>
    %cst_86 = arith.constant 1.000000e+00 : f32
    %358 = vector.broadcast %cst_86 : f32 to vector<2x16xf32>
    %359 = arith.subf %358, %352 : vector<2x16xf32>
    %360 = arith.mulf %359, %357 : vector<2x16xf32>
    %361 = arith.mulf %352, %291 : vector<2x16xf32>
    %362 = arith.addf %360, %361 : vector<2x16xf32>
    %363 = arith.index_cast %c4_i32 : i32 to index
    %c0_87 = arith.constant 0 : index
    %c0_88 = arith.constant 0 : index
    %364 = vector.load %arg10[%363, %c0_87, %c0_88] : memref<5x2x16xf32, #tpu.memory_space<vmem>>, vector<1x2x16xf32>
    %365 = vector.shape_cast %364 : vector<1x2x16xf32> to vector<2x16xf32>
    %366 = vector.shape_cast %362 : vector<2x16xf32> to vector<1x2x16xf32>
    tpu.vector_store %arg10[%363, %c0_87, %c0_88], %366 {strides = array<i32>} : memref<5x2x16xf32, #tpu.memory_space<vmem>>, vector<1x2x16xf32>,
    %c5_i32 = arith.constant 5 : i32
    %c0_89 = arith.constant 0 : index
    %c0_90 = arith.constant 0 : index
    %c0_91 = arith.constant 0 : index
    %367 = vector.load %arg11[%c0_89, %c0_90, %c0_91] : memref<2x2x16xf32, #tpu.memory_space<vmem>>, vector<1x2x16xf32>
    %368 = vector.shape_cast %367 : vector<1x2x16xf32> to vector<2x16xf32>
    %369 = vector.shape_cast %330 : vector<2x16xf32> to vector<1x2x16xf32>
    tpu.vector_store %arg11[%c0_89, %c0_90, %c0_91], %369 {strides = array<i32>} : memref<2x2x16xf32, #tpu.memory_space<vmem>>, vector<1x2x16xf32>,
    %c1_92 = arith.constant 1 : index
    %c0_93 = arith.constant 0 : index
    %c0_94 = arith.constant 0 : index
    %370 = vector.load %arg11[%c1_92, %c0_93, %c0_94] : memref<2x2x16xf32, #tpu.memory_space<vmem>>, vector<1x2x16xf32>
    %371 = vector.shape_cast %370 : vector<1x2x16xf32> to vector<2x16xf32>
    %372 = vector.shape_cast %362 : vector<2x16xf32> to vector<1x2x16xf32>
    tpu.vector_store %arg11[%c1_92, %c0_93, %c0_94], %372 {strides = array<i32>} : memref<2x2x16xf32, #tpu.memory_space<vmem>>, vector<1x2x16xf32>,
    return
  }
}

module attributes {stable_mosaic.version = 11 : i64} {
  func.func @_recon_kernel(%arg0: memref<10x10xf32, #tpu.memory_space<vmem>>, %arg1: memref<10x16xf32, #tpu.memory_space<vmem>>, %arg2: memref<10x8xf32, #tpu.memory_space<vmem>>, %arg3: memref<16x128xf32, #tpu.memory_space<vmem>>, %arg4: memref<8x128xf32, #tpu.memory_space<vmem>>, %arg5: memref<1x128xf32, #tpu.memory_space<vmem>>, %arg6: memref<128x8xf32, #tpu.memory_space<vmem>>, %arg7: memref<1x8xf32, #tpu.memory_space<vmem>>, %arg8: memref<2x8x192xf32, #tpu.memory_space<vmem>>, %arg9: memref<2x1x192xf32, #tpu.memory_space<vmem>>, %arg10: memref<2x192x8xf32, #tpu.memory_space<vmem>>, %arg11: memref<2x1x8xf32, #tpu.memory_space<vmem>>, %arg12: memref<8x128xf32, #tpu.memory_space<vmem>>, %arg13: memref<1x128xf32, #tpu.memory_space<vmem>>, %arg14: memref<128x8xf32, #tpu.memory_space<vmem>>, %arg15: memref<1x8xf32, #tpu.memory_space<vmem>>, %arg16: memref<8x8xf32, #tpu.memory_space<vmem>>, %arg17: memref<8x8xf32, #tpu.memory_space<vmem>>, %arg18: memref<1x8xf32, #tpu.memory_space<vmem>>, %arg19: memref<2x10x8xf32, #tpu.memory_space<vmem>>) attributes {dimension_semantics = [], scalar_prefetch = 0 : i64, scratch_operands = 0 : i64, tpu.core_type = #tpu.core_type<tc>} {
    %c0 = arith.constant 0 : index
    %c0_0 = arith.constant 0 : index
    %0 = vector.load %arg0[%c0, %c0_0] : memref<10x10xf32, #tpu.memory_space<vmem>>, vector<10x10xf32>
    %1 = arith.truncf %0 : vector<10x10xf32> to vector<10x10xbf16>
    %c0_1 = arith.constant 0 : index
    %c0_2 = arith.constant 0 : index
    %2 = vector.load %arg1[%c0_1, %c0_2] : memref<10x16xf32, #tpu.memory_space<vmem>>, vector<10x16xf32>
    %c0_3 = arith.constant 0 : index
    %c0_4 = arith.constant 0 : index
    %3 = vector.load %arg3[%c0_3, %c0_4] : memref<16x128xf32, #tpu.memory_space<vmem>>, vector<16x128xf32>
    %4 = arith.truncf %2 : vector<10x16xf32> to vector<10x16xbf16>
    %5 = arith.truncf %3 : vector<16x128xf32> to vector<16x128xbf16>
    %cst = arith.constant dense<0.000000e+00> : vector<10x128xf32>
    %6 = tpu.matmul %4, %5, %cst {dimension_numbers = #tpu.dot_dimension_numbers<[1], [0], [0], [1], [0, 0, 1, 1], [], []>} : vector<10x16xbf16>, vector<16x128xbf16>, vector<10x128xf32> -> vector<10x128xf32>
    %c0_5 = arith.constant 0 : index
    %c0_6 = arith.constant 0 : index
    %7 = vector.load %arg2[%c0_5, %c0_6] : memref<10x8xf32, #tpu.memory_space<vmem>>, vector<10x8xf32>
    %c0_7 = arith.constant 0 : index
    %c0_8 = arith.constant 0 : index
    %8 = vector.load %arg4[%c0_7, %c0_8] : memref<8x128xf32, #tpu.memory_space<vmem>>, vector<8x128xf32>
    %9 = arith.truncf %7 : vector<10x8xf32> to vector<10x8xbf16>
    %10 = arith.truncf %8 : vector<8x128xf32> to vector<8x128xbf16>
    %cst_9 = arith.constant dense<0.000000e+00> : vector<10x128xf32>
    %11 = tpu.matmul %9, %10, %cst_9 {dimension_numbers = #tpu.dot_dimension_numbers<[1], [0], [0], [1], [0, 0, 1, 1], [], []>} : vector<10x8xbf16>, vector<8x128xbf16>, vector<10x128xf32> -> vector<10x128xf32>
    %12 = arith.addf %6, %11 : vector<10x128xf32>
    %c0_10 = arith.constant 0 : index
    %c0_11 = arith.constant 0 : index
    %13 = vector.load %arg5[%c0_10, %c0_11] : memref<1x128xf32, #tpu.memory_space<vmem>>, vector<1x128xf32>
    %14 = vector.broadcast %13 : vector<1x128xf32> to vector<10x128xf32>
    %15 = arith.addf %12, %14 : vector<10x128xf32>
    %cst_12 = arith.constant 0.000000e+00 : f32
    %16 = vector.broadcast %cst_12 : f32 to vector<10x128xf32>
    %17 = arith.maximumf %15, %16 : vector<10x128xf32>
    %c0_13 = arith.constant 0 : index
    %c0_14 = arith.constant 0 : index
    %18 = vector.load %arg6[%c0_13, %c0_14] : memref<128x8xf32, #tpu.memory_space<vmem>>, vector<128x8xf32>
    %19 = arith.truncf %17 : vector<10x128xf32> to vector<10x128xbf16>
    %20 = arith.truncf %18 : vector<128x8xf32> to vector<128x8xbf16>
    %cst_15 = arith.constant dense<0.000000e+00> : vector<10x8xf32>
    %21 = tpu.matmul %19, %20, %cst_15 {dimension_numbers = #tpu.dot_dimension_numbers<[1], [0], [0], [1], [0, 0, 1, 1], [], []>} : vector<10x128xbf16>, vector<128x8xbf16>, vector<10x8xf32> -> vector<10x8xf32>
    %c0_16 = arith.constant 0 : index
    %c0_17 = arith.constant 0 : index
    %22 = vector.load %arg7[%c0_16, %c0_17] : memref<1x8xf32, #tpu.memory_space<vmem>>, vector<1x8xf32>
    %23 = vector.broadcast %22 : vector<1x8xf32> to vector<10x8xf32>
    %24 = arith.addf %21, %23 : vector<10x8xf32>
    %c0_18 = arith.constant 0 : index
    %c0_19 = arith.constant 0 : index
    %25 = vector.load %arg12[%c0_18, %c0_19] : memref<8x128xf32, #tpu.memory_space<vmem>>, vector<8x128xf32>
    %26 = arith.truncf %24 : vector<10x8xf32> to vector<10x8xbf16>
    %27 = arith.truncf %25 : vector<8x128xf32> to vector<8x128xbf16>
    %cst_20 = arith.constant dense<0.000000e+00> : vector<10x128xf32>
    %28 = tpu.matmul %26, %27, %cst_20 {dimension_numbers = #tpu.dot_dimension_numbers<[1], [0], [0], [1], [0, 0, 1, 1], [], []>} : vector<10x8xbf16>, vector<8x128xbf16>, vector<10x128xf32> -> vector<10x128xf32>
    %c0_21 = arith.constant 0 : index
    %c0_22 = arith.constant 0 : index
    %29 = vector.load %arg13[%c0_21, %c0_22] : memref<1x128xf32, #tpu.memory_space<vmem>>, vector<1x128xf32>
    %30 = vector.broadcast %29 : vector<1x128xf32> to vector<10x128xf32>
    %31 = arith.addf %28, %30 : vector<10x128xf32>
    %cst_23 = arith.constant 0.000000e+00 : f32
    %32 = vector.broadcast %cst_23 : f32 to vector<10x128xf32>
    %33 = arith.maximumf %31, %32 : vector<10x128xf32>
    %c0_24 = arith.constant 0 : index
    %c0_25 = arith.constant 0 : index
    %34 = vector.load %arg14[%c0_24, %c0_25] : memref<128x8xf32, #tpu.memory_space<vmem>>, vector<128x8xf32>
    %35 = arith.truncf %33 : vector<10x128xf32> to vector<10x128xbf16>
    %36 = arith.truncf %34 : vector<128x8xf32> to vector<128x8xbf16>
    %cst_26 = arith.constant dense<0.000000e+00> : vector<10x8xf32>
    %37 = tpu.matmul %35, %36, %cst_26 {dimension_numbers = #tpu.dot_dimension_numbers<[1], [0], [0], [1], [0, 0, 1, 1], [], []>} : vector<10x128xbf16>, vector<128x8xbf16>, vector<10x8xf32> -> vector<10x8xf32>
    %c0_27 = arith.constant 0 : index
    %c0_28 = arith.constant 0 : index
    %38 = vector.load %arg15[%c0_27, %c0_28] : memref<1x8xf32, #tpu.memory_space<vmem>>, vector<1x8xf32>
    %39 = vector.broadcast %38 : vector<1x8xf32> to vector<10x8xf32>
    %40 = arith.addf %37, %39 : vector<10x8xf32>
    %c0_29 = arith.constant 0 : index
    %c0_30 = arith.constant 0 : index
    %41 = vector.load %arg17[%c0_29, %c0_30] : memref<8x8xf32, #tpu.memory_space<vmem>>, vector<8x8xf32>
    %42 = arith.truncf %40 : vector<10x8xf32> to vector<10x8xbf16>
    %43 = arith.truncf %41 : vector<8x8xf32> to vector<8x8xbf16>
    %cst_31 = arith.constant dense<0.000000e+00> : vector<10x8xf32>
    %44 = tpu.matmul %42, %43, %cst_31 {dimension_numbers = #tpu.dot_dimension_numbers<[1], [0], [0], [1], [0, 0, 1, 1], [], []>} : vector<10x8xbf16>, vector<8x8xbf16>, vector<10x8xf32> -> vector<10x8xf32>
    %45 = arith.truncf %24 : vector<10x8xf32> to vector<10x8xbf16>
    %cst_32 = arith.constant dense<0.000000e+00> : vector<10x8xf32>
    %46 = tpu.matmul %1, %45, %cst_32 {dimension_numbers = #tpu.dot_dimension_numbers<[1], [0], [0], [1], [0, 0, 1, 1], [], []>} : vector<10x10xbf16>, vector<10x8xbf16>, vector<10x8xf32> -> vector<10x8xf32>
    %c0_33 = arith.constant 0 : index
    %c0_34 = arith.constant 0 : index
    %47 = vector.load %arg18[%c0_33, %c0_34] : memref<1x8xf32, #tpu.memory_space<vmem>>, vector<1x8xf32>
    %c0_35 = arith.constant 0 : index
    %c0_36 = arith.constant 0 : index
    %c0_37 = arith.constant 0 : index
    %48 = vector.load %arg8[%c0_35, %c0_36, %c0_37] : memref<2x8x192xf32, #tpu.memory_space<vmem>>, vector<1x8x192xf32>
    %49 = vector.shape_cast %48 : vector<1x8x192xf32> to vector<8x192xf32>
    %50 = arith.truncf %46 : vector<10x8xf32> to vector<10x8xbf16>
    %51 = arith.truncf %49 : vector<8x192xf32> to vector<8x192xbf16>
    %cst_38 = arith.constant dense<0.000000e+00> : vector<10x192xf32>
    %52 = tpu.matmul %50, %51, %cst_38 {dimension_numbers = #tpu.dot_dimension_numbers<[1], [0], [0], [1], [0, 0, 1, 1], [], []>} : vector<10x8xbf16>, vector<8x192xbf16>, vector<10x192xf32> -> vector<10x192xf32>
    %c0_39 = arith.constant 0 : index
    %c0_40 = arith.constant 0 : index
    %c0_41 = arith.constant 0 : index
    %53 = vector.load %arg9[%c0_39, %c0_40, %c0_41] : memref<2x1x192xf32, #tpu.memory_space<vmem>>, vector<1x1x192xf32>
    %54 = vector.shape_cast %53 : vector<1x1x192xf32> to vector<1x192xf32>
    %55 = vector.broadcast %54 : vector<1x192xf32> to vector<10x192xf32>
    %56 = arith.addf %52, %55 : vector<10x192xf32>
    %c0_42 = arith.constant 0 : index
    %c0_43 = arith.constant 0 : index
    %c0_44 = arith.constant 0 : index
    %57 = vector.load %arg10[%c0_42, %c0_43, %c0_44] : memref<2x192x8xf32, #tpu.memory_space<vmem>>, vector<1x192x8xf32>
    %58 = vector.shape_cast %57 : vector<1x192x8xf32> to vector<192x8xf32>
    %59 = arith.truncf %56 : vector<10x192xf32> to vector<10x192xbf16>
    %60 = arith.truncf %58 : vector<192x8xf32> to vector<192x8xbf16>
    %cst_45 = arith.constant dense<0.000000e+00> : vector<10x8xf32>
    %61 = tpu.matmul %59, %60, %cst_45 {dimension_numbers = #tpu.dot_dimension_numbers<[1], [0], [0], [1], [0, 0, 1, 1], [], []>} : vector<10x192xbf16>, vector<192x8xbf16>, vector<10x8xf32> -> vector<10x8xf32>
    %62 = arith.truncf %61 : vector<10x8xf32> to vector<10x8xbf16>
    %cst_46 = arith.constant dense<0.000000e+00> : vector<10x8xf32>
    %63 = tpu.matmul %1, %62, %cst_46 {dimension_numbers = #tpu.dot_dimension_numbers<[1], [0], [0], [1], [0, 0, 1, 1], [], []>} : vector<10x10xbf16>, vector<10x8xbf16>, vector<10x8xf32> -> vector<10x8xf32>
    %c0_47 = arith.constant 0 : index
    %c0_48 = arith.constant 0 : index
    %c0_49 = arith.constant 0 : index
    %64 = vector.load %arg11[%c0_47, %c0_48, %c0_49] : memref<2x1x8xf32, #tpu.memory_space<vmem>>, vector<1x1x8xf32>
    %65 = vector.shape_cast %64 : vector<1x1x8xf32> to vector<1x8xf32>
    %66 = vector.broadcast %65 : vector<1x8xf32> to vector<10x8xf32>
    %67 = arith.addf %63, %66 : vector<10x8xf32>
    %c0_50 = arith.constant 0 : index
    %c0_51 = arith.constant 0 : index
    %68 = vector.load %arg16[%c0_50, %c0_51] : memref<8x8xf32, #tpu.memory_space<vmem>>, vector<8x8xf32>
    %69 = arith.truncf %67 : vector<10x8xf32> to vector<10x8xbf16>
    %70 = arith.truncf %68 : vector<8x8xf32> to vector<8x8xbf16>
    %cst_52 = arith.constant dense<0.000000e+00> : vector<10x8xf32>
    %71 = tpu.matmul %69, %70, %cst_52 {dimension_numbers = #tpu.dot_dimension_numbers<[1], [0], [0], [1], [0, 0, 1, 1], [], []>} : vector<10x8xbf16>, vector<8x8xbf16>, vector<10x8xf32> -> vector<10x8xf32>
    %72 = arith.addf %71, %44 : vector<10x8xf32>
    %73 = vector.broadcast %47 : vector<1x8xf32> to vector<10x8xf32>
    %74 = arith.addf %72, %73 : vector<10x8xf32>
    %c0_53 = arith.constant 0 : index
    %c0_54 = arith.constant 0 : index
    %c0_55 = arith.constant 0 : index
    %75 = vector.load %arg19[%c0_53, %c0_54, %c0_55] : memref<2x10x8xf32, #tpu.memory_space<vmem>>, vector<1x10x8xf32>
    %76 = vector.shape_cast %75 : vector<1x10x8xf32> to vector<10x8xf32>
    %77 = vector.shape_cast %74 : vector<10x8xf32> to vector<1x10x8xf32>
    tpu.vector_store %arg19[%c0_53, %c0_54, %c0_55], %77 {strides = array<i32>} : memref<2x10x8xf32, #tpu.memory_space<vmem>>, vector<1x10x8xf32>,
    %c1 = arith.constant 1 : index
    %c0_56 = arith.constant 0 : index
    %c0_57 = arith.constant 0 : index
    %78 = vector.load %arg8[%c1, %c0_56, %c0_57] : memref<2x8x192xf32, #tpu.memory_space<vmem>>, vector<1x8x192xf32>
    %79 = vector.shape_cast %78 : vector<1x8x192xf32> to vector<8x192xf32>
    %80 = arith.truncf %46 : vector<10x8xf32> to vector<10x8xbf16>
    %81 = arith.truncf %79 : vector<8x192xf32> to vector<8x192xbf16>
    %cst_58 = arith.constant dense<0.000000e+00> : vector<10x192xf32>
    %82 = tpu.matmul %80, %81, %cst_58 {dimension_numbers = #tpu.dot_dimension_numbers<[1], [0], [0], [1], [0, 0, 1, 1], [], []>} : vector<10x8xbf16>, vector<8x192xbf16>, vector<10x192xf32> -> vector<10x192xf32>
    %c1_59 = arith.constant 1 : index
    %c0_60 = arith.constant 0 : index
    %c0_61 = arith.constant 0 : index
    %83 = vector.load %arg9[%c1_59, %c0_60, %c0_61] : memref<2x1x192xf32, #tpu.memory_space<vmem>>, vector<1x1x192xf32>
    %84 = vector.shape_cast %83 : vector<1x1x192xf32> to vector<1x192xf32>
    %85 = vector.broadcast %84 : vector<1x192xf32> to vector<10x192xf32>
    %86 = arith.addf %82, %85 : vector<10x192xf32>
    %c1_62 = arith.constant 1 : index
    %c0_63 = arith.constant 0 : index
    %c0_64 = arith.constant 0 : index
    %87 = vector.load %arg10[%c1_62, %c0_63, %c0_64] : memref<2x192x8xf32, #tpu.memory_space<vmem>>, vector<1x192x8xf32>
    %88 = vector.shape_cast %87 : vector<1x192x8xf32> to vector<192x8xf32>
    %89 = arith.truncf %86 : vector<10x192xf32> to vector<10x192xbf16>
    %90 = arith.truncf %88 : vector<192x8xf32> to vector<192x8xbf16>
    %cst_65 = arith.constant dense<0.000000e+00> : vector<10x8xf32>
    %91 = tpu.matmul %89, %90, %cst_65 {dimension_numbers = #tpu.dot_dimension_numbers<[1], [0], [0], [1], [0, 0, 1, 1], [], []>} : vector<10x192xbf16>, vector<192x8xbf16>, vector<10x8xf32> -> vector<10x8xf32>
    %92 = arith.truncf %91 : vector<10x8xf32> to vector<10x8xbf16>
    %cst_66 = arith.constant dense<0.000000e+00> : vector<10x8xf32>
    %93 = tpu.matmul %1, %92, %cst_66 {dimension_numbers = #tpu.dot_dimension_numbers<[1], [0], [0], [1], [0, 0, 1, 1], [], []>} : vector<10x10xbf16>, vector<10x8xbf16>, vector<10x8xf32> -> vector<10x8xf32>
    %c1_67 = arith.constant 1 : index
    %c0_68 = arith.constant 0 : index
    %c0_69 = arith.constant 0 : index
    %94 = vector.load %arg11[%c1_67, %c0_68, %c0_69] : memref<2x1x8xf32, #tpu.memory_space<vmem>>, vector<1x1x8xf32>
    %95 = vector.shape_cast %94 : vector<1x1x8xf32> to vector<1x8xf32>
    %96 = vector.broadcast %95 : vector<1x8xf32> to vector<10x8xf32>
    %97 = arith.addf %93, %96 : vector<10x8xf32>
    %c0_70 = arith.constant 0 : index
    %c0_71 = arith.constant 0 : index
    %98 = vector.load %arg16[%c0_70, %c0_71] : memref<8x8xf32, #tpu.memory_space<vmem>>, vector<8x8xf32>
    %99 = arith.truncf %97 : vector<10x8xf32> to vector<10x8xbf16>
    %100 = arith.truncf %98 : vector<8x8xf32> to vector<8x8xbf16>
    %cst_72 = arith.constant dense<0.000000e+00> : vector<10x8xf32>
    %101 = tpu.matmul %99, %100, %cst_72 {dimension_numbers = #tpu.dot_dimension_numbers<[1], [0], [0], [1], [0, 0, 1, 1], [], []>} : vector<10x8xbf16>, vector<8x8xbf16>, vector<10x8xf32> -> vector<10x8xf32>
    %102 = arith.addf %101, %44 : vector<10x8xf32>
    %103 = vector.broadcast %47 : vector<1x8xf32> to vector<10x8xf32>
    %104 = arith.addf %102, %103 : vector<10x8xf32>
    %c1_73 = arith.constant 1 : index
    %c0_74 = arith.constant 0 : index
    %c0_75 = arith.constant 0 : index
    %105 = vector.load %arg19[%c1_73, %c0_74, %c0_75] : memref<2x10x8xf32, #tpu.memory_space<vmem>>, vector<1x10x8xf32>
    %106 = vector.shape_cast %105 : vector<1x10x8xf32> to vector<10x8xf32>
    %107 = vector.shape_cast %104 : vector<10x8xf32> to vector<1x10x8xf32>
    tpu.vector_store %arg19[%c1_73, %c0_74, %c0_75], %107 {strides = array<i32>} : memref<2x10x8xf32, #tpu.memory_space<vmem>>, vector<1x10x8xf32>,
    return
  }
}

module attributes {stable_mosaic.version = 11 : i64} {
  func.func @_head_kernel(%arg0: memref<2x80xf32, #tpu.memory_space<vmem>>, %arg1: memref<80x256xf32, #tpu.memory_space<vmem>>, %arg2: memref<1x256xf32, #tpu.memory_space<vmem>>, %arg3: memref<256x64xf32, #tpu.memory_space<vmem>>, %arg4: memref<1x64xf32, #tpu.memory_space<vmem>>, %arg5: memref<64x2xf32, #tpu.memory_space<vmem>>, %arg6: memref<1x2xf32, #tpu.memory_space<vmem>>, %arg7: memref<2x10x8xf32, #tpu.memory_space<vmem>>, %arg8: memref<1x8xf32, #tpu.memory_space<vmem>>, %arg9: memref<10x2xf32, #tpu.memory_space<vmem>>, %arg10: memref<1x2xf32, #tpu.memory_space<vmem>>, %arg11: memref<1xf32, #tpu.memory_space<smem>>, %arg12: memref<2xf32, #tpu.memory_space<smem>>, %arg13: memref<2x2xf32, #tpu.memory_space<vmem>>) attributes {dimension_semantics = [], scalar_prefetch = 0 : i64, scratch_operands = 0 : i64, tpu.core_type = #tpu.core_type<tc>} {
    %c0 = arith.constant 0 : index
    %c0_0 = arith.constant 0 : index
    %0 = vector.load %arg0[%c0, %c0_0] : memref<2x80xf32, #tpu.memory_space<vmem>>, vector<2x80xf32>
    %c0_1 = arith.constant 0 : index
    %c0_2 = arith.constant 0 : index
    %1 = vector.load %arg1[%c0_1, %c0_2] : memref<80x256xf32, #tpu.memory_space<vmem>>, vector<80x256xf32>
    %2 = arith.truncf %0 : vector<2x80xf32> to vector<2x80xbf16>
    %3 = arith.truncf %1 : vector<80x256xf32> to vector<80x256xbf16>
    %cst = arith.constant dense<0.000000e+00> : vector<2x256xf32>
    %4 = tpu.matmul %2, %3, %cst {dimension_numbers = #tpu.dot_dimension_numbers<[1], [0], [0], [1], [0, 0, 1, 1], [], []>} : vector<2x80xbf16>, vector<80x256xbf16>, vector<2x256xf32> -> vector<2x256xf32>
    %c0_3 = arith.constant 0 : index
    %c0_4 = arith.constant 0 : index
    %5 = vector.load %arg2[%c0_3, %c0_4] : memref<1x256xf32, #tpu.memory_space<vmem>>, vector<1x256xf32>
    %6 = vector.broadcast %5 : vector<1x256xf32> to vector<2x256xf32>
    %7 = arith.addf %4, %6 : vector<2x256xf32>
    %cst_5 = arith.constant 0.000000e+00 : f32
    %8 = vector.broadcast %cst_5 : f32 to vector<2x256xf32>
    %9 = arith.maximumf %7, %8 : vector<2x256xf32>
    %c0_6 = arith.constant 0 : index
    %c0_7 = arith.constant 0 : index
    %10 = vector.load %arg3[%c0_6, %c0_7] : memref<256x64xf32, #tpu.memory_space<vmem>>, vector<256x64xf32>
    %11 = arith.truncf %9 : vector<2x256xf32> to vector<2x256xbf16>
    %12 = arith.truncf %10 : vector<256x64xf32> to vector<256x64xbf16>
    %cst_8 = arith.constant dense<0.000000e+00> : vector<2x64xf32>
    %13 = tpu.matmul %11, %12, %cst_8 {dimension_numbers = #tpu.dot_dimension_numbers<[1], [0], [0], [1], [0, 0, 1, 1], [], []>} : vector<2x256xbf16>, vector<256x64xbf16>, vector<2x64xf32> -> vector<2x64xf32>
    %c0_9 = arith.constant 0 : index
    %c0_10 = arith.constant 0 : index
    %14 = vector.load %arg4[%c0_9, %c0_10] : memref<1x64xf32, #tpu.memory_space<vmem>>, vector<1x64xf32>
    %15 = vector.broadcast %14 : vector<1x64xf32> to vector<2x64xf32>
    %16 = arith.addf %13, %15 : vector<2x64xf32>
    %cst_11 = arith.constant 0.000000e+00 : f32
    %17 = vector.broadcast %cst_11 : f32 to vector<2x64xf32>
    %18 = arith.maximumf %16, %17 : vector<2x64xf32>
    %c0_12 = arith.constant 0 : index
    %c0_13 = arith.constant 0 : index
    %19 = vector.load %arg5[%c0_12, %c0_13] : memref<64x2xf32, #tpu.memory_space<vmem>>, vector<64x2xf32>
    %cst_14 = arith.constant dense<0.000000e+00> : vector<2x2xf32>
    %20 = tpu.matmul %18, %19, %cst_14 {dimension_numbers = #tpu.dot_dimension_numbers<[1], [0], [0], [1], [0, 0, 1, 1], [], []>} : vector<2x64xf32>, vector<64x2xf32>, vector<2x2xf32> -> vector<2x2xf32>
    %c0_15 = arith.constant 0 : index
    %c0_16 = arith.constant 0 : index
    %21 = vector.load %arg6[%c0_15, %c0_16] : memref<1x2xf32, #tpu.memory_space<vmem>>, vector<1x2xf32>
    %22 = vector.broadcast %21 : vector<1x2xf32> to vector<2x2xf32>
    %23 = arith.addf %20, %22 : vector<2x2xf32>
    %c0_17 = arith.constant 0 : index
    %c0_18 = arith.constant 0 : index
    %c0_19 = arith.constant 0 : index
    %24 = vector.load %arg7[%c0_17, %c0_18, %c0_19] : memref<2x10x8xf32, #tpu.memory_space<vmem>>, vector<2x10x8xf32>
    %c0_20 = arith.constant 0 : index
    %c0_21 = arith.constant 0 : index
    %25 = vector.load %arg8[%c0_20, %c0_21] : memref<1x8xf32, #tpu.memory_space<vmem>>, vector<1x8xf32>
    %26 = vector.shape_cast %25 : vector<1x8xf32> to vector<1x1x8xf32>
    %27 = vector.broadcast %26 : vector<1x1x8xf32> to vector<2x10x8xf32>
    %28 = arith.mulf %24, %27 : vector<2x10x8xf32>
    %cst_22 = arith.constant dense<0.000000e+00> : vector<2x10xf32>
    %29 = vector.multi_reduction <add>, %28, %cst_22 [2] : vector<2x10x8xf32> to vector<2x10xf32>
    %c0_23 = arith.constant 0 : index
    %30 = memref.load %arg11[%c0_23] : memref<1xf32, #tpu.memory_space<smem>>
    %31 = vector.broadcast %30 : f32 to vector<2x10xf32>
    %32 = arith.addf %29, %31 : vector<2x10xf32>
    %c0_24 = arith.constant 0 : index
    %c0_25 = arith.constant 0 : index
    %33 = vector.load %arg9[%c0_24, %c0_25] : memref<10x2xf32, #tpu.memory_space<vmem>>, vector<10x2xf32>
    %cst_26 = arith.constant dense<0.000000e+00> : vector<2x2xf32>
    %34 = tpu.matmul %32, %33, %cst_26 {dimension_numbers = #tpu.dot_dimension_numbers<[1], [0], [0], [1], [0, 0, 1, 1], [], []>} : vector<2x10xf32>, vector<10x2xf32>, vector<2x2xf32> -> vector<2x2xf32>
    %c0_27 = arith.constant 0 : index
    %c0_28 = arith.constant 0 : index
    %35 = vector.load %arg10[%c0_27, %c0_28] : memref<1x2xf32, #tpu.memory_space<vmem>>, vector<1x2xf32>
    %36 = vector.broadcast %35 : vector<1x2xf32> to vector<2x2xf32>
    %37 = arith.addf %34, %36 : vector<2x2xf32>
    %c0_29 = arith.constant 0 : index
    %38 = memref.load %arg12[%c0_29] : memref<2xf32, #tpu.memory_space<smem>>
    %39 = vector.broadcast %38 : f32 to vector<2x2xf32>
    %40 = arith.mulf %23, %39 : vector<2x2xf32>
    %c1 = arith.constant 1 : index
    %41 = memref.load %arg12[%c1] : memref<2xf32, #tpu.memory_space<smem>>
    %42 = vector.broadcast %41 : f32 to vector<2x2xf32>
    %43 = arith.mulf %37, %42 : vector<2x2xf32>
    %44 = arith.addf %40, %43 : vector<2x2xf32>
    %45 = arith.negf %44 : vector<2x2xf32>
    %46 = math.exp %45 : vector<2x2xf32>
    %cst_30 = arith.constant 1.000000e+00 : f32
    %47 = vector.broadcast %cst_30 : f32 to vector<2x2xf32>
    %48 = arith.addf %47, %46 : vector<2x2xf32>
    %49 = arith.divf %47, %48 : vector<2x2xf32>
    %c0_31 = arith.constant 0 : index
    %c0_32 = arith.constant 0 : index
    %50 = vector.load %arg13[%c0_31, %c0_32] : memref<2x2xf32, #tpu.memory_space<vmem>>, vector<2x2xf32>
    tpu.vector_store %arg13[%c0_31, %c0_32], %49 {strides = array<i32>} : memref<2x2xf32, #tpu.memory_space<vmem>>, vector<2x2xf32>,
    return
  }
}

</mosaic_0001>

<llo_original>
// kernel: gnn_forward.4
$region0: #{gnn_forward.4}
  #allocation0 [shape = 'u32[]', space=smem, size = 0x4, offset = 0x4, fixed_abs, tag = 'smem constant byte address 0x4 - core index']
  #allocation1 [shape = 'u32[144,128]{1,0:T(1,128)}', space=vmem, size = 0x12000, scoped, tag = 'internal scratch']
  %s0 = inlined_call_operand.vmem [shape: f32[10,10], index: 0, kind: input, shape index: {}]
  %s1 = inlined_call_operand.vmem [shape: f32[2,10,8], index: 1, kind: input, shape index: {}]
  %s2 = inlined_call_operand.vmem [shape: f32[2,8,192], index: 2, kind: input, shape index: {}]
  %s3 = inlined_call_operand.vmem [shape: f32[2,1,192], index: 3, kind: input, shape index: {}]
  %s4 = inlined_call_operand.vmem [shape: f32[2,192,4], index: 4, kind: input, shape index: {}]
  %s5 = inlined_call_operand.vmem [shape: f32[2,1,4], index: 5, kind: input, shape index: {}]
  %s6 = inlined_call_operand.vmem [shape: f32[2,4,8], index: 6, kind: input, shape index: {}]
  %s7 = inlined_call_operand.vmem [shape: f32[2,4,8], index: 7, kind: input, shape index: {}]
  %s8 = inlined_call_operand.vmem [shape: f32[8,128], index: 8, kind: input, shape index: {}]
  %s9 = inlined_call_operand.vmem [shape: f32[1,128], index: 9, kind: input, shape index: {}]
  %s10 = inlined_call_operand.vmem [shape: f32[128,4], index: 10, kind: input, shape index: {}]
  %s11 = inlined_call_operand.vmem [shape: f32[1,4], index: 11, kind: input, shape index: {}]
  %s12 = inlined_call_operand.vmem [shape: f32[10,8], index: 12, kind: output, shape index: {}]
  %s13 = sld [smem:[#allocation0]]
  $region58: #{gnn_forward.4} parent=0
    _
  %s15 = ssub.s32 1, %s13
  %s16 = scalar_select 0, %s15, %s13
  // Predicated region
  $region2: #{gnn_forward.4} parent=0 // pred_check
    _
  $region3: #{gnn_forward.4} parent=0 // pred_check_branch
    %18 = sbr.rel (0) target = $region5
  $region4: #{gnn_forward.4} parent=0 // pred_region
    _
  $region5: #{gnn_forward.4} parent=0 // pred_fallthru
    _
  // Predicated region
  $region6: #{gnn_forward.4} parent=0 // pred_check
    _
  $region7: #{gnn_forward.4} parent=0 // pred_check_branch
    %20 = sbr.rel (0) target = $region9
  $region8: #{gnn_forward.4} parent=0 // pred_region
    _
  $region9: #{gnn_forward.4} parent=0 // pred_fallthru
    _
  // Predicated region
  $region10: #{gnn_forward.4} parent=0 // pred_check
    _
  $region11: #{gnn_forward.4} parent=0 // pred_check_branch
    %22 = sbr.rel (0) target = $region13
  $region12: #{gnn_forward.4} parent=0 // pred_region
    _
  $region13: #{gnn_forward.4} parent=0 // pred_fallthru
    _
  // Predicated region
  $region14: #{gnn_forward.4} parent=0 // pred_check
    _
  $region15: #{gnn_forward.4} parent=0 // pred_check_branch
    %24 = sbr.rel (0) target = $region17
  $region16: #{gnn_forward.4} parent=0 // pred_region
    _
  $region17: #{gnn_forward.4} parent=0 // pred_fallthru
    _
  // Predicated region
  $region18: #{gnn_forward.4} parent=0 // pred_check
    _
  $region19: #{gnn_forward.4} parent=0 // pred_check_branch
    %26 = sbr.rel (0) target = $region21
  $region20: #{gnn_forward.4} parent=0 // pred_region
    _
  $region21: #{gnn_forward.4} parent=0 // pred_fallthru
    _
  // Predicated region
  $region22: #{gnn_forward.4} parent=0 // pred_check
    _
  $region23: #{gnn_forward.4} parent=0 // pred_check_branch
    %28 = sbr.rel (0) target = $region25
  $region24: #{gnn_forward.4} parent=0 // pred_region
    _
  $region25: #{gnn_forward.4} parent=0 // pred_fallthru
    _
  // Predicated region
  $region26: #{gnn_forward.4} parent=0 // pred_check
    _
  $region27: #{gnn_forward.4} parent=0 // pred_check_branch
    %30 = sbr.rel (0) target = $region29
  $region28: #{gnn_forward.4} parent=0 // pred_region
    _
  $region29: #{gnn_forward.4} parent=0 // pred_fallthru
    _
  // Predicated region
  $region30: #{gnn_forward.4} parent=0 // pred_check
    _
  $region31: #{gnn_forward.4} parent=0 // pred_check_branch
    %32 = sbr.rel (0) target = $region33
  $region32: #{gnn_forward.4} parent=0 // pred_region
    _
  $region33: #{gnn_forward.4} parent=0 // pred_fallthru
    _
  // Predicated region
  $region34: #{gnn_forward.4} parent=0 // pred_check
    _
  $region35: #{gnn_forward.4} parent=0 // pred_check_branch
    %34 = sbr.rel (0) target = $region37
  $region36: #{gnn_forward.4} parent=0 // pred_region
    _
  $region37: #{gnn_forward.4} parent=0 // pred_fallthru
    _
  // Predicated region
  $region38: #{gnn_forward.4} parent=0 // pred_check
    _
  $region39: #{gnn_forward.4} parent=0 // pred_check_branch
    %36 = sbr.rel (0) target = $region41
  $region40: #{gnn_forward.4} parent=0 // pred_region
    _
  $region41: #{gnn_forward.4} parent=0 // pred_fallthru
    _
  // Predicated region
  $region42: #{gnn_forward.4} parent=0 // pred_check
    _
  $region43: #{gnn_forward.4} parent=0 // pred_check_branch
    %38 = sbr.rel (0) target = $region45
  $region44: #{gnn_forward.4} parent=0 // pred_region
    _
  $region45: #{gnn_forward.4} parent=0 // pred_fallthru
    _
  // Predicated region
  $region46: #{gnn_forward.4} parent=0 // pred_check
    _
  $region47: #{gnn_forward.4} parent=0 // pred_check_branch
    %40 = sbr.rel (0) target = $region49
  $region48: #{gnn_forward.4} parent=0 // pred_region
    _
  $region49: #{gnn_forward.4} parent=0 // pred_fallthru
    _
  %v42 = vld [vmem:[%s0] sm:$0xff]
  %v43 = vld [vmem:[%s0 + $0x8] sm:$0x3]
  %v44 = vpack.c.bf16 %v43, %v42
  %v45 = vld [vmem:[%s8] sm:$0xff]
  %v46 = vld [vmem:[%s9] sm:$0x1]
  %v47 = vld [vmem:[%s10] sm:$0xff]
  %v48 = vld [vmem:[%s10 + $0x8] sm:$0xff]
  %v49 = vld [vmem:[%s10 + $0x10] sm:$0xff]
  %v50 = vld [vmem:[%s10 + $0x18] sm:$0xff]
  %v51 = vld [vmem:[%s10 + $0x20] sm:$0xff]
  %v52 = vld [vmem:[%s10 + $0x28] sm:$0xff]
  %v53 = vld [vmem:[%s10 + $0x30] sm:$0xff]
  %v54 = vld [vmem:[%s10 + $0x38] sm:$0xff]
  %v55 = vld [vmem:[%s10 + $0x40] sm:$0xff]
  %v56 = vld [vmem:[%s10 + $0x48] sm:$0xff]
  %v57 = vld [vmem:[%s10 + $0x50] sm:$0xff]
  %v58 = vld [vmem:[%s10 + $0x58] sm:$0xff]
  %v59 = vld [vmem:[%s10 + $0x60] sm:$0xff]
  %v60 = vld [vmem:[%s10 + $0x68] sm:$0xff]
  %v61 = vld [vmem:[%s10 + $0x70] sm:$0xff]
  %v62 = vld [vmem:[%s10 + $0x78] sm:$0xff]
  %v63 = vld [vmem:[%s11] sm:$0x1]
  %v64 = vld [vmem:[%s1] sm:$0xff]
  %v65 = vld [vmem:[%s1 + $0x8] sm:$0x3]
  %v66 = vpack.c.bf16 %v65, %v64
  %vm67 = vcmask 80896
  %v69 = vsel %vm67, %v44, 0
  %vm71 = vcmask 1044480
  %v73 = vsel %vm71, %v66, 0
  %75 = vmatprep.subr.bf16.mxu0 0
  %76 = vmatpush1.bf16.msra.mxu0 0
  %77 = vmatprep.subr.bf16.mxu0 0
  %78 = vmatpush1.bf16.msra.mxu0 0
  %79 = vmatprep.subr.bf16.mxu0 0
  %80 = vmatpush1.bf16.msra.mxu0 0
  %81 = vmatprep.subr.bf16.mxu0 0
  %82 = vmatpush1.bf16.msra.mxu0 0
  %83 = vmatprep.subr.bf16.mxu0 0
  %84 = vmatpush1.bf16.msra.mxu0 0
  %85 = vmatprep.subr.bf16.mxu0 0
  %86 = vmatpush1.bf16.msra.mxu0 0
  %87 = vmatprep.subr.bf16.mxu0 0
  %88 = vmatpush1.bf16.msra.mxu0 0
  %89 = vmatprep.subr.bf16.mxu0 0
  %90 = vmatpush1.bf16.msra.mxu0 %v73
  %91 = vmatprep.subr.bf16.mxu0 0
  %92 = vmatpush2.bf16.msra.mxu0 0
  %93 = vmatprep.subr.bf16.mxu0 0
  %94 = vmatpush2.bf16.msra.mxu0 0
  %95 = vmatprep.subr.bf16.mxu0 0
  %96 = vmatpush2.bf16.msra.mxu0 0
  %97 = vmatprep.subr.bf16.mxu0 0
  %98 = vmatpush2.bf16.msra.mxu0 0
  %99 = vmatprep.subr.bf16.mxu0 0
  %100 = vmatpush2.bf16.msra.mxu0 0
  %101 = vmatprep.subr.bf16.mxu0 0
  %102 = vmatpush2.bf16.msra.mxu0 0
  %103 = vmatprep.subr.bf16.mxu0 0
  %104 = vmatpush2.bf16.msra.mxu0 0
  %105 = vmatprep.subr.bf16.mxu0 0
  %106 = vmatpush2.bf16.msra.mxu0 0
  %107 = vmatprep.mubr.bf16.mxu0 0
  %108 = vmatmul.mubr.bf16.gmra.mxu0 %v69
  %v109 = vpop.f32.mrf.mxu0
  %v110 = vadd.f32 0.0, %v109
  %v111 = vpop.f32.mrf.mxu0
  %v112 = vpop.f32.mrf.mxu0
  %v113 = vadd.f32 0.0, %v112
  %v114 = vpop.f32.mrf.mxu0
  %115 = vdwg.mxu0
  %v116 = vld [vmem:[%s2] sm:$0xff]
  %v117 = vld [vmem:[%s2 + $0x8] sm:$0xff]
  %v118 = vpack.c.bf16 %v113, %v110
  %v119 = vpack.c.bf16 %v116, %v116
  %v120 = vpack.c.bf16 %v117, %v117
  %v121 = vld [vmem:[%s3] sm:$0x3]
  %v123 = vlaneseq
  %v124 = vshrl.u32 %v123, 7
  %v125 = vsub.s32 0, %v124
  %v126 = vrot.slane %v121, %v125
  %v127 = vlaneseq
  %v128 = vshrl.u32 %v127, 7
  %v129 = vsub.s32 1, %v128
  %v130 = vrot.slane %v121, %v129
  %vm133 = vcmask 64512
  %v135 = vsel %vm133, %v118, 0
  %vm137 = vcmask 1043456
  %v139 = vsel %vm137, %v119, 0
  %v142 = vsel %vm137, %v120, 0
  %144 = vmatprep.subr.bf16.mxu0 0
  %145 = vmatpush1.bf16.msra.mxu0 0
  %146 = vmatprep.subr.bf16.mxu0 0
  %147 = vmatpush1.bf16.msra.mxu0 0
  %148 = vmatprep.subr.bf16.mxu0 0
  %149 = vmatpush1.bf16.msra.mxu0 0
  %150 = vmatprep.subr.bf16.mxu0 0
  %151 = vmatpush1.bf16.msra.mxu0 0
  %152 = vmatprep.subr.bf16.mxu0 0
  %153 = vmatpush1.bf16.msra.mxu0 0
  %154 = vmatprep.subr.bf16.mxu0 0
  %155 = vmatpush1.bf16.msra.mxu0 0
  %156 = vmatprep.subr.bf16.mxu0 0
  %157 = vmatpush1.bf16.msra.mxu0 0
  %158 = vmatprep.subr.bf16.mxu0 %v142
  %159 = vmatpush1.bf16.msra.mxu0 %v139
  %160 = vmatprep.subr.bf16.mxu0 0
  %161 = vmatpush2.bf16.msra.mxu0 0
  %162 = vmatprep.subr.bf16.mxu0 0
  %163 = vmatpush2.bf16.msra.mxu0 0
  %164 = vmatprep.subr.bf16.mxu0 0
  %165 = vmatpush2.bf16.msra.mxu0 0
  %166 = vmatprep.subr.bf16.mxu0 0
  %167 = vmatpush2.bf16.msra.mxu0 0
  %168 = vmatprep.subr.bf16.mxu0 0
  %169 = vmatpush2.bf16.msra.mxu0 0
  %170 = vmatprep.subr.bf16.mxu0 0
  %171 = vmatpush2.bf16.msra.mxu0 0
  %172 = vmatprep.subr.bf16.mxu0 0
  %173 = vmatpush2.bf16.msra.mxu0 0
  %174 = vmatprep.subr.bf16.mxu0 0
  %175 = vmatpush2.bf16.msra.mxu0 0
  %176 = vmatprep.mubr.bf16.mxu0 0
  %177 = vmatmul.mubr.bf16.gmra.mxu0 %v135
  %v178 = vpop.f32.mrf.mxu0
  %v179 = vadd.f32 %v126, %v178
  %v180 = vpop.f32.mrf.mxu0
  %v181 = vadd.f32 %v130, %v180
  %v182 = vpop.f32.mrf.mxu0
  %v183 = vadd.f32 %v126, %v182
  %v184 = vpop.f32.mrf.mxu0
  %v185 = vadd.f32 %v130, %v184
  %186 = vdwg.mxu0
  %v187 = vld [vmem:[%s4] sm:$0xff]
  %v188 = vld [vmem:[%s4 + $0x8] sm:$0xff]
  %v189 = vld [vmem:[%s4 + $0x10] sm:$0xff]
  %v190 = vld [vmem:[%s4 + $0x18] sm:$0xff]
  %v191 = vld [vmem:[%s4 + $0x20] sm:$0xff]
  %v192 = vld [vmem:[%s4 + $0x28] sm:$0xff]
  %v193 = vld [vmem:[%s4 + $0x30] sm:$0xff]
  %v194 = vld [vmem:[%s4 + $0x38] sm:$0xff]
  %v195 = vld [vmem:[%s4 + $0x40] sm:$0xff]
  %v196 = vld [vmem:[%s4 + $0x48] sm:$0xff]
  %v197 = vld [vmem:[%s4 + $0x50] sm:$0xff]
  %v198 = vld [vmem:[%s4 + $0x58] sm:$0xff]
  %v199 = vld [vmem:[%s4 + $0x60] sm:$0xff]
  %v200 = vld [vmem:[%s4 + $0x68] sm:$0xff]
  %v201 = vld [vmem:[%s4 + $0x70] sm:$0xff]
  %v202 = vld [vmem:[%s4 + $0x78] sm:$0xff]
  %v203 = vld [vmem:[%s4 + $0x80] sm:$0xff]
  %v204 = vld [vmem:[%s4 + $0x88] sm:$0xff]
  %v205 = vld [vmem:[%s4 + $0x90] sm:$0xff]
  %v206 = vld [vmem:[%s4 + $0x98] sm:$0xff]
  %v207 = vld [vmem:[%s4 + $0xa0] sm:$0xff]
  %v208 = vld [vmem:[%s4 + $0xa8] sm:$0xff]
  %v209 = vld [vmem:[%s4 + $0xb0] sm:$0xff]
  %v210 = vld [vmem:[%s4 + $0xb8] sm:$0xff]
  %v211 = vpack.c.bf16 %v183, %v179
  %v212 = vpack.c.bf16 %v185, %v181
  %v213 = vpack.c.bf16 %v188, %v187
  %v214 = vpack.c.bf16 %v190, %v189
  %v215 = vpack.c.bf16 %v192, %v191
  %v216 = vpack.c.bf16 %v194, %v193
  %v217 = vpack.c.bf16 %v196, %v195
  %v218 = vpack.c.bf16 %v198, %v197
  %v219 = vpack.c.bf16 %v200, %v199
  %v220 = vpack.c.bf16 %v202, %v201
  %v221 = vpack.c.bf16 %v204, %v203
  %v222 = vpack.c.bf16 %v206, %v205
  %v223 = vpack.c.bf16 %v208, %v207
  %v224 = vpack.c.bf16 %v210, %v209
  %vm225 = vcmask 523264
  %v227 = vsel %vm225, %v212, 0
  %229 = vmatprep.subr.bf16.mxu0 0
  %230 = vmatpush1.bf16.msra.mxu0 %v220
  %231 = vmatprep.subr.bf16.mxu0 0
  %232 = vmatpush1.bf16.msra.mxu0 %v219
  %233 = vmatprep.subr.bf16.mxu0 0
  %234 = vmatpush1.bf16.msra.mxu0 %v218
  %235 = vmatprep.subr.bf16.mxu0 0
  %236 = vmatpush1.bf16.msra.mxu0 %v217
  %237 = vmatprep.subr.bf16.mxu0 0
  %238 = vmatpush1.bf16.msra.mxu0 %v216
  %239 = vmatprep.subr.bf16.mxu0 0
  %240 = vmatpush1.bf16.msra.mxu0 %v215
  %241 = vmatprep.subr.bf16.mxu0 0
  %242 = vmatpush1.bf16.msra.mxu0 %v214
  %243 = vmatprep.subr.bf16.mxu0 0
  %244 = vmatpush1.bf16.msra.mxu0 %v213
  %245 = vmatprep.subr.bf16.mxu0 0
  %246 = vmatpush2.bf16.msra.mxu0 0
  %247 = vmatprep.subr.bf16.mxu0 0
  %248 = vmatpush2.bf16.msra.mxu0 0
  %249 = vmatprep.subr.bf16.mxu0 0
  %250 = vmatpush2.bf16.msra.mxu0 0
  %251 = vmatprep.subr.bf16.mxu0 0
  %252 = vmatpush2.bf16.msra.mxu0 0
  %253 = vmatprep.subr.bf16.mxu0 0
  %254 = vmatpush2.bf16.msra.mxu0 %v224
  %255 = vmatprep.subr.bf16.mxu0 0
  %256 = vmatpush2.bf16.msra.mxu0 %v223
  %257 = vmatprep.subr.bf16.mxu0 0
  %258 = vmatpush2.bf16.msra.mxu0 %v222
  %259 = vmatprep.subr.bf16.mxu0 0
  %260 = vmatpush2.bf16.msra.mxu0 %v221
  %261 = vmatprep.mubr.bf16.mxu0 %v227
  %262 = vmatmul.mubr.bf16.gmra.mxu0 %v211
  %v263 = vpop.f32.mrf.mxu0
  %v264 = vadd.f32 0.0, %v263
  %v265 = vpop.f32.mrf.mxu0
  %v266 = vpop.f32.mrf.mxu0
  %v267 = vadd.f32 0.0, %v266
  %v268 = vpop.f32.mrf.mxu0
  %269 = vdwg.mxu0
  %v270 = vpack.c.bf16 %v267, %v264
  %v271 = vld [vmem:[%s5] sm:$0x1]
  %v273 = vlaneseq
  %v274 = vshrl.u32 %v273, 7
  %v275 = vsub.s32 0, %v274
  %v276 = vrot.slane %v271, %v275
  %v279 = vsel %vm71, %v270, 0
  %281 = vmatprep.subr.bf16.mxu0 0
  %282 = vmatpush1.bf16.msra.mxu0 0
  %283 = vmatprep.subr.bf16.mxu0 0
  %284 = vmatpush1.bf16.msra.mxu0 0
  %285 = vmatprep.subr.bf16.mxu0 0
  %286 = vmatpush1.bf16.msra.mxu0 0
  %287 = vmatprep.subr.bf16.mxu0 0
  %288 = vmatpush1.bf16.msra.mxu0 0
  %289 = vmatprep.subr.bf16.mxu0 0
  %290 = vmatpush1.bf16.msra.mxu0 0
  %291 = vmatprep.subr.bf16.mxu0 0
  %292 = vmatpush1.bf16.msra.mxu0 0
  %293 = vmatprep.subr.bf16.mxu0 0
  %294 = vmatpush1.bf16.msra.mxu0 0
  %295 = vmatprep.subr.bf16.mxu0 0
  %296 = vmatpush1.bf16.msra.mxu0 %v279
  %297 = vmatprep.subr.bf16.mxu0 0
  %298 = vmatpush2.bf16.msra.mxu0 0
  %299 = vmatprep.subr.bf16.mxu0 0
  %300 = vmatpush2.bf16.msra.mxu0 0
  %301 = vmatprep.subr.bf16.mxu0 0
  %302 = vmatpush2.bf16.msra.mxu0 0
  %303 = vmatprep.subr.bf16.mxu0 0
  %304 = vmatpush2.bf16.msra.mxu0 0
  %305 = vmatprep.subr.bf16.mxu0 0
  %306 = vmatpush2.bf16.msra.mxu0 0
  %307 = vmatprep.subr.bf16.mxu0 0
  %308 = vmatpush2.bf16.msra.mxu0 0
  %309 = vmatprep.subr.bf16.mxu0 0
  %310 = vmatpush2.bf16.msra.mxu0 0
  %311 = vmatprep.subr.bf16.mxu0 0
  %312 = vmatpush2.bf16.msra.mxu0 0
  %313 = vmatprep.mubr.bf16.mxu0 0
  %314 = vmatmul.mubr.bf16.gmra.mxu0 %v69
  %v315 = vpop.f32.mrf.mxu0
  %v316 = vadd.f32 %v276, %v315
  %v317 = vpop.f32.mrf.mxu0
  %v318 = vpop.f32.mrf.mxu0
  %v319 = vadd.f32 %v276, %v318
  %v320 = vpop.f32.mrf.mxu0
  %321 = vdwg.mxu0
  %v322 = vpack.c.bf16 %v45, %v45
  %v324 = vlaneseq
  %v325 = vshrl.u32 %v324, 7
  %v326 = vsub.s32 0, %v325
  %v327 = vrot.slane %v46, %v326
  %v329 = vsel %vm133, %v66, 0
  %v332 = vsel %vm137, %v322, 0
  %334 = vmatprep.subr.bf16.mxu0 0
  %335 = vmatpush1.bf16.msra.mxu0 0
  %336 = vmatprep.subr.bf16.mxu0 0
  %337 = vmatpush1.bf16.msra.mxu0 0
  %338 = vmatprep.subr.bf16.mxu0 0
  %339 = vmatpush1.bf16.msra.mxu0 0
  %340 = vmatprep.subr.bf16.mxu0 0
  %341 = vmatpush1.bf16.msra.mxu0 0
  %342 = vmatprep.subr.bf16.mxu0 0
  %343 = vmatpush1.bf16.msra.mxu0 0
  %344 = vmatprep.subr.bf16.mxu0 0
  %345 = vmatpush1.bf16.msra.mxu0 0
  %346 = vmatprep.subr.bf16.mxu0 0
  %347 = vmatpush1.bf16.msra.mxu0 0
  %348 = vmatprep.subr.bf16.mxu0 0
  %349 = vmatpush1.bf16.msra.mxu0 %v332
  %350 = vmatprep.subr.bf16.mxu0 0
  %351 = vmatpush2.bf16.msra.mxu0 0
  %352 = vmatprep.subr.bf16.mxu0 0
  %353 = vmatpush2.bf16.msra.mxu0 0
  %354 = vmatprep.subr.bf16.mxu0 0
  %355 = vmatpush2.bf16.msra.mxu0 0
  %356 = vmatprep.subr.bf16.mxu0 0
  %357 = vmatpush2.bf16.msra.mxu0 0
  %358 = vmatprep.subr.bf16.mxu0 0
  %359 = vmatpush2.bf16.msra.mxu0 0
  %360 = vmatprep.subr.bf16.mxu0 0
  %361 = vmatpush2.bf16.msra.mxu0 0
  %362 = vmatprep.subr.bf16.mxu0 0
  %363 = vmatpush2.bf16.msra.mxu0 0
  %364 = vmatprep.subr.bf16.mxu0 0
  %365 = vmatpush2.bf16.msra.mxu0 0
  %366 = vmatprep.mubr.bf16.mxu0 0
  %367 = vmatmul.mubr.bf16.gmra.mxu0 %v329
  %v368 = vpop.f32.mrf.mxu0
  %v369 = vadd.f32 %v327, %v368
  %v370 = vpop.f32.mrf.mxu0
  %v371 = vpop.f32.mrf.mxu0
  %v372 = vadd.f32 %v327, %v371
  %v373 = vpop.f32.mrf.mxu0
  %374 = vdwg.mxu0
  %v375 = vmax.f32 %v369, 0.0
  %v376 = vmax.f32 %v372, 0.0
  %v377 = vpack.c.bf16 %v376, %v375
  %v378 = vpack.c.bf16 %v48, %v47
  %v379 = vpack.c.bf16 %v50, %v49
  %v380 = vpack.c.bf16 %v52, %v51
  %v381 = vpack.c.bf16 %v54, %v53
  %v382 = vpack.c.bf16 %v56, %v55
  %v383 = vpack.c.bf16 %v58, %v57
  %v384 = vpack.c.bf16 %v60, %v59
  %v385 = vpack.c.bf16 %v62, %v61
  %v387 = vlaneseq
  %v388 = vshrl.u32 %v387, 7
  %v389 = vsub.s32 0, %v388
  %v390 = vrot.slane %v63, %v389
  %392 = vmatprep.subr.bf16.mxu0 0
  %393 = vmatpush1.bf16.msra.mxu0 %v385
  %394 = vmatprep.subr.bf16.mxu0 0
  %395 = vmatpush1.bf16.msra.mxu0 %v384
  %396 = vmatprep.subr.bf16.mxu0 0
  %397 = vmatpush1.bf16.msra.mxu0 %v383
  %398 = vmatprep.subr.bf16.mxu0 0
  %399 = vmatpush1.bf16.msra.mxu0 %v382
  %400 = vmatprep.subr.bf16.mxu0 0
  %401 = vmatpush1.bf16.msra.mxu0 %v381
  %402 = vmatprep.subr.bf16.mxu0 0
  %403 = vmatpush1.bf16.msra.mxu0 %v380
  %404 = vmatprep.subr.bf16.mxu0 0
  %405 = vmatpush1.bf16.msra.mxu0 %v379
  %406 = vmatprep.subr.bf16.mxu0 0
  %407 = vmatpush1.bf16.msra.mxu0 %v378
  %408 = vmatprep.subr.bf16.mxu0 0
  %409 = vmatpush2.bf16.msra.mxu0 0
  %410 = vmatprep.subr.bf16.mxu0 0
  %411 = vmatpush2.bf16.msra.mxu0 0
  %412 = vmatprep.subr.bf16.mxu0 0
  %413 = vmatpush2.bf16.msra.mxu0 0
  %414 = vmatprep.subr.bf16.mxu0 0
  %415 = vmatpush2.bf16.msra.mxu0 0
  %416 = vmatprep.subr.bf16.mxu0 0
  %417 = vmatpush2.bf16.msra.mxu0 0
  %418 = vmatprep.subr.bf16.mxu0 0
  %419 = vmatpush2.bf16.msra.mxu0 0
  %420 = vmatprep.subr.bf16.mxu0 0
  %421 = vmatpush2.bf16.msra.mxu0 0
  %422 = vmatprep.subr.bf16.mxu0 0
  %423 = vmatpush2.bf16.msra.mxu0 0
  %424 = vmatprep.mubr.bf16.mxu0 0
  %425 = vmatmul.mubr.bf16.gmra.mxu0 %v377
  %v426 = vpop.f32.mrf.mxu0
  %v427 = vadd.f32 %v390, %v426
  %v428 = vpop.f32.mrf.mxu0
  %v429 = vpop.f32.mrf.mxu0
  %v430 = vadd.f32 %v390, %v429
  %v431 = vpop.f32.mrf.mxu0
  %432 = vdwg.mxu0
  %v433 = vld [vmem:[%s6] sm:$0xf]
  %v434 = vpack.c.bf16 %v319, %v316
  %v435 = vpack.c.bf16 %v433, %v433
  %v436 = vld [vmem:[%s7] sm:$0xf]
  %v437 = vpack.c.bf16 %v430, %v427
  %v438 = vpack.c.bf16 %v436, %v436
  %vm439 = vcmask 31744
  %v441 = vsel %vm439, %v437, 0
  %vm443 = vcmask 1041408
  %v445 = vsel %vm443, %v438, 0
  %447 = vmatprep.subr.bf16.mxu0 0
  %448 = vmatpush1.bf16.msra.mxu0 0
  %449 = vmatprep.subr.bf16.mxu0 0
  %450 = vmatpush1.bf16.msra.mxu0 0
  %451 = vmatprep.subr.bf16.mxu0 0
  %452 = vmatpush1.bf16.msra.mxu0 0
  %453 = vmatprep.subr.bf16.mxu0 0
  %454 = vmatpush1.bf16.msra.mxu0 0
  %455 = vmatprep.subr.bf16.mxu0 0
  %456 = vmatpush1.bf16.msra.mxu0 0
  %457 = vmatprep.subr.bf16.mxu0 0
  %458 = vmatpush1.bf16.msra.mxu0 0
  %459 = vmatprep.subr.bf16.mxu0 0
  %460 = vmatpush1.bf16.msra.mxu0 0
  %461 = vmatprep.subr.bf16.mxu0 0
  %462 = vmatpush1.bf16.msra.mxu0 %v445
  %463 = vmatprep.subr.bf16.mxu0 0
  %464 = vmatpush2.bf16.msra.mxu0 0
  %465 = vmatprep.subr.bf16.mxu0 0
  %466 = vmatpush2.bf16.msra.mxu0 0
  %467 = vmatprep.subr.bf16.mxu0 0
  %468 = vmatpush2.bf16.msra.mxu0 0
  %469 = vmatprep.subr.bf16.mxu0 0
  %470 = vmatpush2.bf16.msra.mxu0 0
  %471 = vmatprep.subr.bf16.mxu0 0
  %472 = vmatpush2.bf16.msra.mxu0 0
  %473 = vmatprep.subr.bf16.mxu0 0
  %474 = vmatpush2.bf16.msra.mxu0 0
  %475 = vmatprep.subr.bf16.mxu0 0
  %476 = vmatpush2.bf16.msra.mxu0 0
  %477 = vmatprep.subr.bf16.mxu0 0
  %478 = vmatpush2.bf16.msra.mxu0 0
  %479 = vmatprep.mubr.bf16.mxu0 0
  %480 = vmatmul.mubr.bf16.gmra.mxu0 %v441
  %v481 = vpop.f32.mrf.mxu0
  %v482 = vadd.f32 0.0, %v481
  %v483 = vpop.f32.mrf.mxu0
  %v484 = vpop.f32.mrf.mxu0
  %v485 = vadd.f32 0.0, %v484
  %v486 = vpop.f32.mrf.mxu0
  %487 = vdwg.mxu0
  %v489 = vsel %vm439, %v434, 0
  %v492 = vsel %vm443, %v435, 0
  %494 = vmatprep.subr.bf16.mxu0 0
  %495 = vmatpush1.bf16.msra.mxu0 0
  %496 = vmatprep.subr.bf16.mxu0 0
  %497 = vmatpush1.bf16.msra.mxu0 0
  %498 = vmatprep.subr.bf16.mxu0 0
  %499 = vmatpush1.bf16.msra.mxu0 0
  %500 = vmatprep.subr.bf16.mxu0 0
  %501 = vmatpush1.bf16.msra.mxu0 0
  %502 = vmatprep.subr.bf16.mxu0 0
  %503 = vmatpush1.bf16.msra.mxu0 0
  %504 = vmatprep.subr.bf16.mxu0 0
  %505 = vmatpush1.bf16.msra.mxu0 0
  %506 = vmatprep.subr.bf16.mxu0 0
  %507 = vmatpush1.bf16.msra.mxu0 0
  %508 = vmatprep.subr.bf16.mxu0 0
  %509 = vmatpush1.bf16.msra.mxu0 %v492
  %510 = vmatprep.subr.bf16.mxu0 0
  %511 = vmatpush2.bf16.msra.mxu0 0
  %512 = vmatprep.subr.bf16.mxu0 0
  %513 = vmatpush2.bf16.msra.mxu0 0
  %514 = vmatprep.subr.bf16.mxu0 0
  %515 = vmatpush2.bf16.msra.mxu0 0
  %516 = vmatprep.subr.bf16.mxu0 0
  %517 = vmatpush2.bf16.msra.mxu0 0
  %518 = vmatprep.subr.bf16.mxu0 0
  %519 = vmatpush2.bf16.msra.mxu0 0
  %520 = vmatprep.subr.bf16.mxu0 0
  %521 = vmatpush2.bf16.msra.mxu0 0
  %522 = vmatprep.subr.bf16.mxu0 0
  %523 = vmatpush2.bf16.msra.mxu0 0
  %524 = vmatprep.subr.bf16.mxu0 0
  %525 = vmatpush2.bf16.msra.mxu0 0
  %526 = vmatprep.mubr.bf16.mxu0 0
  %527 = vmatmul.mubr.bf16.gmra.mxu0 %v489
  %v528 = vpop.f32.mrf.mxu0
  %v529 = vadd.f32 %v482, %v528
  %v530 = vpop.f32.mrf.mxu0
  %v531 = vpop.f32.mrf.mxu0
  %v532 = vadd.f32 %v485, %v531
  %v533 = vpop.f32.mrf.mxu0
  %534 = vdwg.mxu0
  %s535 = scalar_lea.vmem %s1, 16
  %v536 = vld [vmem:[%s535] sm:$0xff]
  %v537 = vld [vmem:[%s535 + $0x8] sm:$0x3]
  %v538 = vpack.c.bf16 %v537, %v536
  %v540 = vsel %vm71, %v538, 0
  %542 = vmatprep.subr.bf16.mxu0 0
  %543 = vmatpush1.bf16.msra.mxu0 0
  %544 = vmatprep.subr.bf16.mxu0 0
  %545 = vmatpush1.bf16.msra.mxu0 0
  %546 = vmatprep.subr.bf16.mxu0 0
  %547 = vmatpush1.bf16.msra.mxu0 0
  %548 = vmatprep.subr.bf16.mxu0 0
  %549 = vmatpush1.bf16.msra.mxu0 0
  %550 = vmatprep.subr.bf16.mxu0 0
  %551 = vmatpush1.bf16.msra.mxu0 0
  %552 = vmatprep.subr.bf16.mxu0 0
  %553 = vmatpush1.bf16.msra.mxu0 0
  %554 = vmatprep.subr.bf16.mxu0 0
  %555 = vmatpush1.bf16.msra.mxu0 0
  %556 = vmatprep.subr.bf16.mxu0 0
  %557 = vmatpush1.bf16.msra.mxu0 %v540
  %558 = vmatprep.subr.bf16.mxu0 0
  %559 = vmatpush2.bf16.msra.mxu0 0
  %560 = vmatprep.subr.bf16.mxu0 0
  %561 = vmatpush2.bf16.msra.mxu0 0
  %562 = vmatprep.subr.bf16.mxu0 0
  %563 = vmatpush2.bf16.msra.mxu0 0
  %564 = vmatprep.subr.bf16.mxu0 0
  %565 = vmatpush2.bf16.msra.mxu0 0
  %566 = vmatprep.subr.bf16.mxu0 0
  %567 = vmatpush2.bf16.msra.mxu0 0
  %568 = vmatprep.subr.bf16.mxu0 0
  %569 = vmatpush2.bf16.msra.mxu0 0
  %570 = vmatprep.subr.bf16.mxu0 0
  %571 = vmatpush2.bf16.msra.mxu0 0
  %572 = vmatprep.subr.bf16.mxu0 0
  %573 = vmatpush2.bf16.msra.mxu0 0
  %574 = vmatprep.mubr.bf16.mxu0 0
  %575 = vmatmul.mubr.bf16.gmra.mxu0 %v69
  %v576 = vpop.f32.mrf.mxu0
  %v577 = vadd.f32 0.0, %v576
  %v578 = vpop.f32.mrf.mxu0
  %v579 = vpop.f32.mrf.mxu0
  %v580 = vadd.f32 0.0, %v579
  %v581 = vpop.f32.mrf.mxu0
  %582 = vdwg.mxu0
  %s583 = scalar_lea.vmem %s2, 16
  %v584 = vld [vmem:[%s583] sm:$0xff]
  %v585 = vld [vmem:[%s583 + $0x8] sm:$0xff]
  %v586 = vpack.c.bf16 %v580, %v577
  %v587 = vpack.c.bf16 %v584, %v584
  %v588 = vpack.c.bf16 %v585, %v585
  %s589 = scalar_lea.vmem %s3, 2
  %v590 = vld [vmem:[%s589] sm:$0x3]
  %v592 = vlaneseq
  %v593 = vshrl.u32 %v592, 7
  %v594 = vsub.s32 0, %v593
  %v595 = vrot.slane %v590, %v594
  %v596 = vlaneseq
  %v597 = vshrl.u32 %v596, 7
  %v598 = vsub.s32 1, %v597
  %v599 = vrot.slane %v590, %v598
  %v603 = vsel %vm133, %v586, 0
  %v606 = vsel %vm137, %v587, 0
  %v609 = vsel %vm137, %v588, 0
  %611 = vmatprep.subr.bf16.mxu0 0
  %612 = vmatpush1.bf16.msra.mxu0 0
  %613 = vmatprep.subr.bf16.mxu0 0
  %614 = vmatpush1.bf16.msra.mxu0 0
  %615 = vmatprep.subr.bf16.mxu0 0
  %616 = vmatpush1.bf16.msra.mxu0 0
  %617 = vmatprep.subr.bf16.mxu0 0
  %618 = vmatpush1.bf16.msra.mxu0 0
  %619 = vmatprep.subr.bf16.mxu0 0
  %620 = vmatpush1.bf16.msra.mxu0 0
  %621 = vmatprep.subr.bf16.mxu0 0
  %622 = vmatpush1.bf16.msra.mxu0 0
  %623 = vmatprep.subr.bf16.mxu0 0
  %624 = vmatpush1.bf16.msra.mxu0 0
  %625 = vmatprep.subr.bf16.mxu0 %v609
  %626 = vmatpush1.bf16.msra.mxu0 %v606
  %627 = vmatprep.subr.bf16.mxu0 0
  %628 = vmatpush2.bf16.msra.mxu0 0
  %629 = vmatprep.subr.bf16.mxu0 0
  %630 = vmatpush2.bf16.msra.mxu0 0
  %631 = vmatprep.subr.bf16.mxu0 0
  %632 = vmatpush2.bf16.msra.mxu0 0
  %633 = vmatprep.subr.bf16.mxu0 0
  %634 = vmatpush2.bf16.msra.mxu0 0
  %635 = vmatprep.subr.bf16.mxu0 0
  %636 = vmatpush2.bf16.msra.mxu0 0
  %637 = vmatprep.subr.bf16.mxu0 0
  %638 = vmatpush2.bf16.msra.mxu0 0
  %639 = vmatprep.subr.bf16.mxu0 0
  %640 = vmatpush2.bf16.msra.mxu0 0
  %641 = vmatprep.subr.bf16.mxu0 0
  %642 = vmatpush2.bf16.msra.mxu0 0
  %643 = vmatprep.mubr.bf16.mxu0 0
  %644 = vmatmul.mubr.bf16.gmra.mxu0 %v603
  %v645 = vpop.f32.mrf.mxu0
  %v646 = vadd.f32 %v595, %v645
  %v647 = vpop.f32.mrf.mxu0
  %v648 = vadd.f32 %v599, %v647
  %v649 = vpop.f32.mrf.mxu0
  %v650 = vadd.f32 %v595, %v649
  %v651 = vpop.f32.mrf.mxu0
  %v652 = vadd.f32 %v599, %v651
  %653 = vdwg.mxu0
  %s654 = scalar_lea.vmem %s4, 192
  %v655 = vld [vmem:[%s654] sm:$0xff]
  %v656 = vld [vmem:[%s654 + $0x8] sm:$0xff]
  %v657 = vld [vmem:[%s654 + $0x10] sm:$0xff]
  %v658 = vld [vmem:[%s654 + $0x18] sm:$0xff]
  %v659 = vld [vmem:[%s654 + $0x20] sm:$0xff]
  %v660 = vld [vmem:[%s654 + $0x28] sm:$0xff]
  %v661 = vld [vmem:[%s654 + $0x30] sm:$0xff]
  %v662 = vld [vmem:[%s654 + $0x38] sm:$0xff]
  %v663 = vld [vmem:[%s654 + $0x40] sm:$0xff]
  %v664 = vld [vmem:[%s654 + $0x48] sm:$0xff]
  %v665 = vld [vmem:[%s654 + $0x50] sm:$0xff]
  %v666 = vld [vmem:[%s654 + $0x58] sm:$0xff]
  %v667 = vld [vmem:[%s654 + $0x60] sm:$0xff]
  %v668 = vld [vmem:[%s654 + $0x68] sm:$0xff]
  %v669 = vld [vmem:[%s654 + $0x70] sm:$0xff]
  %v670 = vld [vmem:[%s654 + $0x78] sm:$0xff]
  %v671 = vld [vmem:[%s654 + $0x80] sm:$0xff]
  %v672 = vld [vmem:[%s654 + $0x88] sm:$0xff]
  %v673 = vld [vmem:[%s654 + $0x90] sm:$0xff]
  %v674 = vld [vmem:[%s654 + $0x98] sm:$0xff]
  %v675 = vld [vmem:[%s654 + $0xa0] sm:$0xff]
  %v676 = vld [vmem:[%s654 + $0xa8] sm:$0xff]
  %v677 = vld [vmem:[%s654 + $0xb0] sm:$0xff]
  %v678 = vld [vmem:[%s654 + $0xb8] sm:$0xff]
  %v679 = vpack.c.bf16 %v650, %v646
  %v680 = vpack.c.bf16 %v652, %v648
  %v681 = vpack.c.bf16 %v656, %v655
  %v682 = vpack.c.bf16 %v658, %v657
  %v683 = vpack.c.bf16 %v660, %v659
  %v684 = vpack.c.bf16 %v662, %v661
  %v685 = vpack.c.bf16 %v664, %v663
  %v686 = vpack.c.bf16 %v666, %v665
  %v687 = vpack.c.bf16 %v668, %v667
  %v688 = vpack.c.bf16 %v670, %v669
  %v689 = vpack.c.bf16 %v672, %v671
  %v690 = vpack.c.bf16 %v674, %v673
  %v691 = vpack.c.bf16 %v676, %v675
  %v692 = vpack.c.bf16 %v678, %v677
  %v694 = vsel %vm225, %v680, 0
  %696 = vmatprep.subr.bf16.mxu0 0
  %697 = vmatpush1.bf16.msra.mxu0 %v688
  %698 = vmatprep.subr.bf16.mxu0 0
  %699 = vmatpush1.bf16.msra.mxu0 %v687
  %700 = vmatprep.subr.bf16.mxu0 0
  %701 = vmatpush1.bf16.msra.mxu0 %v686
  %702 = vmatprep.subr.bf16.mxu0 0
  %703 = vmatpush1.bf16.msra.mxu0 %v685
  %704 = vmatprep.subr.bf16.mxu0 0
  %705 = vmatpush1.bf16.msra.mxu0 %v684
  %706 = vmatprep.subr.bf16.mxu0 0
  %707 = vmatpush1.bf16.msra.mxu0 %v683
  %708 = vmatprep.subr.bf16.mxu0 0
  %709 = vmatpush1.bf16.msra.mxu0 %v682
  %710 = vmatprep.subr.bf16.mxu0 0
  %711 = vmatpush1.bf16.msra.mxu0 %v681
  %712 = vmatprep.subr.bf16.mxu0 0
  %713 = vmatpush2.bf16.msra.mxu0 0
  %714 = vmatprep.subr.bf16.mxu0 0
  %715 = vmatpush2.bf16.msra.mxu0 0
  %716 = vmatprep.subr.bf16.mxu0 0
  %717 = vmatpush2.bf16.msra.mxu0 0
  %718 = vmatprep.subr.bf16.mxu0 0
  %719 = vmatpush2.bf16.msra.mxu0 0
  %720 = vmatprep.subr.bf16.mxu0 0
  %721 = vmatpush2.bf16.msra.mxu0 %v692
  %722 = vmatprep.subr.bf16.mxu0 0
  %723 = vmatpush2.bf16.msra.mxu0 %v691
  %724 = vmatprep.subr.bf16.mxu0 0
  %725 = vmatpush2.bf16.msra.mxu0 %v690
  %726 = vmatprep.subr.bf16.mxu0 0
  %727 = vmatpush2.bf16.msra.mxu0 %v689
  %728 = vmatprep.mubr.bf16.mxu0 %v694
  %729 = vmatmul.mubr.bf16.gmra.mxu0 %v679
  %v730 = vpop.f32.mrf.mxu0
  %v731 = vadd.f32 0.0, %v730
  %v732 = vpop.f32.mrf.mxu0
  %v733 = vpop.f32.mrf.mxu0
  %v734 = vadd.f32 0.0, %v733
  %v735 = vpop.f32.mrf.mxu0
  %736 = vdwg.mxu0
  %v737 = vpack.c.bf16 %v734, %v731
  %s738 = scalar_lea.vmem %s5, 1
  %v739 = vld [vmem:[%s738] sm:$0x1]
  %v741 = vlaneseq
  %v742 = vshrl.u32 %v741, 7
  %v743 = vsub.s32 0, %v742
  %v744 = vrot.slane %v739, %v743
  %v747 = vsel %vm71, %v737, 0
  %749 = vmatprep.subr.bf16.mxu0 0
  %750 = vmatpush1.bf16.msra.mxu0 0
  %751 = vmatprep.subr.bf16.mxu0 0
  %752 = vmatpush1.bf16.msra.mxu0 0
  %753 = vmatprep.subr.bf16.mxu0 0
  %754 = vmatpush1.bf16.msra.mxu0 0
  %755 = vmatprep.subr.bf16.mxu0 0
  %756 = vmatpush1.bf16.msra.mxu0 0
  %757 = vmatprep.subr.bf16.mxu0 0
  %758 = vmatpush1.bf16.msra.mxu0 0
  %759 = vmatprep.subr.bf16.mxu0 0
  %760 = vmatpush1.bf16.msra.mxu0 0
  %761 = vmatprep.subr.bf16.mxu0 0
  %762 = vmatpush1.bf16.msra.mxu0 0
  %763 = vmatprep.subr.bf16.mxu0 0
  %764 = vmatpush1.bf16.msra.mxu0 %v747
  %765 = vmatprep.subr.bf16.mxu0 0
  %766 = vmatpush2.bf16.msra.mxu0 0
  %767 = vmatprep.subr.bf16.mxu0 0
  %768 = vmatpush2.bf16.msra.mxu0 0
  %769 = vmatprep.subr.bf16.mxu0 0
  %770 = vmatpush2.bf16.msra.mxu0 0
  %771 = vmatprep.subr.bf16.mxu0 0
  %772 = vmatpush2.bf16.msra.mxu0 0
  %773 = vmatprep.subr.bf16.mxu0 0
  %774 = vmatpush2.bf16.msra.mxu0 0
  %775 = vmatprep.subr.bf16.mxu0 0
  %776 = vmatpush2.bf16.msra.mxu0 0
  %777 = vmatprep.subr.bf16.mxu0 0
  %778 = vmatpush2.bf16.msra.mxu0 0
  %779 = vmatprep.subr.bf16.mxu0 0
  %780 = vmatpush2.bf16.msra.mxu0 0
  %781 = vmatprep.mubr.bf16.mxu0 0
  %782 = vmatmul.mubr.bf16.gmra.mxu0 %v69
  %v783 = vpop.f32.mrf.mxu0
  %v784 = vadd.f32 %v744, %v783
  %v785 = vpop.f32.mrf.mxu0
  %v786 = vpop.f32.mrf.mxu0
  %v787 = vadd.f32 %v744, %v786
  %v788 = vpop.f32.mrf.mxu0
  %789 = vdwg.mxu0
  %v790 = vsel %vm133, %v538, 0
  %792 = vmatprep.subr.bf16.mxu0 0
  %793 = vmatpush1.bf16.msra.mxu0 0
  %794 = vmatprep.subr.bf16.mxu0 0
  %795 = vmatpush1.bf16.msra.mxu0 0
  %796 = vmatprep.subr.bf16.mxu0 0
  %797 = vmatpush1.bf16.msra.mxu0 0
  %798 = vmatprep.subr.bf16.mxu0 0
  %799 = vmatpush1.bf16.msra.mxu0 0
  %800 = vmatprep.subr.bf16.mxu0 0
  %801 = vmatpush1.bf16.msra.mxu0 0
  %802 = vmatprep.subr.bf16.mxu0 0
  %803 = vmatpush1.bf16.msra.mxu0 0
  %804 = vmatprep.subr.bf16.mxu0 0
  %805 = vmatpush1.bf16.msra.mxu0 0
  %806 = vmatprep.subr.bf16.mxu0 0
  %807 = vmatpush1.bf16.msra.mxu0 %v332
  %808 = vmatprep.subr.bf16.mxu0 0
  %809 = vmatpush2.bf16.msra.mxu0 0
  %810 = vmatprep.subr.bf16.mxu0 0
  %811 = vmatpush2.bf16.msra.mxu0 0
  %812 = vmatprep.subr.bf16.mxu0 0
  %813 = vmatpush2.bf16.msra.mxu0 0
  %814 = vmatprep.subr.bf16.mxu0 0
  %815 = vmatpush2.bf16.msra.mxu0 0
  %816 = vmatprep.subr.bf16.mxu0 0
  %817 = vmatpush2.bf16.msra.mxu0 0
  %818 = vmatprep.subr.bf16.mxu0 0
  %819 = vmatpush2.bf16.msra.mxu0 0
  %820 = vmatprep.subr.bf16.mxu0 0
  %821 = vmatpush2.bf16.msra.mxu0 0
  %822 = vmatprep.subr.bf16.mxu0 0
  %823 = vmatpush2.bf16.msra.mxu0 0
  %824 = vmatprep.mubr.bf16.mxu0 0
  %825 = vmatmul.mubr.bf16.gmra.mxu0 %v790
  %v826 = vpop.f32.mrf.mxu0
  %v827 = vadd.f32 %v327, %v826
  %v828 = vpop.f32.mrf.mxu0
  %v829 = vpop.f32.mrf.mxu0
  %v830 = vadd.f32 %v327, %v829
  %v831 = vpop.f32.mrf.mxu0
  %832 = vdwg.mxu0
  %v833 = vmax.f32 %v827, 0.0
  %v834 = vmax.f32 %v830, 0.0
  %v835 = vpack.c.bf16 %v834, %v833
  %836 = vmatprep.subr.bf16.mxu0 0
  %837 = vmatpush1.bf16.msra.mxu0 %v385
  %838 = vmatprep.subr.bf16.mxu0 0
  %839 = vmatpush1.bf16.msra.mxu0 %v384
  %840 = vmatprep.subr.bf16.mxu0 0
  %841 = vmatpush1.bf16.msra.mxu0 %v383
  %842 = vmatprep.subr.bf16.mxu0 0
  %843 = vmatpush1.bf16.msra.mxu0 %v382
  %844 = vmatprep.subr.bf16.mxu0 0
  %845 = vmatpush1.bf16.msra.mxu0 %v381
  %846 = vmatprep.subr.bf16.mxu0 0
  %847 = vmatpush1.bf16.msra.mxu0 %v380
  %848 = vmatprep.subr.bf16.mxu0 0
  %849 = vmatpush1.bf16.msra.mxu0 %v379
  %850 = vmatprep.subr.bf16.mxu0 0
  %851 = vmatpush1.bf16.msra.mxu0 %v378
  %852 = vmatprep.subr.bf16.mxu0 0
  %853 = vmatpush2.bf16.msra.mxu0 0
  %854 = vmatprep.subr.bf16.mxu0 0
  %855 = vmatpush2.bf16.msra.mxu0 0
  %856 = vmatprep.subr.bf16.mxu0 0
  %857 = vmatpush2.bf16.msra.mxu0 0
  %858 = vmatprep.subr.bf16.mxu0 0
  %859 = vmatpush2.bf16.msra.mxu0 0
  %860 = vmatprep.subr.bf16.mxu0 0
  %861 = vmatpush2.bf16.msra.mxu0 0
  %862 = vmatprep.subr.bf16.mxu0 0
  %863 = vmatpush2.bf16.msra.mxu0 0
  %864 = vmatprep.subr.bf16.mxu0 0
  %865 = vmatpush2.bf16.msra.mxu0 0
  %866 = vmatprep.subr.bf16.mxu0 0
  %867 = vmatpush2.bf16.msra.mxu0 0
  %868 = vmatprep.mubr.bf16.mxu0 0
  %869 = vmatmul.mubr.bf16.gmra.mxu0 %v835
  %v870 = vpop.f32.mrf.mxu0
  %v871 = vadd.f32 %v390, %v870
  %v872 = vpop.f32.mrf.mxu0
  %v873 = vpop.f32.mrf.mxu0
  %v874 = vadd.f32 %v390, %v873
  %v875 = vpop.f32.mrf.mxu0
  %876 = vdwg.mxu0
  %s877 = scalar_lea.vmem %s6, 4
  %v878 = vld [vmem:[%s877] sm:$0xf]
  %v879 = vpack.c.bf16 %v787, %v784
  %v880 = vpack.c.bf16 %v878, %v878
  %v882 = vsel %vm439, %v879, 0
  %v885 = vsel %vm443, %v880, 0
  %887 = vmatprep.subr.bf16.mxu0 0
  %888 = vmatpush1.bf16.msra.mxu0 0
  %889 = vmatprep.subr.bf16.mxu0 0
  %890 = vmatpush1.bf16.msra.mxu0 0
  %891 = vmatprep.subr.bf16.mxu0 0
  %892 = vmatpush1.bf16.msra.mxu0 0
  %893 = vmatprep.subr.bf16.mxu0 0
  %894 = vmatpush1.bf16.msra.mxu0 0
  %895 = vmatprep.subr.bf16.mxu0 0
  %896 = vmatpush1.bf16.msra.mxu0 0
  %897 = vmatprep.subr.bf16.mxu0 0
  %898 = vmatpush1.bf16.msra.mxu0 0
  %899 = vmatprep.subr.bf16.mxu0 0
  %900 = vmatpush1.bf16.msra.mxu0 0
  %901 = vmatprep.subr.bf16.mxu0 0
  %902 = vmatpush1.bf16.msra.mxu0 %v885
  %903 = vmatprep.subr.bf16.mxu0 0
  %904 = vmatpush2.bf16.msra.mxu0 0
  %905 = vmatprep.subr.bf16.mxu0 0
  %906 = vmatpush2.bf16.msra.mxu0 0
  %907 = vmatprep.subr.bf16.mxu0 0
  %908 = vmatpush2.bf16.msra.mxu0 0
  %909 = vmatprep.subr.bf16.mxu0 0
  %910 = vmatpush2.bf16.msra.mxu0 0
  %911 = vmatprep.subr.bf16.mxu0 0
  %912 = vmatpush2.bf16.msra.mxu0 0
  %913 = vmatprep.subr.bf16.mxu0 0
  %914 = vmatpush2.bf16.msra.mxu0 0
  %915 = vmatprep.subr.bf16.mxu0 0
  %916 = vmatpush2.bf16.msra.mxu0 0
  %917 = vmatprep.subr.bf16.mxu0 0
  %918 = vmatpush2.bf16.msra.mxu0 0
  %919 = vmatprep.mubr.bf16.mxu0 0
  %920 = vmatmul.mubr.bf16.gmra.mxu0 %v882
  %v921 = vpop.f32.mrf.mxu0
  %v922 = vadd.f32 0.0, %v921
  %v923 = vpop.f32.mrf.mxu0
  %v924 = vpop.f32.mrf.mxu0
  %v925 = vadd.f32 0.0, %v924
  %v926 = vpop.f32.mrf.mxu0
  %927 = vdwg.mxu0
  %v928 = vadd.f32 %v529, %v922
  %v929 = vadd.f32 %v532, %v925
  %s930 = scalar_lea.vmem %s7, 4
  %v931 = vld [vmem:[%s930] sm:$0xf]
  %v932 = vpack.c.bf16 %v874, %v871
  %v933 = vpack.c.bf16 %v931, %v931
  %v935 = vsel %vm439, %v932, 0
  %v938 = vsel %vm443, %v933, 0
  %940 = vmatprep.subr.bf16.mxu0 0
  %941 = vmatpush1.bf16.msra.mxu0 0
  %942 = vmatprep.subr.bf16.mxu0 0
  %943 = vmatpush1.bf16.msra.mxu0 0
  %944 = vmatprep.subr.bf16.mxu0 0
  %945 = vmatpush1.bf16.msra.mxu0 0
  %946 = vmatprep.subr.bf16.mxu0 0
  %947 = vmatpush1.bf16.msra.mxu0 0
  %948 = vmatprep.subr.bf16.mxu0 0
  %949 = vmatpush1.bf16.msra.mxu0 0
  %950 = vmatprep.subr.bf16.mxu0 0
  %951 = vmatpush1.bf16.msra.mxu0 0
  %952 = vmatprep.subr.bf16.mxu0 0
  %953 = vmatpush1.bf16.msra.mxu0 0
  %954 = vmatprep.subr.bf16.mxu0 0
  %955 = vmatpush1.bf16.msra.mxu0 %v938
  %956 = vmatprep.subr.bf16.mxu0 0
  %957 = vmatpush2.bf16.msra.mxu0 0
  %958 = vmatprep.subr.bf16.mxu0 0
  %959 = vmatpush2.bf16.msra.mxu0 0
  %960 = vmatprep.subr.bf16.mxu0 0
  %961 = vmatpush2.bf16.msra.mxu0 0
  %962 = vmatprep.subr.bf16.mxu0 0
  %963 = vmatpush2.bf16.msra.mxu0 0
  %964 = vmatprep.subr.bf16.mxu0 0
  %965 = vmatpush2.bf16.msra.mxu0 0
  %966 = vmatprep.subr.bf16.mxu0 0
  %967 = vmatpush2.bf16.msra.mxu0 0
  %968 = vmatprep.subr.bf16.mxu0 0
  %969 = vmatpush2.bf16.msra.mxu0 0
  %970 = vmatprep.subr.bf16.mxu0 0
  %971 = vmatpush2.bf16.msra.mxu0 0
  %972 = vmatprep.mubr.bf16.mxu0 0
  %973 = vmatmul.mubr.bf16.gmra.mxu0 %v935
  %v974 = vpop.f32.mrf.mxu0
  %v975 = vadd.f32 0.0, %v974
  %v976 = vpop.f32.mrf.mxu0
  %v977 = vpop.f32.mrf.mxu0
  %v978 = vadd.f32 0.0, %v977
  %v979 = vpop.f32.mrf.mxu0
  %980 = vdwg.mxu0
  %v981 = vadd.f32 %v928, %v975
  %v982 = vadd.f32 %v929, %v978
  %983 = vst.msk [vmem:[%s12] sm:$0xff] %vm133, %v981
  %vm984 = vcmask 58368
  %985 = vst.msk [vmem:[%s12 + $0x8] sm:$0x3] %vm984, %v982
  // Predicated region
  $region50: #{gnn_forward.4} parent=0 // pred_check
    _
  $region51: #{gnn_forward.4} parent=0 // pred_check_branch
    %987 = sbr.rel (0) target = $region53
  $region52: #{gnn_forward.4} parent=0 // pred_region
    _
  $region53: #{gnn_forward.4} parent=0 // pred_fallthru
    _
  // Predicated region
  $region54: #{gnn_forward.4} parent=0 // pred_check
    _
  $region55: #{gnn_forward.4} parent=0 // pred_check_branch
    %989 = sbr.rel (0) target = $region57
  $region56: #{gnn_forward.4} parent=0 // pred_region
    _
  $region57: #{gnn_forward.4} parent=0 // pred_fallthru
    _

// kernel: gnn_forward.6
$region0: #{gnn_forward.6}
  #allocation0 [shape = 'u32[]', space=smem, size = 0x4, offset = 0x4, fixed_abs, tag = 'smem constant byte address 0x4 - core index']
  #allocation1 [shape = 'u32[144,128]{1,0:T(1,128)}', space=vmem, size = 0x12000, scoped, tag = 'internal scratch']
  %s0 = inlined_call_operand.vmem [shape: f32[10,10], index: 0, kind: input, shape index: {}]
  %s1 = inlined_call_operand.vmem [shape: f32[10,16], index: 1, kind: input, shape index: {}]
  %s2 = inlined_call_operand.vmem [shape: f32[10,8], index: 2, kind: input, shape index: {}]
  %s3 = inlined_call_operand.vmem [shape: f32[16,128], index: 3, kind: input, shape index: {}]
  %s4 = inlined_call_operand.vmem [shape: f32[8,128], index: 4, kind: input, shape index: {}]
  %s5 = inlined_call_operand.vmem [shape: f32[1,128], index: 5, kind: input, shape index: {}]
  %s6 = inlined_call_operand.vmem [shape: f32[128,8], index: 6, kind: input, shape index: {}]
  %s7 = inlined_call_operand.vmem [shape: f32[1,8], index: 7, kind: input, shape index: {}]
  %s8 = inlined_call_operand.vmem [shape: f32[2,8,192], index: 8, kind: input, shape index: {}]
  %s9 = inlined_call_operand.vmem [shape: f32[2,1,192], index: 9, kind: input, shape index: {}]
  %s10 = inlined_call_operand.vmem [shape: f32[2,192,8], index: 10, kind: input, shape index: {}]
  %s11 = inlined_call_operand.vmem [shape: f32[2,1,8], index: 11, kind: input, shape index: {}]
  %s12 = inlined_call_operand.vmem [shape: f32[8,128], index: 12, kind: input, shape index: {}]
  %s13 = inlined_call_operand.vmem [shape: f32[1,128], index: 13, kind: input, shape index: {}]
  %s14 = inlined_call_operand.vmem [shape: f32[128,8], index: 14, kind: input, shape index: {}]
  %s15 = inlined_call_operand.vmem [shape: f32[1,8], index: 15, kind: input, shape index: {}]
  %s16 = inlined_call_operand.vmem [shape: f32[8,8], index: 16, kind: input, shape index: {}]
  %s17 = inlined_call_operand.vmem [shape: f32[8,8], index: 17, kind: input, shape index: {}]
  %s18 = inlined_call_operand.vmem [shape: f32[1,8], index: 18, kind: input, shape index: {}]
  %s19 = inlined_call_operand.vmem [shape: f32[2,10,8], index: 19, kind: output, shape index: {}]
  %s20 = sld [smem:[#allocation0]]
  $region86: #{gnn_forward.6} parent=0
    _
  %s22 = ssub.s32 1, %s20
  %s23 = scalar_select 0, %s22, %s20
  // Predicated region
  $region2: #{gnn_forward.6} parent=0 // pred_check
    _
  $region3: #{gnn_forward.6} parent=0 // pred_check_branch
    %25 = sbr.rel (0) target = $region5
  $region4: #{gnn_forward.6} parent=0 // pred_region
    _
  $region5: #{gnn_forward.6} parent=0 // pred_fallthru
    _
  // Predicated region
  $region6: #{gnn_forward.6} parent=0 // pred_check
    _
  $region7: #{gnn_forward.6} parent=0 // pred_check_branch
    %27 = sbr.rel (0) target = $region9
  $region8: #{gnn_forward.6} parent=0 // pred_region
    _
  $region9: #{gnn_forward.6} parent=0 // pred_fallthru
    _
  // Predicated region
  $region10: #{gnn_forward.6} parent=0 // pred_check
    _
  $region11: #{gnn_forward.6} parent=0 // pred_check_branch
    %29 = sbr.rel (0) target = $region13
  $region12: #{gnn_forward.6} parent=0 // pred_region
    _
  $region13: #{gnn_forward.6} parent=0 // pred_fallthru
    _
  // Predicated region
  $region14: #{gnn_forward.6} parent=0 // pred_check
    _
  $region15: #{gnn_forward.6} parent=0 // pred_check_branch
    %31 = sbr.rel (0) target = $region17
  $region16: #{gnn_forward.6} parent=0 // pred_region
    _
  $region17: #{gnn_forward.6} parent=0 // pred_fallthru
    _
  // Predicated region
  $region18: #{gnn_forward.6} parent=0 // pred_check
    _
  $region19: #{gnn_forward.6} parent=0 // pred_check_branch
    %33 = sbr.rel (0) target = $region21
  $region20: #{gnn_forward.6} parent=0 // pred_region
    _
  $region21: #{gnn_forward.6} parent=0 // pred_fallthru
    _
  // Predicated region
  $region22: #{gnn_forward.6} parent=0 // pred_check
    _
  $region23: #{gnn_forward.6} parent=0 // pred_check_branch
    %35 = sbr.rel (0) target = $region25
  $region24: #{gnn_forward.6} parent=0 // pred_region
    _
  $region25: #{gnn_forward.6} parent=0 // pred_fallthru
    _
  // Predicated region
  $region26: #{gnn_forward.6} parent=0 // pred_check
    _
  $region27: #{gnn_forward.6} parent=0 // pred_check_branch
    %37 = sbr.rel (0) target = $region29
  $region28: #{gnn_forward.6} parent=0 // pred_region
    _
  $region29: #{gnn_forward.6} parent=0 // pred_fallthru
    _
  // Predicated region
  $region30: #{gnn_forward.6} parent=0 // pred_check
    _
  $region31: #{gnn_forward.6} parent=0 // pred_check_branch
    %39 = sbr.rel (0) target = $region33
  $region32: #{gnn_forward.6} parent=0 // pred_region
    _
  $region33: #{gnn_forward.6} parent=0 // pred_fallthru
    _
  // Predicated region
  $region34: #{gnn_forward.6} parent=0 // pred_check
    _
  $region35: #{gnn_forward.6} parent=0 // pred_check_branch
    %41 = sbr.rel (0) target = $region37
  $region36: #{gnn_forward.6} parent=0 // pred_region
    _
  $region37: #{gnn_forward.6} parent=0 // pred_fallthru
    _
  // Predicated region
  $region38: #{gnn_forward.6} parent=0 // pred_check
    _
  $region39: #{gnn_forward.6} parent=0 // pred_check_branch
    %43 = sbr.rel (0) target = $region41
  $region40: #{gnn_forward.6} parent=0 // pred_region
    _
  $region41: #{gnn_forward.6} parent=0 // pred_fallthru
    _
  // Predicated region
  $region42: #{gnn_forward.6} parent=0 // pred_check
    _
  $region43: #{gnn_forward.6} parent=0 // pred_check_branch
    %45 = sbr.rel (0) target = $region45
  $region44: #{gnn_forward.6} parent=0 // pred_region
    _
  $region45: #{gnn_forward.6} parent=0 // pred_fallthru
    _
  // Predicated region
  $region46: #{gnn_forward.6} parent=0 // pred_check
    _
  $region47: #{gnn_forward.6} parent=0 // pred_check_branch
    %47 = sbr.rel (0) target = $region49
  $region48: #{gnn_forward.6} parent=0 // pred_region
    _
  $region49: #{gnn_forward.6} parent=0 // pred_fallthru
    _
  // Predicated region
  $region50: #{gnn_forward.6} parent=0 // pred_check
    _
  $region51: #{gnn_forward.6} parent=0 // pred_check_branch
    %49 = sbr.rel (0) target = $region53
  $region52: #{gnn_forward.6} parent=0 // pred_region
    _
  $region53: #{gnn_forward.6} parent=0 // pred_fallthru
    _
  // Predicated region
  $region54: #{gnn_forward.6} parent=0 // pred_check
    _
  $region55: #{gnn_forward.6} parent=0 // pred_check_branch
    %51 = sbr.rel (0) target = $region57
  $region56: #{gnn_forward.6} parent=0 // pred_region
    _
  $region57: #{gnn_forward.6} parent=0 // pred_fallthru
    _
  // Predicated region
  $region58: #{gnn_forward.6} parent=0 // pred_check
    _
  $region59: #{gnn_forward.6} parent=0 // pred_check_branch
    %53 = sbr.rel (0) target = $region61
  $region60: #{gnn_forward.6} parent=0 // pred_region
    _
  $region61: #{gnn_forward.6} parent=0 // pred_fallthru
    _
  // Predicated region
  $region62: #{gnn_forward.6} parent=0 // pred_check
    _
  $region63: #{gnn_forward.6} parent=0 // pred_check_branch
    %55 = sbr.rel (0) target = $region65
  $region64: #{gnn_forward.6} parent=0 // pred_region
    _
  $region65: #{gnn_forward.6} parent=0 // pred_fallthru
    _
  // Predicated region
  $region66: #{gnn_forward.6} parent=0 // pred_check
    _
  $region67: #{gnn_forward.6} parent=0 // pred_check_branch
    %57 = sbr.rel (0) target = $region69
  $region68: #{gnn_forward.6} parent=0 // pred_region
    _
  $region69: #{gnn_forward.6} parent=0 // pred_fallthru
    _
  // Predicated region
  $region70: #{gnn_forward.6} parent=0 // pred_check
    _
  $region71: #{gnn_forward.6} parent=0 // pred_check_branch
    %59 = sbr.rel (0) target = $region73
  $region72: #{gnn_forward.6} parent=0 // pred_region
    _
  $region73: #{gnn_forward.6} parent=0 // pred_fallthru
    _
  // Predicated region
  $region74: #{gnn_forward.6} parent=0 // pred_check
    _
  $region75: #{gnn_forward.6} parent=0 // pred_check_branch
    %61 = sbr.rel (0) target = $region77
  $region76: #{gnn_forward.6} parent=0 // pred_region
    _
  $region77: #{gnn_forward.6} parent=0 // pred_fallthru
    _
  %v63 = vld [vmem:[%s0] sm:$0xff]
  %v64 = vld [vmem:[%s0 + $0x8] sm:$0x3]
  %v65 = vpack.c.bf16 %v64, %v63
  %v66 = vld [vmem:[%s1] sm:$0xff]
  %v67 = vld [vmem:[%s1 + $0x8] sm:$0x3]
  %v68 = vld [vmem:[%s3] sm:$0xff]
  %v69 = vld [vmem:[%s3 + $0x8] sm:$0xff]
  %v70 = vpack.c.bf16 %v67, %v66
  %v71 = vpack.c.bf16 %v69, %v68
  %v72 = vld [vmem:[%s2] sm:$0xff]
  %v73 = vld [vmem:[%s2 + $0x8] sm:$0x3]
  %v74 = vld [vmem:[%s4] sm:$0xff]
  %v75 = vpack.c.bf16 %v73, %v72
  %v76 = vpack.c.bf16 %v74, %v74
  %vm77 = vcmask 64512
  %v79 = vsel %vm77, %v75, 0
  %vm81 = vcmask 1043456
  %v83 = vsel %vm81, %v76, 0
  %85 = vmatprep.subr.bf16.mxu0 0
  %86 = vmatpush1.bf16.msra.mxu0 0
  %87 = vmatprep.subr.bf16.mxu0 0
  %88 = vmatpush1.bf16.msra.mxu0 0
  %89 = vmatprep.subr.bf16.mxu0 0
  %90 = vmatpush1.bf16.msra.mxu0 0
  %91 = vmatprep.subr.bf16.mxu0 0
  %92 = vmatpush1.bf16.msra.mxu0 0
  %93 = vmatprep.subr.bf16.mxu0 0
  %94 = vmatpush1.bf16.msra.mxu0 0
  %95 = vmatprep.subr.bf16.mxu0 0
  %96 = vmatpush1.bf16.msra.mxu0 0
  %97 = vmatprep.subr.bf16.mxu0 0
  %98 = vmatpush1.bf16.msra.mxu0 0
  %99 = vmatprep.subr.bf16.mxu0 0
  %100 = vmatpush1.bf16.msra.mxu0 %v83
  %101 = vmatprep.subr.bf16.mxu0 0
  %102 = vmatpush2.bf16.msra.mxu0 0
  %103 = vmatprep.subr.bf16.mxu0 0
  %104 = vmatpush2.bf16.msra.mxu0 0
  %105 = vmatprep.subr.bf16.mxu0 0
  %106 = vmatpush2.bf16.msra.mxu0 0
  %107 = vmatprep.subr.bf16.mxu0 0
  %108 = vmatpush2.bf16.msra.mxu0 0
  %109 = vmatprep.subr.bf16.mxu0 0
  %110 = vmatpush2.bf16.msra.mxu0 0
  %111 = vmatprep.subr.bf16.mxu0 0
  %112 = vmatpush2.bf16.msra.mxu0 0
  %113 = vmatprep.subr.bf16.mxu0 0
  %114 = vmatpush2.bf16.msra.mxu0 0
  %115 = vmatprep.subr.bf16.mxu0 0
  %116 = vmatpush2.bf16.msra.mxu0 0
  %117 = vmatprep.mubr.bf16.mxu0 0
  %118 = vmatmul.mubr.bf16.gmra.mxu0 %v79
  %v119 = vpop.f32.mrf.mxu0
  %v120 = vadd.f32 0.0, %v119
  %v121 = vpop.f32.mrf.mxu0
  %v122 = vpop.f32.mrf.mxu0
  %v123 = vadd.f32 0.0, %v122
  %v124 = vpop.f32.mrf.mxu0
  %125 = vdwg.mxu0
  %vm126 = vcmask 130048
  %v128 = vsel %vm126, %v70, 0
  %130 = vmatprep.subr.bf16.mxu0 0
  %131 = vmatpush1.bf16.msra.mxu0 0
  %132 = vmatprep.subr.bf16.mxu0 0
  %133 = vmatpush1.bf16.msra.mxu0 0
  %134 = vmatprep.subr.bf16.mxu0 0
  %135 = vmatpush1.bf16.msra.mxu0 0
  %136 = vmatprep.subr.bf16.mxu0 0
  %137 = vmatpush1.bf16.msra.mxu0 0
  %138 = vmatprep.subr.bf16.mxu0 0
  %139 = vmatpush1.bf16.msra.mxu0 0
  %140 = vmatprep.subr.bf16.mxu0 0
  %141 = vmatpush1.bf16.msra.mxu0 0
  %142 = vmatprep.subr.bf16.mxu0 0
  %143 = vmatpush1.bf16.msra.mxu0 0
  %144 = vmatprep.subr.bf16.mxu0 0
  %145 = vmatpush1.bf16.msra.mxu0 %v71
  %146 = vmatprep.subr.bf16.mxu0 0
  %147 = vmatpush2.bf16.msra.mxu0 0
  %148 = vmatprep.subr.bf16.mxu0 0
  %149 = vmatpush2.bf16.msra.mxu0 0
  %150 = vmatprep.subr.bf16.mxu0 0
  %151 = vmatpush2.bf16.msra.mxu0 0
  %152 = vmatprep.subr.bf16.mxu0 0
  %153 = vmatpush2.bf16.msra.mxu0 0
  %154 = vmatprep.subr.bf16.mxu0 0
  %155 = vmatpush2.bf16.msra.mxu0 0
  %156 = vmatprep.subr.bf16.mxu0 0
  %157 = vmatpush2.bf16.msra.mxu0 0
  %158 = vmatprep.subr.bf16.mxu0 0
  %159 = vmatpush2.bf16.msra.mxu0 0
  %160 = vmatprep.subr.bf16.mxu0 0
  %161 = vmatpush2.bf16.msra.mxu0 0
  %162 = vmatprep.mubr.bf16.mxu0 0
  %163 = vmatmul.mubr.bf16.gmra.mxu0 %v128
  %v164 = vpop.f32.mrf.mxu0
  %v165 = vadd.f32 %v120, %v164
  %v166 = vpop.f32.mrf.mxu0
  %v167 = vpop.f32.mrf.mxu0
  %v168 = vadd.f32 %v123, %v167
  %v169 = vpop.f32.mrf.mxu0
  %170 = vdwg.mxu0
  %v171 = vld [vmem:[%s5] sm:$0x1]
  %v173 = vlaneseq
  %v174 = vshrl.u32 %v173, 7
  %v175 = vsub.s32 0, %v174
  %v176 = vrot.slane %v171, %v175
  %v178 = vadd.f32 %v165, %v176
  %v179 = vadd.f32 %v168, %v176
  %v180 = vmax.f32 %v178, 0.0
  %v181 = vmax.f32 %v179, 0.0
  %v182 = vld [vmem:[%s6] sm:$0xff]
  %v183 = vld [vmem:[%s6 + $0x8] sm:$0xff]
  %v184 = vld [vmem:[%s6 + $0x10] sm:$0xff]
  %v185 = vld [vmem:[%s6 + $0x18] sm:$0xff]
  %v186 = vld [vmem:[%s6 + $0x20] sm:$0xff]
  %v187 = vld [vmem:[%s6 + $0x28] sm:$0xff]
  %v188 = vld [vmem:[%s6 + $0x30] sm:$0xff]
  %v189 = vld [vmem:[%s6 + $0x38] sm:$0xff]
  %v190 = vld [vmem:[%s6 + $0x40] sm:$0xff]
  %v191 = vld [vmem:[%s6 + $0x48] sm:$0xff]
  %v192 = vld [vmem:[%s6 + $0x50] sm:$0xff]
  %v193 = vld [vmem:[%s6 + $0x58] sm:$0xff]
  %v194 = vld [vmem:[%s6 + $0x60] sm:$0xff]
  %v195 = vld [vmem:[%s6 + $0x68] sm:$0xff]
  %v196 = vld [vmem:[%s6 + $0x70] sm:$0xff]
  %v197 = vld [vmem:[%s6 + $0x78] sm:$0xff]
  %v198 = vpack.c.bf16 %v181, %v180
  %v199 = vpack.c.bf16 %v183, %v182
  %v200 = vpack.c.bf16 %v185, %v184
  %v201 = vpack.c.bf16 %v187, %v186
  %v202 = vpack.c.bf16 %v189, %v188
  %v203 = vpack.c.bf16 %v191, %v190
  %v204 = vpack.c.bf16 %v193, %v192
  %v205 = vpack.c.bf16 %v195, %v194
  %v206 = vpack.c.bf16 %v197, %v196
  %v207 = vld [vmem:[%s7] sm:$0x1]
  %v209 = vlaneseq
  %v210 = vshrl.u32 %v209, 7
  %v211 = vsub.s32 0, %v210
  %v212 = vrot.slane %v207, %v211
  %214 = vmatprep.subr.bf16.mxu0 0
  %215 = vmatpush1.bf16.msra.mxu0 %v206
  %216 = vmatprep.subr.bf16.mxu0 0
  %217 = vmatpush1.bf16.msra.mxu0 %v205
  %218 = vmatprep.subr.bf16.mxu0 0
  %219 = vmatpush1.bf16.msra.mxu0 %v204
  %220 = vmatprep.subr.bf16.mxu0 0
  %221 = vmatpush1.bf16.msra.mxu0 %v203
  %222 = vmatprep.subr.bf16.mxu0 0
  %223 = vmatpush1.bf16.msra.mxu0 %v202
  %224 = vmatprep.subr.bf16.mxu0 0
  %225 = vmatpush1.bf16.msra.mxu0 %v201
  %226 = vmatprep.subr.bf16.mxu0 0
  %227 = vmatpush1.bf16.msra.mxu0 %v200
  %228 = vmatprep.subr.bf16.mxu0 0
  %229 = vmatpush1.bf16.msra.mxu0 %v199
  %230 = vmatprep.subr.bf16.mxu0 0
  %231 = vmatpush2.bf16.msra.mxu0 0
  %232 = vmatprep.subr.bf16.mxu0 0
  %233 = vmatpush2.bf16.msra.mxu0 0
  %234 = vmatprep.subr.bf16.mxu0 0
  %235 = vmatpush2.bf16.msra.mxu0 0
  %236 = vmatprep.subr.bf16.mxu0 0
  %237 = vmatpush2.bf16.msra.mxu0 0
  %238 = vmatprep.subr.bf16.mxu0 0
  %239 = vmatpush2.bf16.msra.mxu0 0
  %240 = vmatprep.subr.bf16.mxu0 0
  %241 = vmatpush2.bf16.msra.mxu0 0
  %242 = vmatprep.subr.bf16.mxu0 0
  %243 = vmatpush2.bf16.msra.mxu0 0
  %244 = vmatprep.subr.bf16.mxu0 0
  %245 = vmatpush2.bf16.msra.mxu0 0
  %246 = vmatprep.mubr.bf16.mxu0 0
  %247 = vmatmul.mubr.bf16.gmra.mxu0 %v198
  %v248 = vpop.f32.mrf.mxu0
  %v249 = vadd.f32 %v212, %v248
  %v250 = vpop.f32.mrf.mxu0
  %v251 = vpop.f32.mrf.mxu0
  %v252 = vadd.f32 %v212, %v251
  %v253 = vpop.f32.mrf.mxu0
  %254 = vdwg.mxu0
  %v255 = vld [vmem:[%s12] sm:$0xff]
  %v256 = vpack.c.bf16 %v252, %v249
  %v257 = vpack.c.bf16 %v255, %v255
  %v258 = vld [vmem:[%s13] sm:$0x1]
  %v260 = vlaneseq
  %v261 = vshrl.u32 %v260, 7
  %v262 = vsub.s32 0, %v261
  %v263 = vrot.slane %v258, %v262
  %v266 = vsel %vm77, %v256, 0
  %v269 = vsel %vm81, %v257, 0
  %271 = vmatprep.subr.bf16.mxu0 0
  %272 = vmatpush1.bf16.msra.mxu0 0
  %273 = vmatprep.subr.bf16.mxu0 0
  %274 = vmatpush1.bf16.msra.mxu0 0
  %275 = vmatprep.subr.bf16.mxu0 0
  %276 = vmatpush1.bf16.msra.mxu0 0
  %277 = vmatprep.subr.bf16.mxu0 0
  %278 = vmatpush1.bf16.msra.mxu0 0
  %279 = vmatprep.subr.bf16.mxu0 0
  %280 = vmatpush1.bf16.msra.mxu0 0
  %281 = vmatprep.subr.bf16.mxu0 0
  %282 = vmatpush1.bf16.msra.mxu0 0
  %283 = vmatprep.subr.bf16.mxu0 0
  %284 = vmatpush1.bf16.msra.mxu0 0
  %285 = vmatprep.subr.bf16.mxu0 0
  %286 = vmatpush1.bf16.msra.mxu0 %v269
  %287 = vmatprep.subr.bf16.mxu0 0
  %288 = vmatpush2.bf16.msra.mxu0 0
  %289 = vmatprep.subr.bf16.mxu0 0
  %290 = vmatpush2.bf16.msra.mxu0 0
  %291 = vmatprep.subr.bf16.mxu0 0
  %292 = vmatpush2.bf16.msra.mxu0 0
  %293 = vmatprep.subr.bf16.mxu0 0
  %294 = vmatpush2.bf16.msra.mxu0 0
  %295 = vmatprep.subr.bf16.mxu0 0
  %296 = vmatpush2.bf16.msra.mxu0 0
  %297 = vmatprep.subr.bf16.mxu0 0
  %298 = vmatpush2.bf16.msra.mxu0 0
  %299 = vmatprep.subr.bf16.mxu0 0
  %300 = vmatpush2.bf16.msra.mxu0 0
  %301 = vmatprep.subr.bf16.mxu0 0
  %302 = vmatpush2.bf16.msra.mxu0 0
  %303 = vmatprep.mubr.bf16.mxu0 0
  %304 = vmatmul.mubr.bf16.gmra.mxu0 %v266
  %v305 = vpop.f32.mrf.mxu0
  %v306 = vadd.f32 %v263, %v305
  %v307 = vpop.f32.mrf.mxu0
  %v308 = vpop.f32.mrf.mxu0
  %v309 = vadd.f32 %v263, %v308
  %v310 = vpop.f32.mrf.mxu0
  %311 = vdwg.mxu0
  %v312 = vmax.f32 %v306, 0.0
  %v313 = vmax.f32 %v309, 0.0
  %v314 = vld [vmem:[%s14] sm:$0xff]
  %v315 = vld [vmem:[%s14 + $0x8] sm:$0xff]
  %v316 = vld [vmem:[%s14 + $0x10] sm:$0xff]
  %v317 = vld [vmem:[%s14 + $0x18] sm:$0xff]
  %v318 = vld [vmem:[%s14 + $0x20] sm:$0xff]
  %v319 = vld [vmem:[%s14 + $0x28] sm:$0xff]
  %v320 = vld [vmem:[%s14 + $0x30] sm:$0xff]
  %v321 = vld [vmem:[%s14 + $0x38] sm:$0xff]
  %v322 = vld [vmem:[%s14 + $0x40] sm:$0xff]
  %v323 = vld [vmem:[%s14 + $0x48] sm:$0xff]
  %v324 = vld [vmem:[%s14 + $0x50] sm:$0xff]
  %v325 = vld [vmem:[%s14 + $0x58] sm:$0xff]
  %v326 = vld [vmem:[%s14 + $0x60] sm:$0xff]
  %v327 = vld [vmem:[%s14 + $0x68] sm:$0xff]
  %v328 = vld [vmem:[%s14 + $0x70] sm:$0xff]
  %v329 = vld [vmem:[%s14 + $0x78] sm:$0xff]
  %v330 = vpack.c.bf16 %v313, %v312
  %v331 = vpack.c.bf16 %v315, %v314
  %v332 = vpack.c.bf16 %v317, %v316
  %v333 = vpack.c.bf16 %v319, %v318
  %v334 = vpack.c.bf16 %v321, %v320
  %v335 = vpack.c.bf16 %v323, %v322
  %v336 = vpack.c.bf16 %v325, %v324
  %v337 = vpack.c.bf16 %v327, %v326
  %v338 = vpack.c.bf16 %v329, %v328
  %v339 = vld [vmem:[%s15] sm:$0x1]
  %v341 = vlaneseq
  %v342 = vshrl.u32 %v341, 7
  %v343 = vsub.s32 0, %v342
  %v344 = vrot.slane %v339, %v343
  %346 = vmatprep.subr.bf16.mxu0 0
  %347 = vmatpush1.bf16.msra.mxu0 %v338
  %348 = vmatprep.subr.bf16.mxu0 0
  %349 = vmatpush1.bf16.msra.mxu0 %v337
  %350 = vmatprep.subr.bf16.mxu0 0
  %351 = vmatpush1.bf16.msra.mxu0 %v336
  %352 = vmatprep.subr.bf16.mxu0 0
  %353 = vmatpush1.bf16.msra.mxu0 %v335
  %354 = vmatprep.subr.bf16.mxu0 0
  %355 = vmatpush1.bf16.msra.mxu0 %v334
  %356 = vmatprep.subr.bf16.mxu0 0
  %357 = vmatpush1.bf16.msra.mxu0 %v333
  %358 = vmatprep.subr.bf16.mxu0 0
  %359 = vmatpush1.bf16.msra.mxu0 %v332
  %360 = vmatprep.subr.bf16.mxu0 0
  %361 = vmatpush1.bf16.msra.mxu0 %v331
  %362 = vmatprep.subr.bf16.mxu0 0
  %363 = vmatpush2.bf16.msra.mxu0 0
  %364 = vmatprep.subr.bf16.mxu0 0
  %365 = vmatpush2.bf16.msra.mxu0 0
  %366 = vmatprep.subr.bf16.mxu0 0
  %367 = vmatpush2.bf16.msra.mxu0 0
  %368 = vmatprep.subr.bf16.mxu0 0
  %369 = vmatpush2.bf16.msra.mxu0 0
  %370 = vmatprep.subr.bf16.mxu0 0
  %371 = vmatpush2.bf16.msra.mxu0 0
  %372 = vmatprep.subr.bf16.mxu0 0
  %373 = vmatpush2.bf16.msra.mxu0 0
  %374 = vmatprep.subr.bf16.mxu0 0
  %375 = vmatpush2.bf16.msra.mxu0 0
  %376 = vmatprep.subr.bf16.mxu0 0
  %377 = vmatpush2.bf16.msra.mxu0 0
  %378 = vmatprep.mubr.bf16.mxu0 0
  %379 = vmatmul.mubr.bf16.gmra.mxu0 %v330
  %v380 = vpop.f32.mrf.mxu0
  %v381 = vadd.f32 %v344, %v380
  %v382 = vpop.f32.mrf.mxu0
  %v383 = vpop.f32.mrf.mxu0
  %v384 = vadd.f32 %v344, %v383
  %v385 = vpop.f32.mrf.mxu0
  %386 = vdwg.mxu0
  %v387 = vld [vmem:[%s17] sm:$0xff]
  %v388 = vpack.c.bf16 %v384, %v381
  %v389 = vpack.c.bf16 %v387, %v387
  %v391 = vsel %vm77, %v388, 0
  %v394 = vsel %vm81, %v389, 0
  %396 = vmatprep.subr.bf16.mxu0 0
  %397 = vmatpush1.bf16.msra.mxu0 0
  %398 = vmatprep.subr.bf16.mxu0 0
  %399 = vmatpush1.bf16.msra.mxu0 0
  %400 = vmatprep.subr.bf16.mxu0 0
  %401 = vmatpush1.bf16.msra.mxu0 0
  %402 = vmatprep.subr.bf16.mxu0 0
  %403 = vmatpush1.bf16.msra.mxu0 0
  %404 = vmatprep.subr.bf16.mxu0 0
  %405 = vmatpush1.bf16.msra.mxu0 0
  %406 = vmatprep.subr.bf16.mxu0 0
  %407 = vmatpush1.bf16.msra.mxu0 0
  %408 = vmatprep.subr.bf16.mxu0 0
  %409 = vmatpush1.bf16.msra.mxu0 0
  %410 = vmatprep.subr.bf16.mxu0 0
  %411 = vmatpush1.bf16.msra.mxu0 %v394
  %412 = vmatprep.subr.bf16.mxu0 0
  %413 = vmatpush2.bf16.msra.mxu0 0
  %414 = vmatprep.subr.bf16.mxu0 0
  %415 = vmatpush2.bf16.msra.mxu0 0
  %416 = vmatprep.subr.bf16.mxu0 0
  %417 = vmatpush2.bf16.msra.mxu0 0
  %418 = vmatprep.subr.bf16.mxu0 0
  %419 = vmatpush2.bf16.msra.mxu0 0
  %420 = vmatprep.subr.bf16.mxu0 0
  %421 = vmatpush2.bf16.msra.mxu0 0
  %422 = vmatprep.subr.bf16.mxu0 0
  %423 = vmatpush2.bf16.msra.mxu0 0
  %424 = vmatprep.subr.bf16.mxu0 0
  %425 = vmatpush2.bf16.msra.mxu0 0
  %426 = vmatprep.subr.bf16.mxu0 0
  %427 = vmatpush2.bf16.msra.mxu0 0
  %428 = vmatprep.mubr.bf16.mxu0 0
  %429 = vmatmul.mubr.bf16.gmra.mxu0 %v391
  %v430 = vpop.f32.mrf.mxu0
  %v431 = vadd.f32 0.0, %v430
  %v432 = vpop.f32.mrf.mxu0
  %v433 = vpop.f32.mrf.mxu0
  %v434 = vadd.f32 0.0, %v433
  %v435 = vpop.f32.mrf.mxu0
  %436 = vdwg.mxu0
  %vm437 = vcmask 80896
  %v439 = vsel %vm437, %v65, 0
  %vm441 = vcmask 1044480
  %v442 = vsel %vm441, %v256, 0
  %444 = vmatprep.subr.bf16.mxu0 0
  %445 = vmatpush1.bf16.msra.mxu0 0
  %446 = vmatprep.subr.bf16.mxu0 0
  %447 = vmatpush1.bf16.msra.mxu0 0
  %448 = vmatprep.subr.bf16.mxu0 0
  %449 = vmatpush1.bf16.msra.mxu0 0
  %450 = vmatprep.subr.bf16.mxu0 0
  %451 = vmatpush1.bf16.msra.mxu0 0
  %452 = vmatprep.subr.bf16.mxu0 0
  %453 = vmatpush1.bf16.msra.mxu0 0
  %454 = vmatprep.subr.bf16.mxu0 0
  %455 = vmatpush1.bf16.msra.mxu0 0
  %456 = vmatprep.subr.bf16.mxu0 0
  %457 = vmatpush1.bf16.msra.mxu0 0
  %458 = vmatprep.subr.bf16.mxu0 0
  %459 = vmatpush1.bf16.msra.mxu0 %v442
  %460 = vmatprep.subr.bf16.mxu0 0
  %461 = vmatpush2.bf16.msra.mxu0 0
  %462 = vmatprep.subr.bf16.mxu0 0
  %463 = vmatpush2.bf16.msra.mxu0 0
  %464 = vmatprep.subr.bf16.mxu0 0
  %465 = vmatpush2.bf16.msra.mxu0 0
  %466 = vmatprep.subr.bf16.mxu0 0
  %467 = vmatpush2.bf16.msra.mxu0 0
  %468 = vmatprep.subr.bf16.mxu0 0
  %469 = vmatpush2.bf16.msra.mxu0 0
  %470 = vmatprep.subr.bf16.mxu0 0
  %471 = vmatpush2.bf16.msra.mxu0 0
  %472 = vmatprep.subr.bf16.mxu0 0
  %473 = vmatpush2.bf16.msra.mxu0 0
  %474 = vmatprep.subr.bf16.mxu0 0
  %475 = vmatpush2.bf16.msra.mxu0 0
  %476 = vmatprep.mubr.bf16.mxu0 0
  %477 = vmatmul.mubr.bf16.gmra.mxu0 %v439
  %v478 = vpop.f32.mrf.mxu0
  %v479 = vadd.f32 0.0, %v478
  %v480 = vpop.f32.mrf.mxu0
  %v481 = vpop.f32.mrf.mxu0
  %v482 = vadd.f32 0.0, %v481
  %v483 = vpop.f32.mrf.mxu0
  %484 = vdwg.mxu0
  %v485 = vld [vmem:[%s18] sm:$0x1]
  %v486 = vld [vmem:[%s8] sm:$0xff]
  %v487 = vld [vmem:[%s8 + $0x8] sm:$0xff]
  %v488 = vpack.c.bf16 %v482, %v479
  %v489 = vpack.c.bf16 %v486, %v486
  %v490 = vpack.c.bf16 %v487, %v487
  %v491 = vld [vmem:[%s9] sm:$0x3]
  %v493 = vlaneseq
  %v494 = vshrl.u32 %v493, 7
  %v495 = vsub.s32 0, %v494
  %v496 = vrot.slane %v491, %v495
  %v497 = vlaneseq
  %v498 = vshrl.u32 %v497, 7
  %v499 = vsub.s32 1, %v498
  %v500 = vrot.slane %v491, %v499
  %v504 = vsel %vm77, %v488, 0
  %v507 = vsel %vm81, %v489, 0
  %v510 = vsel %vm81, %v490, 0
  %512 = vmatprep.subr.bf16.mxu0 0
  %513 = vmatpush1.bf16.msra.mxu0 0
  %514 = vmatprep.subr.bf16.mxu0 0
  %515 = vmatpush1.bf16.msra.mxu0 0
  %516 = vmatprep.subr.bf16.mxu0 0
  %517 = vmatpush1.bf16.msra.mxu0 0
  %518 = vmatprep.subr.bf16.mxu0 0
  %519 = vmatpush1.bf16.msra.mxu0 0
  %520 = vmatprep.subr.bf16.mxu0 0
  %521 = vmatpush1.bf16.msra.mxu0 0
  %522 = vmatprep.subr.bf16.mxu0 0
  %523 = vmatpush1.bf16.msra.mxu0 0
  %524 = vmatprep.subr.bf16.mxu0 0
  %525 = vmatpush1.bf16.msra.mxu0 0
  %526 = vmatprep.subr.bf16.mxu0 %v510
  %527 = vmatpush1.bf16.msra.mxu0 %v507
  %528 = vmatprep.subr.bf16.mxu0 0
  %529 = vmatpush2.bf16.msra.mxu0 0
  %530 = vmatprep.subr.bf16.mxu0 0
  %531 = vmatpush2.bf16.msra.mxu0 0
  %532 = vmatprep.subr.bf16.mxu0 0
  %533 = vmatpush2.bf16.msra.mxu0 0
  %534 = vmatprep.subr.bf16.mxu0 0
  %535 = vmatpush2.bf16.msra.mxu0 0
  %536 = vmatprep.subr.bf16.mxu0 0
  %537 = vmatpush2.bf16.msra.mxu0 0
  %538 = vmatprep.subr.bf16.mxu0 0
  %539 = vmatpush2.bf16.msra.mxu0 0
  %540 = vmatprep.subr.bf16.mxu0 0
  %541 = vmatpush2.bf16.msra.mxu0 0
  %542 = vmatprep.subr.bf16.mxu0 0
  %543 = vmatpush2.bf16.msra.mxu0 0
  %544 = vmatprep.mubr.bf16.mxu0 0
  %545 = vmatmul.mubr.bf16.gmra.mxu0 %v504
  %v546 = vpop.f32.mrf.mxu0
  %v547 = vadd.f32 %v496, %v546
  %v548 = vpop.f32.mrf.mxu0
  %v549 = vadd.f32 %v500, %v548
  %v550 = vpop.f32.mrf.mxu0
  %v551 = vadd.f32 %v496, %v550
  %v552 = vpop.f32.mrf.mxu0
  %v553 = vadd.f32 %v500, %v552
  %554 = vdwg.mxu0
  %v555 = vld [vmem:[%s10] sm:$0xff]
  %v556 = vld [vmem:[%s10 + $0x8] sm:$0xff]
  %v557 = vld [vmem:[%s10 + $0x10] sm:$0xff]
  %v558 = vld [vmem:[%s10 + $0x18] sm:$0xff]
  %v559 = vld [vmem:[%s10 + $0x20] sm:$0xff]
  %v560 = vld [vmem:[%s10 + $0x28] sm:$0xff]
  %v561 = vld [vmem:[%s10 + $0x30] sm:$0xff]
  %v562 = vld [vmem:[%s10 + $0x38] sm:$0xff]
  %v563 = vld [vmem:[%s10 + $0x40] sm:$0xff]
  %v564 = vld [vmem:[%s10 + $0x48] sm:$0xff]
  %v565 = vld [vmem:[%s10 + $0x50] sm:$0xff]
  %v566 = vld [vmem:[%s10 + $0x58] sm:$0xff]
  %v567 = vld [vmem:[%s10 + $0x60] sm:$0xff]
  %v568 = vld [vmem:[%s10 + $0x68] sm:$0xff]
  %v569 = vld [vmem:[%s10 + $0x70] sm:$0xff]
  %v570 = vld [vmem:[%s10 + $0x78] sm:$0xff]
  %v571 = vld [vmem:[%s10 + $0x80] sm:$0xff]
  %v572 = vld [vmem:[%s10 + $0x88] sm:$0xff]
  %v573 = vld [vmem:[%s10 + $0x90] sm:$0xff]
  %v574 = vld [vmem:[%s10 + $0x98] sm:$0xff]
  %v575 = vld [vmem:[%s10 + $0xa0] sm:$0xff]
  %v576 = vld [vmem:[%s10 + $0xa8] sm:$0xff]
  %v577 = vld [vmem:[%s10 + $0xb0] sm:$0xff]
  %v578 = vld [vmem:[%s10 + $0xb8] sm:$0xff]
  %v579 = vpack.c.bf16 %v551, %v547
  %v580 = vpack.c.bf16 %v553, %v549
  %v581 = vpack.c.bf16 %v556, %v555
  %v582 = vpack.c.bf16 %v558, %v557
  %v583 = vpack.c.bf16 %v560, %v559
  %v584 = vpack.c.bf16 %v562, %v561
  %v585 = vpack.c.bf16 %v564, %v563
  %v586 = vpack.c.bf16 %v566, %v565
  %v587 = vpack.c.bf16 %v568, %v567
  %v588 = vpack.c.bf16 %v570, %v569
  %v589 = vpack.c.bf16 %v572, %v571
  %v590 = vpack.c.bf16 %v574, %v573
  %v591 = vpack.c.bf16 %v576, %v575
  %v592 = vpack.c.bf16 %v578, %v577
  %vm593 = vcmask 523264
  %v595 = vsel %vm593, %v580, 0
  %597 = vmatprep.subr.bf16.mxu0 0
  %598 = vmatpush1.bf16.msra.mxu0 %v588
  %599 = vmatprep.subr.bf16.mxu0 0
  %600 = vmatpush1.bf16.msra.mxu0 %v587
  %601 = vmatprep.subr.bf16.mxu0 0
  %602 = vmatpush1.bf16.msra.mxu0 %v586
  %603 = vmatprep.subr.bf16.mxu0 0
  %604 = vmatpush1.bf16.msra.mxu0 %v585
  %605 = vmatprep.subr.bf16.mxu0 0
  %606 = vmatpush1.bf16.msra.mxu0 %v584
  %607 = vmatprep.subr.bf16.mxu0 0
  %608 = vmatpush1.bf16.msra.mxu0 %v583
  %609 = vmatprep.subr.bf16.mxu0 0
  %610 = vmatpush1.bf16.msra.mxu0 %v582
  %611 = vmatprep.subr.bf16.mxu0 0
  %612 = vmatpush1.bf16.msra.mxu0 %v581
  %613 = vmatprep.subr.bf16.mxu0 0
  %614 = vmatpush2.bf16.msra.mxu0 0
  %615 = vmatprep.subr.bf16.mxu0 0
  %616 = vmatpush2.bf16.msra.mxu0 0
  %617 = vmatprep.subr.bf16.mxu0 0
  %618 = vmatpush2.bf16.msra.mxu0 0
  %619 = vmatprep.subr.bf16.mxu0 0
  %620 = vmatpush2.bf16.msra.mxu0 0
  %621 = vmatprep.subr.bf16.mxu0 0
  %622 = vmatpush2.bf16.msra.mxu0 %v592
  %623 = vmatprep.subr.bf16.mxu0 0
  %624 = vmatpush2.bf16.msra.mxu0 %v591
  %625 = vmatprep.subr.bf16.mxu0 0
  %626 = vmatpush2.bf16.msra.mxu0 %v590
  %627 = vmatprep.subr.bf16.mxu0 0
  %628 = vmatpush2.bf16.msra.mxu0 %v589
  %629 = vmatprep.mubr.bf16.mxu0 %v595
  %630 = vmatmul.mubr.bf16.gmra.mxu0 %v579
  %v631 = vpop.f32.mrf.mxu0
  %v632 = vadd.f32 0.0, %v631
  %v633 = vpop.f32.mrf.mxu0
  %v634 = vpop.f32.mrf.mxu0
  %v635 = vadd.f32 0.0, %v634
  %v636 = vpop.f32.mrf.mxu0
  %637 = vdwg.mxu0
  %v638 = vpack.c.bf16 %v635, %v632
  %v639 = vld [vmem:[%s11] sm:$0x1]
  %v641 = vlaneseq
  %v642 = vshrl.u32 %v641, 7
  %v643 = vsub.s32 0, %v642
  %v644 = vrot.slane %v639, %v643
  %v647 = vsel %vm441, %v638, 0
  %649 = vmatprep.subr.bf16.mxu0 0
  %650 = vmatpush1.bf16.msra.mxu0 0
  %651 = vmatprep.subr.bf16.mxu0 0
  %652 = vmatpush1.bf16.msra.mxu0 0
  %653 = vmatprep.subr.bf16.mxu0 0
  %654 = vmatpush1.bf16.msra.mxu0 0
  %655 = vmatprep.subr.bf16.mxu0 0
  %656 = vmatpush1.bf16.msra.mxu0 0
  %657 = vmatprep.subr.bf16.mxu0 0
  %658 = vmatpush1.bf16.msra.mxu0 0
  %659 = vmatprep.subr.bf16.mxu0 0
  %660 = vmatpush1.bf16.msra.mxu0 0
  %661 = vmatprep.subr.bf16.mxu0 0
  %662 = vmatpush1.bf16.msra.mxu0 0
  %663 = vmatprep.subr.bf16.mxu0 0
  %664 = vmatpush1.bf16.msra.mxu0 %v647
  %665 = vmatprep.subr.bf16.mxu0 0
  %666 = vmatpush2.bf16.msra.mxu0 0
  %667 = vmatprep.subr.bf16.mxu0 0
  %668 = vmatpush2.bf16.msra.mxu0 0
  %669 = vmatprep.subr.bf16.mxu0 0
  %670 = vmatpush2.bf16.msra.mxu0 0
  %671 = vmatprep.subr.bf16.mxu0 0
  %672 = vmatpush2.bf16.msra.mxu0 0
  %673 = vmatprep.subr.bf16.mxu0 0
  %674 = vmatpush2.bf16.msra.mxu0 0
  %675 = vmatprep.subr.bf16.mxu0 0
  %676 = vmatpush2.bf16.msra.mxu0 0
  %677 = vmatprep.subr.bf16.mxu0 0
  %678 = vmatpush2.bf16.msra.mxu0 0
  %679 = vmatprep.subr.bf16.mxu0 0
  %680 = vmatpush2.bf16.msra.mxu0 0
  %681 = vmatprep.mubr.bf16.mxu0 0
  %682 = vmatmul.mubr.bf16.gmra.mxu0 %v439
  %v683 = vpop.f32.mrf.mxu0
  %v684 = vadd.f32 %v644, %v683
  %v685 = vpop.f32.mrf.mxu0
  %v686 = vpop.f32.mrf.mxu0
  %v687 = vadd.f32 %v644, %v686
  %v688 = vpop.f32.mrf.mxu0
  %689 = vdwg.mxu0
  %v690 = vld [vmem:[%s16] sm:$0xff]
  %v691 = vpack.c.bf16 %v687, %v684
  %v692 = vpack.c.bf16 %v690, %v690
  %v694 = vsel %vm77, %v691, 0
  %v697 = vsel %vm81, %v692, 0
  %699 = vmatprep.subr.bf16.mxu0 0
  %700 = vmatpush1.bf16.msra.mxu0 0
  %701 = vmatprep.subr.bf16.mxu0 0
  %702 = vmatpush1.bf16.msra.mxu0 0
  %703 = vmatprep.subr.bf16.mxu0 0
  %704 = vmatpush1.bf16.msra.mxu0 0
  %705 = vmatprep.subr.bf16.mxu0 0
  %706 = vmatpush1.bf16.msra.mxu0 0
  %707 = vmatprep.subr.bf16.mxu0 0
  %708 = vmatpush1.bf16.msra.mxu0 0
  %709 = vmatprep.subr.bf16.mxu0 0
  %710 = vmatpush1.bf16.msra.mxu0 0
  %711 = vmatprep.subr.bf16.mxu0 0
  %712 = vmatpush1.bf16.msra.mxu0 0
  %713 = vmatprep.subr.bf16.mxu0 0
  %714 = vmatpush1.bf16.msra.mxu0 %v697
  %715 = vmatprep.subr.bf16.mxu0 0
  %716 = vmatpush2.bf16.msra.mxu0 0
  %717 = vmatprep.subr.bf16.mxu0 0
  %718 = vmatpush2.bf16.msra.mxu0 0
  %719 = vmatprep.subr.bf16.mxu0 0
  %720 = vmatpush2.bf16.msra.mxu0 0
  %721 = vmatprep.subr.bf16.mxu0 0
  %722 = vmatpush2.bf16.msra.mxu0 0
  %723 = vmatprep.subr.bf16.mxu0 0
  %724 = vmatpush2.bf16.msra.mxu0 0
  %725 = vmatprep.subr.bf16.mxu0 0
  %726 = vmatpush2.bf16.msra.mxu0 0
  %727 = vmatprep.subr.bf16.mxu0 0
  %728 = vmatpush2.bf16.msra.mxu0 0
  %729 = vmatprep.subr.bf16.mxu0 0
  %730 = vmatpush2.bf16.msra.mxu0 0
  %731 = vmatprep.mubr.bf16.mxu0 0
  %732 = vmatmul.mubr.bf16.gmra.mxu0 %v694
  %v733 = vpop.f32.mrf.mxu0
  %v734 = vadd.f32 %v431, %v733
  %v735 = vpop.f32.mrf.mxu0
  %v736 = vpop.f32.mrf.mxu0
  %v737 = vadd.f32 %v434, %v736
  %v738 = vpop.f32.mrf.mxu0
  %739 = vdwg.mxu0
  %v741 = vlaneseq
  %v742 = vshrl.u32 %v741, 7
  %v743 = vsub.s32 0, %v742
  %v744 = vrot.slane %v485, %v743
  %v746 = vadd.f32 %v734, %v744
  %v747 = vadd.f32 %v737, %v744
  %748 = vst.msk [vmem:[%s19] sm:$0xff] %vm77, %v746
  %vm749 = vcmask 58368
  %750 = vst.msk [vmem:[%s19 + $0x8] sm:$0x3] %vm749, %v747
  %s751 = scalar_lea.vmem %s8, 16
  %v752 = vld [vmem:[%s751] sm:$0xff]
  %v753 = vld [vmem:[%s751 + $0x8] sm:$0xff]
  %v754 = vpack.c.bf16 %v752, %v752
  %v755 = vpack.c.bf16 %v753, %v753
  %s756 = scalar_lea.vmem %s9, 2
  %v757 = vld [vmem:[%s756] sm:$0x3]
  %v759 = vlaneseq
  %v760 = vshrl.u32 %v759, 7
  %v761 = vsub.s32 0, %v760
  %v762 = vrot.slane %v757, %v761
  %v763 = vlaneseq
  %v764 = vshrl.u32 %v763, 7
  %v765 = vsub.s32 1, %v764
  %v766 = vrot.slane %v757, %v765
  %v770 = vsel %vm81, %v754, 0
  %v773 = vsel %vm81, %v755, 0
  %775 = vmatprep.subr.bf16.mxu0 0
  %776 = vmatpush1.bf16.msra.mxu0 0
  %777 = vmatprep.subr.bf16.mxu0 0
  %778 = vmatpush1.bf16.msra.mxu0 0
  %779 = vmatprep.subr.bf16.mxu0 0
  %780 = vmatpush1.bf16.msra.mxu0 0
  %781 = vmatprep.subr.bf16.mxu0 0
  %782 = vmatpush1.bf16.msra.mxu0 0
  %783 = vmatprep.subr.bf16.mxu0 0
  %784 = vmatpush1.bf16.msra.mxu0 0
  %785 = vmatprep.subr.bf16.mxu0 0
  %786 = vmatpush1.bf16.msra.mxu0 0
  %787 = vmatprep.subr.bf16.mxu0 0
  %788 = vmatpush1.bf16.msra.mxu0 0
  %789 = vmatprep.subr.bf16.mxu0 %v773
  %790 = vmatpush1.bf16.msra.mxu0 %v770
  %791 = vmatprep.subr.bf16.mxu0 0
  %792 = vmatpush2.bf16.msra.mxu0 0
  %793 = vmatprep.subr.bf16.mxu0 0
  %794 = vmatpush2.bf16.msra.mxu0 0
  %795 = vmatprep.subr.bf16.mxu0 0
  %796 = vmatpush2.bf16.msra.mxu0 0
  %797 = vmatprep.subr.bf16.mxu0 0
  %798 = vmatpush2.bf16.msra.mxu0 0
  %799 = vmatprep.subr.bf16.mxu0 0
  %800 = vmatpush2.bf16.msra.mxu0 0
  %801 = vmatprep.subr.bf16.mxu0 0
  %802 = vmatpush2.bf16.msra.mxu0 0
  %803 = vmatprep.subr.bf16.mxu0 0
  %804 = vmatpush2.bf16.msra.mxu0 0
  %805 = vmatprep.subr.bf16.mxu0 0
  %806 = vmatpush2.bf16.msra.mxu0 0
  %807 = vmatprep.mubr.bf16.mxu0 0
  %808 = vmatmul.mubr.bf16.gmra.mxu0 %v504
  %v809 = vpop.f32.mrf.mxu0
  %v810 = vadd.f32 %v762, %v809
  %v811 = vpop.f32.mrf.mxu0
  %v812 = vadd.f32 %v766, %v811
  %v813 = vpop.f32.mrf.mxu0
  %v814 = vadd.f32 %v762, %v813
  %v815 = vpop.f32.mrf.mxu0
  %v816 = vadd.f32 %v766, %v815
  %817 = vdwg.mxu0
  %s818 = scalar_lea.vmem %s10, 192
  %v819 = vld [vmem:[%s818] sm:$0xff]
  %v820 = vld [vmem:[%s818 + $0x8] sm:$0xff]
  %v821 = vld [vmem:[%s818 + $0x10] sm:$0xff]
  %v822 = vld [vmem:[%s818 + $0x18] sm:$0xff]
  %v823 = vld [vmem:[%s818 + $0x20] sm:$0xff]
  %v824 = vld [vmem:[%s818 + $0x28] sm:$0xff]
  %v825 = vld [vmem:[%s818 + $0x30] sm:$0xff]
  %v826 = vld [vmem:[%s818 + $0x38] sm:$0xff]
  %v827 = vld [vmem:[%s818 + $0x40] sm:$0xff]
  %v828 = vld [vmem:[%s818 + $0x48] sm:$0xff]
  %v829 = vld [vmem:[%s818 + $0x50] sm:$0xff]
  %v830 = vld [vmem:[%s818 + $0x58] sm:$0xff]
  %v831 = vld [vmem:[%s818 + $0x60] sm:$0xff]
  %v832 = vld [vmem:[%s818 + $0x68] sm:$0xff]
  %v833 = vld [vmem:[%s818 + $0x70] sm:$0xff]
  %v834 = vld [vmem:[%s818 + $0x78] sm:$0xff]
  %v835 = vld [vmem:[%s818 + $0x80] sm:$0xff]
  %v836 = vld [vmem:[%s818 + $0x88] sm:$0xff]
  %v837 = vld [vmem:[%s818 + $0x90] sm:$0xff]
  %v838 = vld [vmem:[%s818 + $0x98] sm:$0xff]
  %v839 = vld [vmem:[%s818 + $0xa0] sm:$0xff]
  %v840 = vld [vmem:[%s818 + $0xa8] sm:$0xff]
  %v841 = vld [vmem:[%s818 + $0xb0] sm:$0xff]
  %v842 = vld [vmem:[%s818 + $0xb8] sm:$0xff]
  %v843 = vpack.c.bf16 %v814, %v810
  %v844 = vpack.c.bf16 %v816, %v812
  %v845 = vpack.c.bf16 %v820, %v819
  %v846 = vpack.c.bf16 %v822, %v821
  %v847 = vpack.c.bf16 %v824, %v823
  %v848 = vpack.c.bf16 %v826, %v825
  %v849 = vpack.c.bf16 %v828, %v827
  %v850 = vpack.c.bf16 %v830, %v829
  %v851 = vpack.c.bf16 %v832, %v831
  %v852 = vpack.c.bf16 %v834, %v833
  %v853 = vpack.c.bf16 %v836, %v835
  %v854 = vpack.c.bf16 %v838, %v837
  %v855 = vpack.c.bf16 %v840, %v839
  %v856 = vpack.c.bf16 %v842, %v841
  %v858 = vsel %vm593, %v844, 0
  %860 = vmatprep.subr.bf16.mxu0 0
  %861 = vmatpush1.bf16.msra.mxu0 %v852
  %862 = vmatprep.subr.bf16.mxu0 0
  %863 = vmatpush1.bf16.msra.mxu0 %v851
  %864 = vmatprep.subr.bf16.mxu0 0
  %865 = vmatpush1.bf16.msra.mxu0 %v850
  %866 = vmatprep.subr.bf16.mxu0 0
  %867 = vmatpush1.bf16.msra.mxu0 %v849
  %868 = vmatprep.subr.bf16.mxu0 0
  %869 = vmatpush1.bf16.msra.mxu0 %v848
  %870 = vmatprep.subr.bf16.mxu0 0
  %871 = vmatpush1.bf16.msra.mxu0 %v847
  %872 = vmatprep.subr.bf16.mxu0 0
  %873 = vmatpush1.bf16.msra.mxu0 %v846
  %874 = vmatprep.subr.bf16.mxu0 0
  %875 = vmatpush1.bf16.msra.mxu0 %v845
  %876 = vmatprep.subr.bf16.mxu0 0
  %877 = vmatpush2.bf16.msra.mxu0 0
  %878 = vmatprep.subr.bf16.mxu0 0
  %879 = vmatpush2.bf16.msra.mxu0 0
  %880 = vmatprep.subr.bf16.mxu0 0
  %881 = vmatpush2.bf16.msra.mxu0 0
  %882 = vmatprep.subr.bf16.mxu0 0
  %883 = vmatpush2.bf16.msra.mxu0 0
  %884 = vmatprep.subr.bf16.mxu0 0
  %885 = vmatpush2.bf16.msra.mxu0 %v856
  %886 = vmatprep.subr.bf16.mxu0 0
  %887 = vmatpush2.bf16.msra.mxu0 %v855
  %888 = vmatprep.subr.bf16.mxu0 0
  %889 = vmatpush2.bf16.msra.mxu0 %v854
  %890 = vmatprep.subr.bf16.mxu0 0
  %891 = vmatpush2.bf16.msra.mxu0 %v853
  %892 = vmatprep.mubr.bf16.mxu0 %v858
  %893 = vmatmul.mubr.bf16.gmra.mxu0 %v843
  %v894 = vpop.f32.mrf.mxu0
  %v895 = vadd.f32 0.0, %v894
  %v896 = vpop.f32.mrf.mxu0
  %v897 = vpop.f32.mrf.mxu0
  %v898 = vadd.f32 0.0, %v897
  %v899 = vpop.f32.mrf.mxu0
  %900 = vdwg.mxu0
  %v901 = vpack.c.bf16 %v898, %v895
  %s902 = scalar_lea.vmem %s11, 1
  %v903 = vld [vmem:[%s902] sm:$0x1]
  %v905 = vlaneseq
  %v906 = vshrl.u32 %v905, 7
  %v907 = vsub.s32 0, %v906
  %v908 = vrot.slane %v903, %v907
  %v911 = vsel %vm441, %v901, 0
  %913 = vmatprep.subr.bf16.mxu0 0
  %914 = vmatpush1.bf16.msra.mxu0 0
  %915 = vmatprep.subr.bf16.mxu0 0
  %916 = vmatpush1.bf16.msra.mxu0 0
  %917 = vmatprep.subr.bf16.mxu0 0
  %918 = vmatpush1.bf16.msra.mxu0 0
  %919 = vmatprep.subr.bf16.mxu0 0
  %920 = vmatpush1.bf16.msra.mxu0 0
  %921 = vmatprep.subr.bf16.mxu0 0
  %922 = vmatpush1.bf16.msra.mxu0 0
  %923 = vmatprep.subr.bf16.mxu0 0
  %924 = vmatpush1.bf16.msra.mxu0 0
  %925 = vmatprep.subr.bf16.mxu0 0
  %926 = vmatpush1.bf16.msra.mxu0 0
  %927 = vmatprep.subr.bf16.mxu0 0
  %928 = vmatpush1.bf16.msra.mxu0 %v911
  %929 = vmatprep.subr.bf16.mxu0 0
  %930 = vmatpush2.bf16.msra.mxu0 0
  %931 = vmatprep.subr.bf16.mxu0 0
  %932 = vmatpush2.bf16.msra.mxu0 0
  %933 = vmatprep.subr.bf16.mxu0 0
  %934 = vmatpush2.bf16.msra.mxu0 0
  %935 = vmatprep.subr.bf16.mxu0 0
  %936 = vmatpush2.bf16.msra.mxu0 0
  %937 = vmatprep.subr.bf16.mxu0 0
  %938 = vmatpush2.bf16.msra.mxu0 0
  %939 = vmatprep.subr.bf16.mxu0 0
  %940 = vmatpush2.bf16.msra.mxu0 0
  %941 = vmatprep.subr.bf16.mxu0 0
  %942 = vmatpush2.bf16.msra.mxu0 0
  %943 = vmatprep.subr.bf16.mxu0 0
  %944 = vmatpush2.bf16.msra.mxu0 0
  %945 = vmatprep.mubr.bf16.mxu0 0
  %946 = vmatmul.mubr.bf16.gmra.mxu0 %v439
  %v947 = vpop.f32.mrf.mxu0
  %v948 = vadd.f32 %v908, %v947
  %v949 = vpop.f32.mrf.mxu0
  %v950 = vpop.f32.mrf.mxu0
  %v951 = vadd.f32 %v908, %v950
  %v952 = vpop.f32.mrf.mxu0
  %953 = vdwg.mxu0
  %v954 = vld [vmem:[%s16] sm:$0xff]
  %v955 = vpack.c.bf16 %v951, %v948
  %v956 = vpack.c.bf16 %v954, %v954
  %v958 = vsel %vm77, %v955, 0
  %v961 = vsel %vm81, %v956, 0
  %963 = vmatprep.subr.bf16.mxu0 0
  %964 = vmatpush1.bf16.msra.mxu0 0
  %965 = vmatprep.subr.bf16.mxu0 0
  %966 = vmatpush1.bf16.msra.mxu0 0
  %967 = vmatprep.subr.bf16.mxu0 0
  %968 = vmatpush1.bf16.msra.mxu0 0
  %969 = vmatprep.subr.bf16.mxu0 0
  %970 = vmatpush1.bf16.msra.mxu0 0
  %971 = vmatprep.subr.bf16.mxu0 0
  %972 = vmatpush1.bf16.msra.mxu0 0
  %973 = vmatprep.subr.bf16.mxu0 0
  %974 = vmatpush1.bf16.msra.mxu0 0
  %975 = vmatprep.subr.bf16.mxu0 0
  %976 = vmatpush1.bf16.msra.mxu0 0
  %977 = vmatprep.subr.bf16.mxu0 0
  %978 = vmatpush1.bf16.msra.mxu0 %v961
  %979 = vmatprep.subr.bf16.mxu0 0
  %980 = vmatpush2.bf16.msra.mxu0 0
  %981 = vmatprep.subr.bf16.mxu0 0
  %982 = vmatpush2.bf16.msra.mxu0 0
  %983 = vmatprep.subr.bf16.mxu0 0
  %984 = vmatpush2.bf16.msra.mxu0 0
  %985 = vmatprep.subr.bf16.mxu0 0
  %986 = vmatpush2.bf16.msra.mxu0 0
  %987 = vmatprep.subr.bf16.mxu0 0
  %988 = vmatpush2.bf16.msra.mxu0 0
  %989 = vmatprep.subr.bf16.mxu0 0
  %990 = vmatpush2.bf16.msra.mxu0 0
  %991 = vmatprep.subr.bf16.mxu0 0
  %992 = vmatpush2.bf16.msra.mxu0 0
  %993 = vmatprep.subr.bf16.mxu0 0
  %994 = vmatpush2.bf16.msra.mxu0 0
  %995 = vmatprep.mubr.bf16.mxu0 0
  %996 = vmatmul.mubr.bf16.gmra.mxu0 %v958
  %v997 = vpop.f32.mrf.mxu0
  %v998 = vadd.f32 %v431, %v997
  %v999 = vpop.f32.mrf.mxu0
  %v1000 = vpop.f32.mrf.mxu0
  %v1001 = vadd.f32 %v434, %v1000
  %v1002 = vpop.f32.mrf.mxu0
  %1003 = vdwg.mxu0
  %v1004 = vadd.f32 %v998, %v744
  %v1005 = vadd.f32 %v1001, %v744
  %s1006 = scalar_lea.vmem %s19, 16
  %1007 = vst.msk [vmem:[%s1006] sm:$0xff] %vm77, %v1004
  %1008 = vst.msk [vmem:[%s1006 + $0x8] sm:$0x3] %vm749, %v1005
  // Predicated region
  $region78: #{gnn_forward.6} parent=0 // pred_check
    _
  $region79: #{gnn_forward.6} parent=0 // pred_check_branch
    %1010 = sbr.rel (0) target = $region81
  $region80: #{gnn_forward.6} parent=0 // pred_region
    _
  $region81: #{gnn_forward.6} parent=0 // pred_fallthru
    _
  // Predicated region
  $region82: #{gnn_forward.6} parent=0 // pred_check
    _
  $region83: #{gnn_forward.6} parent=0 // pred_check_branch
    %1012 = sbr.rel (0) target = $region85
  $region84: #{gnn_forward.6} parent=0 // pred_region
    _
  $region85: #{gnn_forward.6} parent=0 // pred_fallthru
    _

// kernel: gnn_forward.5
$region0: #{gnn_forward.5}
  #allocation0 [shape = 'u32[]', space=smem, size = 0x4, offset = 0x4, fixed_abs, tag = 'smem constant byte address 0x4 - core index']
  #allocation1 [shape = 'u32[144,128]{1,0:T(1,128)}', space=vmem, size = 0x12000, scoped, tag = 'internal scratch']
  %s0 = inlined_call_operand.vmem [shape: f32[5,2,8], index: 0, kind: input, shape index: {}]
  %s1 = inlined_call_operand.vmem [shape: f32[2,2,16], index: 1, kind: input, shape index: {}]
  %s2 = inlined_call_operand.vmem [shape: f32[8,48], index: 2, kind: input, shape index: {}]
  %s3 = inlined_call_operand.vmem [shape: f32[16,48], index: 3, kind: input, shape index: {}]
  %s4 = inlined_call_operand.vmem [shape: f32[1,48], index: 4, kind: input, shape index: {}]
  %s5 = inlined_call_operand.vmem [shape: f32[1,48], index: 5, kind: input, shape index: {}]
  %s6 = inlined_call_operand.vmem [shape: f32[16,48], index: 6, kind: input, shape index: {}]
  %s7 = inlined_call_operand.vmem [shape: f32[16,48], index: 7, kind: input, shape index: {}]
  %s8 = inlined_call_operand.vmem [shape: f32[1,48], index: 8, kind: input, shape index: {}]
  %s9 = inlined_call_operand.vmem [shape: f32[1,48], index: 9, kind: input, shape index: {}]
  %s10 = inlined_call_operand.vmem [shape: f32[5,2,16], index: 10, kind: output, shape index: {0}]
  %s11 = inlined_call_operand.hbm [shape: f32[2,2,16], index: 11, kind: output, shape index: {1}]
  %12 = xla_tuple %s10, %s11
  %s13 = sld [smem:[#allocation0]]
  $region58: #{gnn_forward.5} parent=0
    _
  %s15 = ssub.s32 1, %s13
  %s16 = scalar_select 0, %s15, %s13
  $region1: #{gnn_forward.5} parent=0
    #allocation2 [shape = 'u8[2048]{0}', space=vmem, size = 0x800, scoped, tag = 'output window, operand 1, single buffered']
    #allocation3 [shape = 's32[1]{0}', space=sflag, size = 0x4, scoped, tag = 'scoped memory for gnn_forward.5']
    %17 = vsyncpa [#allocation3], 0
    // Predicated region
    $region2: #{gnn_forward.5} parent=1 // pred_check
      _
    $region3: #{gnn_forward.5} parent=1 // pred_check_branch
      %19 = sbr.rel (0) target = $region5
    $region4: #{gnn_forward.5} parent=1 // pred_region
      _
    $region5: #{gnn_forward.5} parent=1 // pred_fallthru
      _
    // Predicated region
    $region6: #{gnn_forward.5} parent=1 // pred_check
      _
    $region7: #{gnn_forward.5} parent=1 // pred_check_branch
      %21 = sbr.rel (0) target = $region9
    $region8: #{gnn_forward.5} parent=1 // pred_region
      _
    $region9: #{gnn_forward.5} parent=1 // pred_fallthru
      _
    // Predicated region
    $region10: #{gnn_forward.5} parent=1 // pred_check
      _
    $region11: #{gnn_forward.5} parent=1 // pred_check_branch
      %23 = sbr.rel (0) target = $region13
    $region12: #{gnn_forward.5} parent=1 // pred_region
      _
    $region13: #{gnn_forward.5} parent=1 // pred_fallthru
      _
    // Predicated region
    $region14: #{gnn_forward.5} parent=1 // pred_check
      _
    $region15: #{gnn_forward.5} parent=1 // pred_check_branch
      %25 = sbr.rel (0) target = $region17
    $region16: #{gnn_forward.5} parent=1 // pred_region
      _
    $region17: #{gnn_forward.5} parent=1 // pred_fallthru
      _
    // Predicated region
    $region18: #{gnn_forward.5} parent=1 // pred_check
      _
    $region19: #{gnn_forward.5} parent=1 // pred_check_branch
      %27 = sbr.rel (0) target = $region21
    $region20: #{gnn_forward.5} parent=1 // pred_region
      _
    $region21: #{gnn_forward.5} parent=1 // pred_fallthru
      _
    // Predicated region
    $region22: #{gnn_forward.5} parent=1 // pred_check
      _
    $region23: #{gnn_forward.5} parent=1 // pred_check_branch
      %29 = sbr.rel (0) target = $region25
    $region24: #{gnn_forward.5} parent=1 // pred_region
      _
    $region25: #{gnn_forward.5} parent=1 // pred_fallthru
      _
    // Predicated region
    $region26: #{gnn_forward.5} parent=1 // pred_check
      _
    $region27: #{gnn_forward.5} parent=1 // pred_check_branch
      %31 = sbr.rel (0) target = $region29
    $region28: #{gnn_forward.5} parent=1 // pred_region
      _
    $region29: #{gnn_forward.5} parent=1 // pred_fallthru
      _
    // Predicated region
    $region30: #{gnn_forward.5} parent=1 // pred_check
      _
    $region31: #{gnn_forward.5} parent=1 // pred_check_branch
      %33 = sbr.rel (0) target = $region33
    $region32: #{gnn_forward.5} parent=1 // pred_region
      _
    $region33: #{gnn_forward.5} parent=1 // pred_fallthru
      _
    // Predicated region
    $region34: #{gnn_forward.5} parent=1 // pred_check
      _
    $region35: #{gnn_forward.5} parent=1 // pred_check_branch
      %35 = sbr.rel (0) target = $region37
    $region36: #{gnn_forward.5} parent=1 // pred_region
      _
    $region37: #{gnn_forward.5} parent=1 // pred_fallthru
      _
    // Predicated region
    $region38: #{gnn_forward.5} parent=1 // pred_check
      _
    $region39: #{gnn_forward.5} parent=1 // pred_check_branch
      %37 = sbr.rel (0) target = $region41
    $region40: #{gnn_forward.5} parent=1 // pred_region
      _
    $region41: #{gnn_forward.5} parent=1 // pred_fallthru
      _
    %v38 = vld [vmem:[%s2] sm:$0xff]
    %v39 = vld [vmem:[%s3] sm:$0xff]
    %v40 = vld [vmem:[%s3 + $0x8] sm:$0xff]
    %v41 = vld [vmem:[%s6] sm:$0xff]
    %v42 = vld [vmem:[%s6 + $0x8] sm:$0xff]
    %v43 = vld [vmem:[%s7] sm:$0xff]
    %v44 = vld [vmem:[%s7 + $0x8] sm:$0xff]
    %v45 = vld [vmem:[%s4] sm:$0x1]
    %v46 = vld [vmem:[%s5] sm:$0x1]
    %v47 = vld [vmem:[%s8] sm:$0x1]
    %v48 = vld [vmem:[%s9] sm:$0x1]
    %v49 = vld [vmem:[%s1] sm:$0x3]
    %s50 = scalar_lea.vmem %s1, 2
    %v51 = vld [vmem:[%s50] sm:$0x3]
    %v52 = vld [vmem:[%s0] sm:$0x3]
    %v54 = vlaneseq
    %v55 = vshrl.u32 %v54, 7
    %v56 = vsub.s32 0, %v55
    %v57 = vrot.slane %v45, %v56
    %vm59 = vcmask 64512
    %v61 = vsel %vm59, %v52, 0
    %63 = vmatprep.subr.mxu0 0.0
    %64 = vmatpush1.msra.mxu0 0.0
    %65 = vmatprep.subr.mxu0 0.0
    %66 = vmatpush1.msra.mxu0 0.0
    %67 = vmatprep.subr.mxu0 0.0
    %68 = vmatpush1.msra.mxu0 0.0
    %69 = vmatprep.subr.mxu0 0.0
    %70 = vmatpush1.msra.mxu0 0.0
    %71 = vmatprep.subr.mxu0 0.0
    %72 = vmatpush1.msra.mxu0 0.0
    %73 = vmatprep.subr.mxu0 0.0
    %74 = vmatpush1.msra.mxu0 0.0
    %75 = vmatprep.subr.mxu0 0.0
    %76 = vmatpush1.msra.mxu0 0.0
    %77 = vmatprep.subr.mxu0 0.0
    %78 = vmatpush1.msra.mxu0 0.0
    %79 = vmatprep.subr.mxu0 0.0
    %80 = vmatpush1.msra.mxu0 0.0
    %81 = vmatprep.subr.mxu0 0.0
    %82 = vmatpush1.msra.mxu0 0.0
    %83 = vmatprep.subr.mxu0 0.0
    %84 = vmatpush1.msra.mxu0 0.0
    %85 = vmatprep.subr.mxu0 0.0
    %86 = vmatpush1.msra.mxu0 0.0
    %87 = vmatprep.subr.mxu0 0.0
    %88 = vmatpush1.msra.mxu0 0.0
    %89 = vmatprep.subr.mxu0 0.0
    %90 = vmatpush1.msra.mxu0 0.0
    %91 = vmatprep.subr.mxu0 0.0
    %92 = vmatpush1.msra.mxu0 0.0
    %93 = vmatprep.subr.mxu0 0.0
    %94 = vmatpush1.msra.mxu0 %v38
    %95 = vmatprep.subr.mxu0 0.0
    %96 = vmatpush2.msra.mxu0 0.0
    %97 = vmatprep.subr.mxu0 0.0
    %98 = vmatpush2.msra.mxu0 0.0
    %99 = vmatprep.subr.mxu0 0.0
    %100 = vmatpush2.msra.mxu0 0.0
    %101 = vmatprep.subr.mxu0 0.0
    %102 = vmatpush2.msra.mxu0 0.0
    %103 = vmatprep.subr.mxu0 0.0
    %104 = vmatpush2.msra.mxu0 0.0
    %105 = vmatprep.subr.mxu0 0.0
    %106 = vmatpush2.msra.mxu0 0.0
    %107 = vmatprep.subr.mxu0 0.0
    %108 = vmatpush2.msra.mxu0 0.0
    %109 = vmatprep.subr.mxu0 0.0
    %110 = vmatpush2.msra.mxu0 0.0
    %111 = vmatprep.subr.mxu0 0.0
    %112 = vmatpush2.msra.mxu0 0.0
    %113 = vmatprep.subr.mxu0 0.0
    %114 = vmatpush2.msra.mxu0 0.0
    %115 = vmatprep.subr.mxu0 0.0
    %116 = vmatpush2.msra.mxu0 0.0
    %117 = vmatprep.subr.mxu0 0.0
    %118 = vmatpush2.msra.mxu0 0.0
    %119 = vmatprep.subr.mxu0 0.0
    %120 = vmatpush2.msra.mxu0 0.0
    %121 = vmatprep.subr.mxu0 0.0
    %122 = vmatpush2.msra.mxu0 0.0
    %123 = vmatprep.subr.mxu0 0.0
    %124 = vmatpush2.msra.mxu0 0.0
    %125 = vmatprep.subr.mxu0 0.0
    %126 = vmatpush2.msra.mxu0 0.0
    %127 = vmatprep.mubr.f32.mxu0 0.0
    %128 = vmatmul.mubr.f32.gmra.mxu0 %v61
    %v129 = vpop.f32.mrf.mxu0
    %v130 = vadd.f32 %v57, %v129
    %v131 = vpop.f32.mrf.mxu0
    %132 = vdwg.mxu0
    %v134 = vlaneseq
    %v135 = vshrl.u32 %v134, 7
    %v136 = vsub.s32 0, %v135
    %v137 = vrot.slane %v46, %v136
    %vm139 = vcmask 130048
    %v141 = vsel %vm139, %v49, 0
    %143 = vmatprep.subr.mxu0 0.0
    %144 = vmatpush1.msra.mxu0 0.0
    %145 = vmatprep.subr.mxu0 0.0
    %146 = vmatpush1.msra.mxu0 0.0
    %147 = vmatprep.subr.mxu0 0.0
    %148 = vmatpush1.msra.mxu0 0.0
    %149 = vmatprep.subr.mxu0 0.0
    %150 = vmatpush1.msra.mxu0 0.0
    %151 = vmatprep.subr.mxu0 0.0
    %152 = vmatpush1.msra.mxu0 0.0
    %153 = vmatprep.subr.mxu0 0.0
    %154 = vmatpush1.msra.mxu0 0.0
    %155 = vmatprep.subr.mxu0 0.0
    %156 = vmatpush1.msra.mxu0 0.0
    %157 = vmatprep.subr.mxu0 0.0
    %158 = vmatpush1.msra.mxu0 0.0
    %159 = vmatprep.subr.mxu0 0.0
    %160 = vmatpush1.msra.mxu0 0.0
    %161 = vmatprep.subr.mxu0 0.0
    %162 = vmatpush1.msra.mxu0 0.0
    %163 = vmatprep.subr.mxu0 0.0
    %164 = vmatpush1.msra.mxu0 0.0
    %165 = vmatprep.subr.mxu0 0.0
    %166 = vmatpush1.msra.mxu0 0.0
    %167 = vmatprep.subr.mxu0 0.0
    %168 = vmatpush1.msra.mxu0 0.0
    %169 = vmatprep.subr.mxu0 0.0
    %170 = vmatpush1.msra.mxu0 0.0
    %171 = vmatprep.subr.mxu0 0.0
    %172 = vmatpush1.msra.mxu0 %v40
    %173 = vmatprep.subr.mxu0 0.0
    %174 = vmatpush1.msra.mxu0 %v39
    %175 = vmatprep.subr.mxu0 0.0
    %176 = vmatpush2.msra.mxu0 0.0
    %177 = vmatprep.subr.mxu0 0.0
    %178 = vmatpush2.msra.mxu0 0.0
    %179 = vmatprep.subr.mxu0 0.0
    %180 = vmatpush2.msra.mxu0 0.0
    %181 = vmatprep.subr.mxu0 0.0
    %182 = vmatpush2.msra.mxu0 0.0
    %183 = vmatprep.subr.mxu0 0.0
    %184 = vmatpush2.msra.mxu0 0.0
    %185 = vmatprep.subr.mxu0 0.0
    %186 = vmatpush2.msra.mxu0 0.0
    %187 = vmatprep.subr.mxu0 0.0
    %188 = vmatpush2.msra.mxu0 0.0
    %189 = vmatprep.subr.mxu0 0.0
    %190 = vmatpush2.msra.mxu0 0.0
    %191 = vmatprep.subr.mxu0 0.0
    %192 = vmatpush2.msra.mxu0 0.0
    %193 = vmatprep.subr.mxu0 0.0
    %194 = vmatpush2.msra.mxu0 0.0
    %195 = vmatprep.subr.mxu0 0.0
    %196 = vmatpush2.msra.mxu0 0.0
    %197 = vmatprep.subr.mxu0 0.0
    %198 = vmatpush2.msra.mxu0 0.0
    %199 = vmatprep.subr.mxu0 0.0
    %200 = vmatpush2.msra.mxu0 0.0
    %201 = vmatprep.subr.mxu0 0.0
    %202 = vmatpush2.msra.mxu0 0.0
    %203 = vmatprep.subr.mxu0 0.0
    %204 = vmatpush2.msra.mxu0 0.0
    %205 = vmatprep.subr.mxu0 0.0
    %206 = vmatpush2.msra.mxu0 0.0
    %207 = vmatprep.mubr.f32.mxu0 0.0
    %208 = vmatmul.mubr.f32.gmra.mxu0 %v141
    %v209 = vpop.f32.mrf.mxu0
    %v210 = vadd.f32 %v137, %v209
    %v211 = vpop.f32.mrf.mxu0
    %212 = vdwg.mxu0
    %v213 = vadd.f32 %v130, %v210
    %v214 = vxor.u32 %v213, 2147483648
    %v215 = vmul.f32 %v214, 1.442695
    %v216 = vpow.pop %v215
    %v217 = vadd.f32 %v216, 1.0
    %v218 = vrcp.pop %v217
    %v219 = vmul.f32 1.0, %v218
    %221 = vrot.lane.b32.xlu0 %v210, 96
    %v222 = vpop.permute.xlu0 %221
    %v224 = vmul.f32 %v219, %v222
    %226 = vrot.lane.b32.xlu0 %v224, 32
    %v227 = vpop.permute.xlu0 %226
    %v229 = vadd.f32 %v130, %v227
    %v230 = vtanh.pop %v229
    %v231 = vsub.f32 1.0, %v219
    %233 = vrot.lane.b32.xlu0 %v230, 112
    %v234 = vpop.permute.xlu0 %233
    %v236 = vmul.f32 %v231, %v234
    %237 = vrot.lane.b32.xlu0 %v49, 16
    %v238 = vpop.permute.xlu0 %237
    %v240 = vmul.f32 %v219, %v238
    %v241 = vadd.f32 %v236, %v240
    %v243 = vlaneseq
    %v244 = vshrl.u32 %v243, 7
    %v245 = vsub.s32 0, %v244
    %v246 = vrot.slane %v47, %v245
    %249 = vrot.lane.b32.xlu0 %v241, 112
    %v250 = vpop.permute.xlu0 %249
    %v251 = vsel %vm139, %v250, 0
    %253 = vmatprep.subr.mxu0 0.0
    %254 = vmatpush1.msra.mxu0 0.0
    %255 = vmatprep.subr.mxu0 0.0
    %256 = vmatpush1.msra.mxu0 0.0
    %257 = vmatprep.subr.mxu0 0.0
    %258 = vmatpush1.msra.mxu0 0.0
    %259 = vmatprep.subr.mxu0 0.0
    %260 = vmatpush1.msra.mxu0 0.0
    %261 = vmatprep.subr.mxu0 0.0
    %262 = vmatpush1.msra.mxu0 0.0
    %263 = vmatprep.subr.mxu0 0.0
    %264 = vmatpush1.msra.mxu0 0.0
    %265 = vmatprep.subr.mxu0 0.0
    %266 = vmatpush1.msra.mxu0 0.0
    %267 = vmatprep.subr.mxu0 0.0
    %268 = vmatpush1.msra.mxu0 0.0
    %269 = vmatprep.subr.mxu0 0.0
    %270 = vmatpush1.msra.mxu0 0.0
    %271 = vmatprep.subr.mxu0 0.0
    %272 = vmatpush1.msra.mxu0 0.0
    %273 = vmatprep.subr.mxu0 0.0
    %274 = vmatpush1.msra.mxu0 0.0
    %275 = vmatprep.subr.mxu0 0.0
    %276 = vmatpush1.msra.mxu0 0.0
    %277 = vmatprep.subr.mxu0 0.0
    %278 = vmatpush1.msra.mxu0 0.0
    %279 = vmatprep.subr.mxu0 0.0
    %280 = vmatpush1.msra.mxu0 0.0
    %281 = vmatprep.subr.mxu0 0.0
    %282 = vmatpush1.msra.mxu0 %v42
    %283 = vmatprep.subr.mxu0 0.0
    %284 = vmatpush1.msra.mxu0 %v41
    %285 = vmatprep.subr.mxu0 0.0
    %286 = vmatpush2.msra.mxu0 0.0
    %287 = vmatprep.subr.mxu0 0.0
    %288 = vmatpush2.msra.mxu0 0.0
    %289 = vmatprep.subr.mxu0 0.0
    %290 = vmatpush2.msra.mxu0 0.0
    %291 = vmatprep.subr.mxu0 0.0
    %292 = vmatpush2.msra.mxu0 0.0
    %293 = vmatprep.subr.mxu0 0.0
    %294 = vmatpush2.msra.mxu0 0.0
    %295 = vmatprep.subr.mxu0 0.0
    %296 = vmatpush2.msra.mxu0 0.0
    %297 = vmatprep.subr.mxu0 0.0
    %298 = vmatpush2.msra.mxu0 0.0
    %299 = vmatprep.subr.mxu0 0.0
    %300 = vmatpush2.msra.mxu0 0.0
    %301 = vmatprep.subr.mxu0 0.0
    %302 = vmatpush2.msra.mxu0 0.0
    %303 = vmatprep.subr.mxu0 0.0
    %304 = vmatpush2.msra.mxu0 0.0
    %305 = vmatprep.subr.mxu0 0.0
    %306 = vmatpush2.msra.mxu0 0.0
    %307 = vmatprep.subr.mxu0 0.0
    %308 = vmatpush2.msra.mxu0 0.0
    %309 = vmatprep.subr.mxu0 0.0
    %310 = vmatpush2.msra.mxu0 0.0
    %311 = vmatprep.subr.mxu0 0.0
    %312 = vmatpush2.msra.mxu0 0.0
    %313 = vmatprep.subr.mxu0 0.0
    %314 = vmatpush2.msra.mxu0 0.0
    %315 = vmatprep.subr.mxu0 0.0
    %316 = vmatpush2.msra.mxu0 0.0
    %317 = vmatprep.mubr.f32.mxu0 0.0
    %318 = vmatmul.mubr.f32.gmra.mxu0 %v251
    %v319 = vpop.f32.mrf.mxu0
    %v320 = vadd.f32 %v246, %v319
    %v321 = vpop.f32.mrf.mxu0
    %322 = vdwg.mxu0
    %v324 = vlaneseq
    %v325 = vshrl.u32 %v324, 7
    %v326 = vsub.s32 0, %v325
    %v327 = vrot.slane %v48, %v326
    %v330 = vsel %vm139, %v51, 0
    %332 = vmatprep.subr.mxu0 0.0
    %333 = vmatpush1.msra.mxu0 0.0
    %334 = vmatprep.subr.mxu0 0.0
    %335 = vmatpush1.msra.mxu0 0.0
    %336 = vmatprep.subr.mxu0 0.0
    %337 = vmatpush1.msra.mxu0 0.0
    %338 = vmatprep.subr.mxu0 0.0
    %339 = vmatpush1.msra.mxu0 0.0
    %340 = vmatprep.subr.mxu0 0.0
    %341 = vmatpush1.msra.mxu0 0.0
    %342 = vmatprep.subr.mxu0 0.0
    %343 = vmatpush1.msra.mxu0 0.0
    %344 = vmatprep.subr.mxu0 0.0
    %345 = vmatpush1.msra.mxu0 0.0
    %346 = vmatprep.subr.mxu0 0.0
    %347 = vmatpush1.msra.mxu0 0.0
    %348 = vmatprep.subr.mxu0 0.0
    %349 = vmatpush1.msra.mxu0 0.0
    %350 = vmatprep.subr.mxu0 0.0
    %351 = vmatpush1.msra.mxu0 0.0
    %352 = vmatprep.subr.mxu0 0.0
    %353 = vmatpush1.msra.mxu0 0.0
    %354 = vmatprep.subr.mxu0 0.0
    %355 = vmatpush1.msra.mxu0 0.0
    %356 = vmatprep.subr.mxu0 0.0
    %357 = vmatpush1.msra.mxu0 0.0
    %358 = vmatprep.subr.mxu0 0.0
    %359 = vmatpush1.msra.mxu0 0.0
    %360 = vmatprep.subr.mxu0 0.0
    %361 = vmatpush1.msra.mxu0 %v44
    %362 = vmatprep.subr.mxu0 0.0
    %363 = vmatpush1.msra.mxu0 %v43
    %364 = vmatprep.subr.mxu0 0.0
    %365 = vmatpush2.msra.mxu0 0.0
    %366 = vmatprep.subr.mxu0 0.0
    %367 = vmatpush2.msra.mxu0 0.0
    %368 = vmatprep.subr.mxu0 0.0
    %369 = vmatpush2.msra.mxu0 0.0
    %370 = vmatprep.subr.mxu0 0.0
    %371 = vmatpush2.msra.mxu0 0.0
    %372 = vmatprep.subr.mxu0 0.0
    %373 = vmatpush2.msra.mxu0 0.0
    %374 = vmatprep.subr.mxu0 0.0
    %375 = vmatpush2.msra.mxu0 0.0
    %376 = vmatprep.subr.mxu0 0.0
    %377 = vmatpush2.msra.mxu0 0.0
    %378 = vmatprep.subr.mxu0 0.0
    %379 = vmatpush2.msra.mxu0 0.0
    %380 = vmatprep.subr.mxu0 0.0
    %381 = vmatpush2.msra.mxu0 0.0
    %382 = vmatprep.subr.mxu0 0.0
    %383 = vmatpush2.msra.mxu0 0.0
    %384 = vmatprep.subr.mxu0 0.0
    %385 = vmatpush2.msra.mxu0 0.0
    %386 = vmatprep.subr.mxu0 0.0
    %387 = vmatpush2.msra.mxu0 0.0
    %388 = vmatprep.subr.mxu0 0.0
    %389 = vmatpush2.msra.mxu0 0.0
    %390 = vmatprep.subr.mxu0 0.0
    %391 = vmatpush2.msra.mxu0 0.0
    %392 = vmatprep.subr.mxu0 0.0
    %393 = vmatpush2.msra.mxu0 0.0
    %394 = vmatprep.subr.mxu0 0.0
    %395 = vmatpush2.msra.mxu0 0.0
    %396 = vmatprep.mubr.f32.mxu0 0.0
    %397 = vmatmul.mubr.f32.gmra.mxu0 %v330
    %v398 = vpop.f32.mrf.mxu0
    %v399 = vadd.f32 %v327, %v398
    %v400 = vpop.f32.mrf.mxu0
    %401 = vdwg.mxu0
    %v402 = vadd.f32 %v320, %v399
    %v403 = vxor.u32 %v402, 2147483648
    %v404 = vmul.f32 %v403, 1.442695
    %v405 = vpow.pop %v404
    %v406 = vadd.f32 %v405, 1.0
    %v407 = vrcp.pop %v406
    %v408 = vmul.f32 1.0, %v407
    %410 = vrot.lane.b32.xlu0 %v399, 96
    %v411 = vpop.permute.xlu0 %410
    %v413 = vmul.f32 %v408, %v411
    %415 = vrot.lane.b32.xlu0 %v413, 32
    %v416 = vpop.permute.xlu0 %415
    %v418 = vadd.f32 %v320, %v416
    %v419 = vtanh.pop %v418
    %v420 = vsub.f32 1.0, %v408
    %422 = vrot.lane.b32.xlu0 %v419, 112
    %v423 = vpop.permute.xlu0 %422
    %v425 = vmul.f32 %v420, %v423
    %426 = vrot.lane.b32.xlu0 %v51, 16
    %v427 = vpop.permute.xlu0 %426
    %v429 = vmul.f32 %v408, %v427
    %v430 = vadd.f32 %v425, %v429
    %432 = vrot.lane.b32.xlu0 %v430, 112
    %v433 = vpop.permute.xlu0 %432
    %vm435 = vcmask 123904
    %436 = vst.msk [vmem:[%s10] sm:$0x3] %vm435, %v433
    %s437 = scalar_lea.vmem %s0, 2
    %v438 = vld [vmem:[%s437] sm:$0x3]
    %v440 = vsel %vm59, %v438, 0
    %442 = vmatprep.subr.mxu0 0.0
    %443 = vmatpush1.msra.mxu0 0.0
    %444 = vmatprep.subr.mxu0 0.0
    %445 = vmatpush1.msra.mxu0 0.0
    %446 = vmatprep.subr.mxu0 0.0
    %447 = vmatpush1.msra.mxu0 0.0
    %448 = vmatprep.subr.mxu0 0.0
    %449 = vmatpush1.msra.mxu0 0.0
    %450 = vmatprep.subr.mxu0 0.0
    %451 = vmatpush1.msra.mxu0 0.0
    %452 = vmatprep.subr.mxu0 0.0
    %453 = vmatpush1.msra.mxu0 0.0
    %454 = vmatprep.subr.mxu0 0.0
    %455 = vmatpush1.msra.mxu0 0.0
    %456 = vmatprep.subr.mxu0 0.0
    %457 = vmatpush1.msra.mxu0 0.0
    %458 = vmatprep.subr.mxu0 0.0
    %459 = vmatpush1.msra.mxu0 0.0
    %460 = vmatprep.subr.mxu0 0.0
    %461 = vmatpush1.msra.mxu0 0.0
    %462 = vmatprep.subr.mxu0 0.0
    %463 = vmatpush1.msra.mxu0 0.0
    %464 = vmatprep.subr.mxu0 0.0
    %465 = vmatpush1.msra.mxu0 0.0
    %466 = vmatprep.subr.mxu0 0.0
    %467 = vmatpush1.msra.mxu0 0.0
    %468 = vmatprep.subr.mxu0 0.0
    %469 = vmatpush1.msra.mxu0 0.0
    %470 = vmatprep.subr.mxu0 0.0
    %471 = vmatpush1.msra.mxu0 0.0
    %472 = vmatprep.subr.mxu0 0.0
    %473 = vmatpush1.msra.mxu0 %v38
    %474 = vmatprep.subr.mxu0 0.0
    %475 = vmatpush2.msra.mxu0 0.0
    %476 = vmatprep.subr.mxu0 0.0
    %477 = vmatpush2.msra.mxu0 0.0
    %478 = vmatprep.subr.mxu0 0.0
    %479 = vmatpush2.msra.mxu0 0.0
    %480 = vmatprep.subr.mxu0 0.0
    %481 = vmatpush2.msra.mxu0 0.0
    %482 = vmatprep.subr.mxu0 0.0
    %483 = vmatpush2.msra.mxu0 0.0
    %484 = vmatprep.subr.mxu0 0.0
    %485 = vmatpush2.msra.mxu0 0.0
    %486 = vmatprep.subr.mxu0 0.0
    %487 = vmatpush2.msra.mxu0 0.0
    %488 = vmatprep.subr.mxu0 0.0
    %489 = vmatpush2.msra.mxu0 0.0
    %490 = vmatprep.subr.mxu0 0.0
    %491 = vmatpush2.msra.mxu0 0.0
    %492 = vmatprep.subr.mxu0 0.0
    %493 = vmatpush2.msra.mxu0 0.0
    %494 = vmatprep.subr.mxu0 0.0
    %495 = vmatpush2.msra.mxu0 0.0
    %496 = vmatprep.subr.mxu0 0.0
    %497 = vmatpush2.msra.mxu0 0.0
    %498 = vmatprep.subr.mxu0 0.0
    %499 = vmatpush2.msra.mxu0 0.0
    %500 = vmatprep.subr.mxu0 0.0
    %501 = vmatpush2.msra.mxu0 0.0
    %502 = vmatprep.subr.mxu0 0.0
    %503 = vmatpush2.msra.mxu0 0.0
    %504 = vmatprep.subr.mxu0 0.0
    %505 = vmatpush2.msra.mxu0 0.0
    %506 = vmatprep.mubr.f32.mxu0 0.0
    %507 = vmatmul.mubr.f32.gmra.mxu0 %v440
    %v508 = vpop.f32.mrf.mxu0
    %v509 = vadd.f32 %v57, %v508
    %v510 = vpop.f32.mrf.mxu0
    %511 = vdwg.mxu0
    %512 = vmatprep.subr.mxu0 0.0
    %513 = vmatpush1.msra.mxu0 0.0
    %514 = vmatprep.subr.mxu0 0.0
    %515 = vmatpush1.msra.mxu0 0.0
    %516 = vmatprep.subr.mxu0 0.0
    %517 = vmatpush1.msra.mxu0 0.0
    %518 = vmatprep.subr.mxu0 0.0
    %519 = vmatpush1.msra.mxu0 0.0
    %520 = vmatprep.subr.mxu0 0.0
    %521 = vmatpush1.msra.mxu0 0.0
    %522 = vmatprep.subr.mxu0 0.0
    %523 = vmatpush1.msra.mxu0 0.0
    %524 = vmatprep.subr.mxu0 0.0
    %525 = vmatpush1.msra.mxu0 0.0
    %526 = vmatprep.subr.mxu0 0.0
    %527 = vmatpush1.msra.mxu0 0.0
    %528 = vmatprep.subr.mxu0 0.0
    %529 = vmatpush1.msra.mxu0 0.0
    %530 = vmatprep.subr.mxu0 0.0
    %531 = vmatpush1.msra.mxu0 0.0
    %532 = vmatprep.subr.mxu0 0.0
    %533 = vmatpush1.msra.mxu0 0.0
    %534 = vmatprep.subr.mxu0 0.0
    %535 = vmatpush1.msra.mxu0 0.0
    %536 = vmatprep.subr.mxu0 0.0
    %537 = vmatpush1.msra.mxu0 0.0
    %538 = vmatprep.subr.mxu0 0.0
    %539 = vmatpush1.msra.mxu0 0.0
    %540 = vmatprep.subr.mxu0 0.0
    %541 = vmatpush1.msra.mxu0 %v40
    %542 = vmatprep.subr.mxu0 0.0
    %543 = vmatpush1.msra.mxu0 %v39
    %544 = vmatprep.subr.mxu0 0.0
    %545 = vmatpush2.msra.mxu0 0.0
    %546 = vmatprep.subr.mxu0 0.0
    %547 = vmatpush2.msra.mxu0 0.0
    %548 = vmatprep.subr.mxu0 0.0
    %549 = vmatpush2.msra.mxu0 0.0
    %550 = vmatprep.subr.mxu0 0.0
    %551 = vmatpush2.msra.mxu0 0.0
    %552 = vmatprep.subr.mxu0 0.0
    %553 = vmatpush2.msra.mxu0 0.0
    %554 = vmatprep.subr.mxu0 0.0
    %555 = vmatpush2.msra.mxu0 0.0
    %556 = vmatprep.subr.mxu0 0.0
    %557 = vmatpush2.msra.mxu0 0.0
    %558 = vmatprep.subr.mxu0 0.0
    %559 = vmatpush2.msra.mxu0 0.0
    %560 = vmatprep.subr.mxu0 0.0
    %561 = vmatpush2.msra.mxu0 0.0
    %562 = vmatprep.subr.mxu0 0.0
    %563 = vmatpush2.msra.mxu0 0.0
    %564 = vmatprep.subr.mxu0 0.0
    %565 = vmatpush2.msra.mxu0 0.0
    %566 = vmatprep.subr.mxu0 0.0
    %567 = vmatpush2.msra.mxu0 0.0
    %568 = vmatprep.subr.mxu0 0.0
    %569 = vmatpush2.msra.mxu0 0.0
    %570 = vmatprep.subr.mxu0 0.0
    %571 = vmatpush2.msra.mxu0 0.0
    %572 = vmatprep.subr.mxu0 0.0
    %573 = vmatpush2.msra.mxu0 0.0
    %574 = vmatprep.subr.mxu0 0.0
    %575 = vmatpush2.msra.mxu0 0.0
    %576 = vmatprep.mubr.f32.mxu0 0.0
    %577 = vmatmul.mubr.f32.gmra.mxu0 %v251
    %v578 = vpop.f32.mrf.mxu0
    %v579 = vadd.f32 %v137, %v578
    %v580 = vpop.f32.mrf.mxu0
    %581 = vdwg.mxu0
    %v582 = vadd.f32 %v509, %v579
    %v583 = vxor.u32 %v582, 2147483648
    %v584 = vmul.f32 %v583, 1.442695
    %v585 = vpow.pop %v584
    %v586 = vadd.f32 %v585, 1.0
    %v587 = vrcp.pop %v586
    %v588 = vmul.f32 1.0, %v587
    %590 = vrot.lane.b32.xlu0 %v579, 96
    %v591 = vpop.permute.xlu0 %590
    %v593 = vmul.f32 %v588, %v591
    %595 = vrot.lane.b32.xlu0 %v593, 32
    %v596 = vpop.permute.xlu0 %595
    %v598 = vadd.f32 %v509, %v596
    %v599 = vtanh.pop %v598
    %v600 = vsub.f32 1.0, %v588
    %602 = vrot.lane.b32.xlu0 %v599, 112
    %v603 = vpop.permute.xlu0 %602
    %v605 = vmul.f32 %v600, %v603
    %v606 = vmul.f32 %v588, %v241
    %v607 = vadd.f32 %v605, %v606
    %609 = vrot.lane.b32.xlu0 %v607, 112
    %v610 = vpop.permute.xlu0 %609
    %v611 = vsel %vm139, %v610, 0
    %613 = vmatprep.subr.mxu0 0.0
    %614 = vmatpush1.msra.mxu0 0.0
    %615 = vmatprep.subr.mxu0 0.0
    %616 = vmatpush1.msra.mxu0 0.0
    %617 = vmatprep.subr.mxu0 0.0
    %618 = vmatpush1.msra.mxu0 0.0
    %619 = vmatprep.subr.mxu0 0.0
    %620 = vmatpush1.msra.mxu0 0.0
    %621 = vmatprep.subr.mxu0 0.0
    %622 = vmatpush1.msra.mxu0 0.0
    %623 = vmatprep.subr.mxu0 0.0
    %624 = vmatpush1.msra.mxu0 0.0
    %625 = vmatprep.subr.mxu0 0.0
    %626 = vmatpush1.msra.mxu0 0.0
    %627 = vmatprep.subr.mxu0 0.0
    %628 = vmatpush1.msra.mxu0 0.0
    %629 = vmatprep.subr.mxu0 0.0
    %630 = vmatpush1.msra.mxu0 0.0
    %631 = vmatprep.subr.mxu0 0.0
    %632 = vmatpush1.msra.mxu0 0.0
    %633 = vmatprep.subr.mxu0 0.0
    %634 = vmatpush1.msra.mxu0 0.0
    %635 = vmatprep.subr.mxu0 0.0
    %636 = vmatpush1.msra.mxu0 0.0
    %637 = vmatprep.subr.mxu0 0.0
    %638 = vmatpush1.msra.mxu0 0.0
    %639 = vmatprep.subr.mxu0 0.0
    %640 = vmatpush1.msra.mxu0 0.0
    %641 = vmatprep.subr.mxu0 0.0
    %642 = vmatpush1.msra.mxu0 %v42
    %643 = vmatprep.subr.mxu0 0.0
    %644 = vmatpush1.msra.mxu0 %v41
    %645 = vmatprep.subr.mxu0 0.0
    %646 = vmatpush2.msra.mxu0 0.0
    %647 = vmatprep.subr.mxu0 0.0
    %648 = vmatpush2.msra.mxu0 0.0
    %649 = vmatprep.subr.mxu0 0.0
    %650 = vmatpush2.msra.mxu0 0.0
    %651 = vmatprep.subr.mxu0 0.0
    %652 = vmatpush2.msra.mxu0 0.0
    %653 = vmatprep.subr.mxu0 0.0
    %654 = vmatpush2.msra.mxu0 0.0
    %655 = vmatprep.subr.mxu0 0.0
    %656 = vmatpush2.msra.mxu0 0.0
    %657 = vmatprep.subr.mxu0 0.0
    %658 = vmatpush2.msra.mxu0 0.0
    %659 = vmatprep.subr.mxu0 0.0
    %660 = vmatpush2.msra.mxu0 0.0
    %661 = vmatprep.subr.mxu0 0.0
    %662 = vmatpush2.msra.mxu0 0.0
    %663 = vmatprep.subr.mxu0 0.0
    %664 = vmatpush2.msra.mxu0 0.0
    %665 = vmatprep.subr.mxu0 0.0
    %666 = vmatpush2.msra.mxu0 0.0
    %667 = vmatprep.subr.mxu0 0.0
    %668 = vmatpush2.msra.mxu0 0.0
    %669 = vmatprep.subr.mxu0 0.0
    %670 = vmatpush2.msra.mxu0 0.0
    %671 = vmatprep.subr.mxu0 0.0
    %672 = vmatpush2.msra.mxu0 0.0
    %673 = vmatprep.subr.mxu0 0.0
    %674 = vmatpush2.msra.mxu0 0.0
    %675 = vmatprep.subr.mxu0 0.0
    %676 = vmatpush2.msra.mxu0 0.0
    %677 = vmatprep.mubr.f32.mxu0 0.0
    %678 = vmatmul.mubr.f32.gmra.mxu0 %v611
    %v679 = vpop.f32.mrf.mxu0
    %v680 = vadd.f32 %v246, %v679
    %v681 = vpop.f32.mrf.mxu0
    %682 = vdwg.mxu0
    %v683 = vsel %vm139, %v433, 0
    %685 = vmatprep.subr.mxu0 0.0
    %686 = vmatpush1.msra.mxu0 0.0
    %687 = vmatprep.subr.mxu0 0.0
    %688 = vmatpush1.msra.mxu0 0.0
    %689 = vmatprep.subr.mxu0 0.0
    %690 = vmatpush1.msra.mxu0 0.0
    %691 = vmatprep.subr.mxu0 0.0
    %692 = vmatpush1.msra.mxu0 0.0
    %693 = vmatprep.subr.mxu0 0.0
    %694 = vmatpush1.msra.mxu0 0.0
    %695 = vmatprep.subr.mxu0 0.0
    %696 = vmatpush1.msra.mxu0 0.0
    %697 = vmatprep.subr.mxu0 0.0
    %698 = vmatpush1.msra.mxu0 0.0
    %699 = vmatprep.subr.mxu0 0.0
    %700 = vmatpush1.msra.mxu0 0.0
    %701 = vmatprep.subr.mxu0 0.0
    %702 = vmatpush1.msra.mxu0 0.0
    %703 = vmatprep.subr.mxu0 0.0
    %704 = vmatpush1.msra.mxu0 0.0
    %705 = vmatprep.subr.mxu0 0.0
    %706 = vmatpush1.msra.mxu0 0.0
    %707 = vmatprep.subr.mxu0 0.0
    %708 = vmatpush1.msra.mxu0 0.0
    %709 = vmatprep.subr.mxu0 0.0
    %710 = vmatpush1.msra.mxu0 0.0
    %711 = vmatprep.subr.mxu0 0.0
    %712 = vmatpush1.msra.mxu0 0.0
    %713 = vmatprep.subr.mxu0 0.0
    %714 = vmatpush1.msra.mxu0 %v44
    %715 = vmatprep.subr.mxu0 0.0
    %716 = vmatpush1.msra.mxu0 %v43
    %717 = vmatprep.subr.mxu0 0.0
    %718 = vmatpush2.msra.mxu0 0.0
    %719 = vmatprep.subr.mxu0 0.0
    %720 = vmatpush2.msra.mxu0 0.0
    %721 = vmatprep.subr.mxu0 0.0
    %722 = vmatpush2.msra.mxu0 0.0
    %723 = vmatprep.subr.mxu0 0.0
    %724 = vmatpush2.msra.mxu0 0.0
    %725 = vmatprep.subr.mxu0 0.0
    %726 = vmatpush2.msra.mxu0 0.0
    %727 = vmatprep.subr.mxu0 0.0
    %728 = vmatpush2.msra.mxu0 0.0
    %729 = vmatprep.subr.mxu0 0.0
    %730 = vmatpush2.msra.mxu0 0.0
    %731 = vmatprep.subr.mxu0 0.0
    %732 = vmatpush2.msra.mxu0 0.0
    %733 = vmatprep.subr.mxu0 0.0
    %734 = vmatpush2.msra.mxu0 0.0
    %735 = vmatprep.subr.mxu0 0.0
    %736 = vmatpush2.msra.mxu0 0.0
    %737 = vmatprep.subr.mxu0 0.0
    %738 = vmatpush2.msra.mxu0 0.0
    %739 = vmatprep.subr.mxu0 0.0
    %740 = vmatpush2.msra.mxu0 0.0
    %741 = vmatprep.subr.mxu0 0.0
    %742 = vmatpush2.msra.mxu0 0.0
    %743 = vmatprep.subr.mxu0 0.0
    %744 = vmatpush2.msra.mxu0 0.0
    %745 = vmatprep.subr.mxu0 0.0
    %746 = vmatpush2.msra.mxu0 0.0
    %747 = vmatprep.subr.mxu0 0.0
    %748 = vmatpush2.msra.mxu0 0.0
    %749 = vmatprep.mubr.f32.mxu0 0.0
    %750 = vmatmul.mubr.f32.gmra.mxu0 %v683
    %v751 = vpop.f32.mrf.mxu0
    %v752 = vadd.f32 %v327, %v751
    %v753 = vpop.f32.mrf.mxu0
    %754 = vdwg.mxu0
    %v755 = vadd.f32 %v680, %v752
    %v756 = vxor.u32 %v755, 2147483648
    %v757 = vmul.f32 %v756, 1.442695
    %v758 = vpow.pop %v757
    %v759 = vadd.f32 %v758, 1.0
    %v760 = vrcp.pop %v759
    %v761 = vmul.f32 1.0, %v760
    %763 = vrot.lane.b32.xlu0 %v752, 96
    %v764 = vpop.permute.xlu0 %763
    %v766 = vmul.f32 %v761, %v764
    %768 = vrot.lane.b32.xlu0 %v766, 32
    %v769 = vpop.permute.xlu0 %768
    %v771 = vadd.f32 %v680, %v769
    %v772 = vtanh.pop %v771
    %v773 = vsub.f32 1.0, %v761
    %775 = vrot.lane.b32.xlu0 %v772, 112
    %v776 = vpop.permute.xlu0 %775
    %v778 = vmul.f32 %v773, %v776
    %v779 = vmul.f32 %v761, %v430
    %v780 = vadd.f32 %v778, %v779
    %782 = vrot.lane.b32.xlu0 %v780, 112
    %v783 = vpop.permute.xlu0 %782
    %s785 = scalar_lea.vmem %s10, 2
    %786 = vst.msk [vmem:[%s785] sm:$0x3] %vm435, %v783
    %s787 = scalar_lea.vmem %s0, 4
    %v788 = vld [vmem:[%s787] sm:$0x3]
    %v790 = vsel %vm59, %v788, 0
    %792 = vmatprep.subr.mxu0 0.0
    %793 = vmatpush1.msra.mxu0 0.0
    %794 = vmatprep.subr.mxu0 0.0
    %795 = vmatpush1.msra.mxu0 0.0
    %796 = vmatprep.subr.mxu0 0.0
    %797 = vmatpush1.msra.mxu0 0.0
    %798 = vmatprep.subr.mxu0 0.0
    %799 = vmatpush1.msra.mxu0 0.0
    %800 = vmatprep.subr.mxu0 0.0
    %801 = vmatpush1.msra.mxu0 0.0
    %802 = vmatprep.subr.mxu0 0.0
    %803 = vmatpush1.msra.mxu0 0.0
    %804 = vmatprep.subr.mxu0 0.0
    %805 = vmatpush1.msra.mxu0 0.0
    %806 = vmatprep.subr.mxu0 0.0
    %807 = vmatpush1.msra.mxu0 0.0
    %808 = vmatprep.subr.mxu0 0.0
    %809 = vmatpush1.msra.mxu0 0.0
    %810 = vmatprep.subr.mxu0 0.0
    %811 = vmatpush1.msra.mxu0 0.0
    %812 = vmatprep.subr.mxu0 0.0
    %813 = vmatpush1.msra.mxu0 0.0
    %814 = vmatprep.subr.mxu0 0.0
    %815 = vmatpush1.msra.mxu0 0.0
    %816 = vmatprep.subr.mxu0 0.0
    %817 = vmatpush1.msra.mxu0 0.0
    %818 = vmatprep.subr.mxu0 0.0
    %819 = vmatpush1.msra.mxu0 0.0
    %820 = vmatprep.subr.mxu0 0.0
    %821 = vmatpush1.msra.mxu0 0.0
    %822 = vmatprep.subr.mxu0 0.0
    %823 = vmatpush1.msra.mxu0 %v38
    %824 = vmatprep.subr.mxu0 0.0
    %825 = vmatpush2.msra.mxu0 0.0
    %826 = vmatprep.subr.mxu0 0.0
    %827 = vmatpush2.msra.mxu0 0.0
    %828 = vmatprep.subr.mxu0 0.0
    %829 = vmatpush2.msra.mxu0 0.0
    %830 = vmatprep.subr.mxu0 0.0
    %831 = vmatpush2.msra.mxu0 0.0
    %832 = vmatprep.subr.mxu0 0.0
    %833 = vmatpush2.msra.mxu0 0.0
    %834 = vmatprep.subr.mxu0 0.0
    %835 = vmatpush2.msra.mxu0 0.0
    %836 = vmatprep.subr.mxu0 0.0
    %837 = vmatpush2.msra.mxu0 0.0
    %838 = vmatprep.subr.mxu0 0.0
    %839 = vmatpush2.msra.mxu0 0.0
    %840 = vmatprep.subr.mxu0 0.0
    %841 = vmatpush2.msra.mxu0 0.0
    %842 = vmatprep.subr.mxu0 0.0
    %843 = vmatpush2.msra.mxu0 0.0
    %844 = vmatprep.subr.mxu0 0.0
    %845 = vmatpush2.msra.mxu0 0.0
    %846 = vmatprep.subr.mxu0 0.0
    %847 = vmatpush2.msra.mxu0 0.0
    %848 = vmatprep.subr.mxu0 0.0
    %849 = vmatpush2.msra.mxu0 0.0
    %850 = vmatprep.subr.mxu0 0.0
    %851 = vmatpush2.msra.mxu0 0.0
    %852 = vmatprep.subr.mxu0 0.0
    %853 = vmatpush2.msra.mxu0 0.0
    %854 = vmatprep.subr.mxu0 0.0
    %855 = vmatpush2.msra.mxu0 0.0
    %856 = vmatprep.mubr.f32.mxu0 0.0
    %857 = vmatmul.mubr.f32.gmra.mxu0 %v790
    %v858 = vpop.f32.mrf.mxu0
    %v859 = vadd.f32 %v57, %v858
    %v860 = vpop.f32.mrf.mxu0
    %861 = vdwg.mxu0
    %862 = vmatprep.subr.mxu0 0.0
    %863 = vmatpush1.msra.mxu0 0.0
    %864 = vmatprep.subr.mxu0 0.0
    %865 = vmatpush1.msra.mxu0 0.0
    %866 = vmatprep.subr.mxu0 0.0
    %867 = vmatpush1.msra.mxu0 0.0
    %868 = vmatprep.subr.mxu0 0.0
    %869 = vmatpush1.msra.mxu0 0.0
    %870 = vmatprep.subr.mxu0 0.0
    %871 = vmatpush1.msra.mxu0 0.0
    %872 = vmatprep.subr.mxu0 0.0
    %873 = vmatpush1.msra.mxu0 0.0
    %874 = vmatprep.subr.mxu0 0.0
    %875 = vmatpush1.msra.mxu0 0.0
    %876 = vmatprep.subr.mxu0 0.0
    %877 = vmatpush1.msra.mxu0 0.0
    %878 = vmatprep.subr.mxu0 0.0
    %879 = vmatpush1.msra.mxu0 0.0
    %880 = vmatprep.subr.mxu0 0.0
    %881 = vmatpush1.msra.mxu0 0.0
    %882 = vmatprep.subr.mxu0 0.0
    %883 = vmatpush1.msra.mxu0 0.0
    %884 = vmatprep.subr.mxu0 0.0
    %885 = vmatpush1.msra.mxu0 0.0
    %886 = vmatprep.subr.mxu0 0.0
    %887 = vmatpush1.msra.mxu0 0.0
    %888 = vmatprep.subr.mxu0 0.0
    %889 = vmatpush1.msra.mxu0 0.0
    %890 = vmatprep.subr.mxu0 0.0
    %891 = vmatpush1.msra.mxu0 %v40
    %892 = vmatprep.subr.mxu0 0.0
    %893 = vmatpush1.msra.mxu0 %v39
    %894 = vmatprep.subr.mxu0 0.0
    %895 = vmatpush2.msra.mxu0 0.0
    %896 = vmatprep.subr.mxu0 0.0
    %897 = vmatpush2.msra.mxu0 0.0
    %898 = vmatprep.subr.mxu0 0.0
    %899 = vmatpush2.msra.mxu0 0.0
    %900 = vmatprep.subr.mxu0 0.0
    %901 = vmatpush2.msra.mxu0 0.0
    %902 = vmatprep.subr.mxu0 0.0
    %903 = vmatpush2.msra.mxu0 0.0
    %904 = vmatprep.subr.mxu0 0.0
    %905 = vmatpush2.msra.mxu0 0.0
    %906 = vmatprep.subr.mxu0 0.0
    %907 = vmatpush2.msra.mxu0 0.0
    %908 = vmatprep.subr.mxu0 0.0
    %909 = vmatpush2.msra.mxu0 0.0
    %910 = vmatprep.subr.mxu0 0.0
    %911 = vmatpush2.msra.mxu0 0.0
    %912 = vmatprep.subr.mxu0 0.0
    %913 = vmatpush2.msra.mxu0 0.0
    %914 = vmatprep.subr.mxu0 0.0
    %915 = vmatpush2.msra.mxu0 0.0
    %916 = vmatprep.subr.mxu0 0.0
    %917 = vmatpush2.msra.mxu0 0.0
    %918 = vmatprep.subr.mxu0 0.0
    %919 = vmatpush2.msra.mxu0 0.0
    %920 = vmatprep.subr.mxu0 0.0
    %921 = vmatpush2.msra.mxu0 0.0
    %922 = vmatprep.subr.mxu0 0.0
    %923 = vmatpush2.msra.mxu0 0.0
    %924 = vmatprep.subr.mxu0 0.0
    %925 = vmatpush2.msra.mxu0 0.0
    %926 = vmatprep.mubr.f32.mxu0 0.0
    %927 = vmatmul.mubr.f32.gmra.mxu0 %v611
    %v928 = vpop.f32.mrf.mxu0
    %v929 = vadd.f32 %v137, %v928
    %v930 = vpop.f32.mrf.mxu0
    %931 = vdwg.mxu0
    %v932 = vadd.f32 %v859, %v929
    %v933 = vxor.u32 %v932, 2147483648
    %v934 = vmul.f32 %v933, 1.442695
    %v935 = vpow.pop %v934
    %v936 = vadd.f32 %v935, 1.0
    %v937 = vrcp.pop %v936
    %v938 = vmul.f32 1.0, %v937
    %940 = vrot.lane.b32.xlu0 %v929, 96
    %v941 = vpop.permute.xlu0 %940
    %v943 = vmul.f32 %v938, %v941
    %945 = vrot.lane.b32.xlu0 %v943, 32
    %v946 = vpop.permute.xlu0 %945
    %v948 = vadd.f32 %v859, %v946
    %v949 = vtanh.pop %v948
    %v950 = vsub.f32 1.0, %v938
    %952 = vrot.lane.b32.xlu0 %v949, 112
    %v953 = vpop.permute.xlu0 %952
    %v955 = vmul.f32 %v950, %v953
    %v956 = vmul.f32 %v938, %v607
    %v957 = vadd.f32 %v955, %v956
    %959 = vrot.lane.b32.xlu0 %v957, 112
    %v960 = vpop.permute.xlu0 %959
    %v961 = vsel %vm139, %v960, 0
    %963 = vmatprep.subr.mxu0 0.0
    %964 = vmatpush1.msra.mxu0 0.0
    %965 = vmatprep.subr.mxu0 0.0
    %966 = vmatpush1.msra.mxu0 0.0
    %967 = vmatprep.subr.mxu0 0.0
    %968 = vmatpush1.msra.mxu0 0.0
    %969 = vmatprep.subr.mxu0 0.0
    %970 = vmatpush1.msra.mxu0 0.0
    %971 = vmatprep.subr.mxu0 0.0
    %972 = vmatpush1.msra.mxu0 0.0
    %973 = vmatprep.subr.mxu0 0.0
    %974 = vmatpush1.msra.mxu0 0.0
    %975 = vmatprep.subr.mxu0 0.0
    %976 = vmatpush1.msra.mxu0 0.0
    %977 = vmatprep.subr.mxu0 0.0
    %978 = vmatpush1.msra.mxu0 0.0
    %979 = vmatprep.subr.mxu0 0.0
    %980 = vmatpush1.msra.mxu0 0.0
    %981 = vmatprep.subr.mxu0 0.0
    %982 = vmatpush1.msra.mxu0 0.0
    %983 = vmatprep.subr.mxu0 0.0
    %984 = vmatpush1.msra.mxu0 0.0
    %985 = vmatprep.subr.mxu0 0.0
    %986 = vmatpush1.msra.mxu0 0.0
    %987 = vmatprep.subr.mxu0 0.0
    %988 = vmatpush1.msra.mxu0 0.0
    %989 = vmatprep.subr.mxu0 0.0
    %990 = vmatpush1.msra.mxu0 0.0
    %991 = vmatprep.subr.mxu0 0.0
    %992 = vmatpush1.msra.mxu0 %v42
    %993 = vmatprep.subr.mxu0 0.0
    %994 = vmatpush1.msra.mxu0 %v41
    %995 = vmatprep.subr.mxu0 0.0
    %996 = vmatpush2.msra.mxu0 0.0
    %997 = vmatprep.subr.mxu0 0.0
    %998 = vmatpush2.msra.mxu0 0.0
    %999 = vmatprep.subr.mxu0 0.0
    %1000 = vmatpush2.msra.mxu0 0.0
    %1001 = vmatprep.subr.mxu0 0.0
    %1002 = vmatpush2.msra.mxu0 0.0
    %1003 = vmatprep.subr.mxu0 0.0
    %1004 = vmatpush2.msra.mxu0 0.0
    %1005 = vmatprep.subr.mxu0 0.0
    %1006 = vmatpush2.msra.mxu0 0.0
    %1007 = vmatprep.subr.mxu0 0.0
    %1008 = vmatpush2.msra.mxu0 0.0
    %1009 = vmatprep.subr.mxu0 0.0
    %1010 = vmatpush2.msra.mxu0 0.0
    %1011 = vmatprep.subr.mxu0 0.0
    %1012 = vmatpush2.msra.mxu0 0.0
    %1013 = vmatprep.subr.mxu0 0.0
    %1014 = vmatpush2.msra.mxu0 0.0
    %1015 = vmatprep.subr.mxu0 0.0
    %1016 = vmatpush2.msra.mxu0 0.0
    %1017 = vmatprep.subr.mxu0 0.0
    %1018 = vmatpush2.msra.mxu0 0.0
    %1019 = vmatprep.subr.mxu0 0.0
    %1020 = vmatpush2.msra.mxu0 0.0
    %1021 = vmatprep.subr.mxu0 0.0
    %1022 = vmatpush2.msra.mxu0 0.0
    %1023 = vmatprep.subr.mxu0 0.0
    %1024 = vmatpush2.msra.mxu0 0.0
    %1025 = vmatprep.subr.mxu0 0.0
    %1026 = vmatpush2.msra.mxu0 0.0
    %1027 = vmatprep.mubr.f32.mxu0 0.0
    %1028 = vmatmul.mubr.f32.gmra.mxu0 %v961
    %v1029 = vpop.f32.mrf.mxu0
    %v1030 = vadd.f32 %v246, %v1029
    %v1031 = vpop.f32.mrf.mxu0
    %1032 = vdwg.mxu0
    %v1033 = vsel %vm139, %v783, 0
    %1035 = vmatprep.subr.mxu0 0.0
    %1036 = vmatpush1.msra.mxu0 0.0
    %1037 = vmatprep.subr.mxu0 0.0
    %1038 = vmatpush1.msra.mxu0 0.0
    %1039 = vmatprep.subr.mxu0 0.0
    %1040 = vmatpush1.msra.mxu0 0.0
    %1041 = vmatprep.subr.mxu0 0.0
    %1042 = vmatpush1.msra.mxu0 0.0
    %1043 = vmatprep.subr.mxu0 0.0
    %1044 = vmatpush1.msra.mxu0 0.0
    %1045 = vmatprep.subr.mxu0 0.0
    %1046 = vmatpush1.msra.mxu0 0.0
    %1047 = vmatprep.subr.mxu0 0.0
    %1048 = vmatpush1.msra.mxu0 0.0
    %1049 = vmatprep.subr.mxu0 0.0
    %1050 = vmatpush1.msra.mxu0 0.0
    %1051 = vmatprep.subr.mxu0 0.0
    %1052 = vmatpush1.msra.mxu0 0.0
    %1053 = vmatprep.subr.mxu0 0.0
    %1054 = vmatpush1.msra.mxu0 0.0
    %1055 = vmatprep.subr.mxu0 0.0
    %1056 = vmatpush1.msra.mxu0 0.0
    %1057 = vmatprep.subr.mxu0 0.0
    %1058 = vmatpush1.msra.mxu0 0.0
    %1059 = vmatprep.subr.mxu0 0.0
    %1060 = vmatpush1.msra.mxu0 0.0
    %1061 = vmatprep.subr.mxu0 0.0
    %1062 = vmatpush1.msra.mxu0 0.0
    %1063 = vmatprep.subr.mxu0 0.0
    %1064 = vmatpush1.msra.mxu0 %v44
    %1065 = vmatprep.subr.mxu0 0.0
    %1066 = vmatpush1.msra.mxu0 %v43
    %1067 = vmatprep.subr.mxu0 0.0
    %1068 = vmatpush2.msra.mxu0 0.0
    %1069 = vmatprep.subr.mxu0 0.0
    %1070 = vmatpush2.msra.mxu0 0.0
    %1071 = vmatprep.subr.mxu0 0.0
    %1072 = vmatpush2.msra.mxu0 0.0
    %1073 = vmatprep.subr.mxu0 0.0
    %1074 = vmatpush2.msra.mxu0 0.0
    %1075 = vmatprep.subr.mxu0 0.0
    %1076 = vmatpush2.msra.mxu0 0.0
    %1077 = vmatprep.subr.mxu0 0.0
    %1078 = vmatpush2.msra.mxu0 0.0
    %1079 = vmatprep.subr.mxu0 0.0
    %1080 = vmatpush2.msra.mxu0 0.0
    %1081 = vmatprep.subr.mxu0 0.0
    %1082 = vmatpush2.msra.mxu0 0.0
    %1083 = vmatprep.subr.mxu0 0.0
    %1084 = vmatpush2.msra.mxu0 0.0
    %1085 = vmatprep.subr.mxu0 0.0
    %1086 = vmatpush2.msra.mxu0 0.0
    %1087 = vmatprep.subr.mxu0 0.0
    %1088 = vmatpush2.msra.mxu0 0.0
    %1089 = vmatprep.subr.mxu0 0.0
    %1090 = vmatpush2.msra.mxu0 0.0
    %1091 = vmatprep.subr.mxu0 0.0
    %1092 = vmatpush2.msra.mxu0 0.0
    %1093 = vmatprep.subr.mxu0 0.0
    %1094 = vmatpush2.msra.mxu0 0.0
    %1095 = vmatprep.subr.mxu0 0.0
    %1096 = vmatpush2.msra.mxu0 0.0
    %1097 = vmatprep.subr.mxu0 0.0
    %1098 = vmatpush2.msra.mxu0 0.0
    %1099 = vmatprep.mubr.f32.mxu0 0.0
    %1100 = vmatmul.mubr.f32.gmra.mxu0 %v1033
    %v1101 = vpop.f32.mrf.mxu0
    %v1102 = vadd.f32 %v327, %v1101
    %v1103 = vpop.f32.mrf.mxu0
    %1104 = vdwg.mxu0
    %v1105 = vadd.f32 %v1030, %v1102
    %v1106 = vxor.u32 %v1105, 2147483648
    %v1107 = vmul.f32 %v1106, 1.442695
    %v1108 = vpow.pop %v1107
    %v1109 = vadd.f32 %v1108, 1.0
    %v1110 = vrcp.pop %v1109
    %v1111 = vmul.f32 1.0, %v1110
    %1113 = vrot.lane.b32.xlu0 %v1102, 96
    %v1114 = vpop.permute.xlu0 %1113
    %v1116 = vmul.f32 %v1111, %v1114
    %1118 = vrot.lane.b32.xlu0 %v1116, 32
    %v1119 = vpop.permute.xlu0 %1118
    %v1121 = vadd.f32 %v1030, %v1119
    %v1122 = vtanh.pop %v1121
    %v1123 = vsub.f32 1.0, %v1111
    %1125 = vrot.lane.b32.xlu0 %v1122, 112
    %v1126 = vpop.permute.xlu0 %1125
    %v1128 = vmul.f32 %v1123, %v1126
    %v1129 = vmul.f32 %v1111, %v780
    %v1130 = vadd.f32 %v1128, %v1129
    %1132 = vrot.lane.b32.xlu0 %v1130, 112
    %v1133 = vpop.permute.xlu0 %1132
    %s1135 = scalar_lea.vmem %s10, 4
    %1136 = vst.msk [vmem:[%s1135] sm:$0x3] %vm435, %v1133
    %s1137 = scalar_lea.vmem %s0, 6
    %v1138 = vld [vmem:[%s1137] sm:$0x3]
    %v1140 = vsel %vm59, %v1138, 0
    %1142 = vmatprep.subr.mxu0 0.0
    %1143 = vmatpush1.msra.mxu0 0.0
    %1144 = vmatprep.subr.mxu0 0.0
    %1145 = vmatpush1.msra.mxu0 0.0
    %1146 = vmatprep.subr.mxu0 0.0
    %1147 = vmatpush1.msra.mxu0 0.0
    %1148 = vmatprep.subr.mxu0 0.0
    %1149 = vmatpush1.msra.mxu0 0.0
    %1150 = vmatprep.subr.mxu0 0.0
    %1151 = vmatpush1.msra.mxu0 0.0
    %1152 = vmatprep.subr.mxu0 0.0
    %1153 = vmatpush1.msra.mxu0 0.0
    %1154 = vmatprep.subr.mxu0 0.0
    %1155 = vmatpush1.msra.mxu0 0.0
    %1156 = vmatprep.subr.mxu0 0.0
    %1157 = vmatpush1.msra.mxu0 0.0
    %1158 = vmatprep.subr.mxu0 0.0
    %1159 = vmatpush1.msra.mxu0 0.0
    %1160 = vmatprep.subr.mxu0 0.0
    %1161 = vmatpush1.msra.mxu0 0.0
    %1162 = vmatprep.subr.mxu0 0.0
    %1163 = vmatpush1.msra.mxu0 0.0
    %1164 = vmatprep.subr.mxu0 0.0
    %1165 = vmatpush1.msra.mxu0 0.0
    %1166 = vmatprep.subr.mxu0 0.0
    %1167 = vmatpush1.msra.mxu0 0.0
    %1168 = vmatprep.subr.mxu0 0.0
    %1169 = vmatpush1.msra.mxu0 0.0
    %1170 = vmatprep.subr.mxu0 0.0
    %1171 = vmatpush1.msra.mxu0 0.0
    %1172 = vmatprep.subr.mxu0 0.0
    %1173 = vmatpush1.msra.mxu0 %v38
    %1174 = vmatprep.subr.mxu0 0.0
    %1175 = vmatpush2.msra.mxu0 0.0
    %1176 = vmatprep.subr.mxu0 0.0
    %1177 = vmatpush2.msra.mxu0 0.0
    %1178 = vmatprep.subr.mxu0 0.0
    %1179 = vmatpush2.msra.mxu0 0.0
    %1180 = vmatprep.subr.mxu0 0.0
    %1181 = vmatpush2.msra.mxu0 0.0
    %1182 = vmatprep.subr.mxu0 0.0
    %1183 = vmatpush2.msra.mxu0 0.0
    %1184 = vmatprep.subr.mxu0 0.0
    %1185 = vmatpush2.msra.mxu0 0.0
    %1186 = vmatprep.subr.mxu0 0.0
    %1187 = vmatpush2.msra.mxu0 0.0
    %1188 = vmatprep.subr.mxu0 0.0
    %1189 = vmatpush2.msra.mxu0 0.0
    %1190 = vmatprep.subr.mxu0 0.0
    %1191 = vmatpush2.msra.mxu0 0.0
    %1192 = vmatprep.subr.mxu0 0.0
    %1193 = vmatpush2.msra.mxu0 0.0
    %1194 = vmatprep.subr.mxu0 0.0
    %1195 = vmatpush2.msra.mxu0 0.0
    %1196 = vmatprep.subr.mxu0 0.0
    %1197 = vmatpush2.msra.mxu0 0.0
    %1198 = vmatprep.subr.mxu0 0.0
    %1199 = vmatpush2.msra.mxu0 0.0
    %1200 = vmatprep.subr.mxu0 0.0
    %1201 = vmatpush2.msra.mxu0 0.0
    %1202 = vmatprep.subr.mxu0 0.0
    %1203 = vmatpush2.msra.mxu0 0.0
    %1204 = vmatprep.subr.mxu0 0.0
    %1205 = vmatpush2.msra.mxu0 0.0
    %1206 = vmatprep.mubr.f32.mxu0 0.0
    %1207 = vmatmul.mubr.f32.gmra.mxu0 %v1140
    %v1208 = vpop.f32.mrf.mxu0
    %v1209 = vadd.f32 %v57, %v1208
    %v1210 = vpop.f32.mrf.mxu0
    %1211 = vdwg.mxu0
    %1212 = vmatprep.subr.mxu0 0.0
    %1213 = vmatpush1.msra.mxu0 0.0
    %1214 = vmatprep.subr.mxu0 0.0
    %1215 = vmatpush1.msra.mxu0 0.0
    %1216 = vmatprep.subr.mxu0 0.0
    %1217 = vmatpush1.msra.mxu0 0.0
    %1218 = vmatprep.subr.mxu0 0.0
    %1219 = vmatpush1.msra.mxu0 0.0
    %1220 = vmatprep.subr.mxu0 0.0
    %1221 = vmatpush1.msra.mxu0 0.0
    %1222 = vmatprep.subr.mxu0 0.0
    %1223 = vmatpush1.msra.mxu0 0.0
    %1224 = vmatprep.subr.mxu0 0.0
    %1225 = vmatpush1.msra.mxu0 0.0
    %1226 = vmatprep.subr.mxu0 0.0
    %1227 = vmatpush1.msra.mxu0 0.0
    %1228 = vmatprep.subr.mxu0 0.0
    %1229 = vmatpush1.msra.mxu0 0.0
    %1230 = vmatprep.subr.mxu0 0.0
    %1231 = vmatpush1.msra.mxu0 0.0
    %1232 = vmatprep.subr.mxu0 0.0
    %1233 = vmatpush1.msra.mxu0 0.0
    %1234 = vmatprep.subr.mxu0 0.0
    %1235 = vmatpush1.msra.mxu0 0.0
    %1236 = vmatprep.subr.mxu0 0.0
    %1237 = vmatpush1.msra.mxu0 0.0
    %1238 = vmatprep.subr.mxu0 0.0
    %1239 = vmatpush1.msra.mxu0 0.0
    %1240 = vmatprep.subr.mxu0 0.0
    %1241 = vmatpush1.msra.mxu0 %v40
    %1242 = vmatprep.subr.mxu0 0.0
    %1243 = vmatpush1.msra.mxu0 %v39
    %1244 = vmatprep.subr.mxu0 0.0
    %1245 = vmatpush2.msra.mxu0 0.0
    %1246 = vmatprep.subr.mxu0 0.0
    %1247 = vmatpush2.msra.mxu0 0.0
    %1248 = vmatprep.subr.mxu0 0.0
    %1249 = vmatpush2.msra.mxu0 0.0
    %1250 = vmatprep.subr.mxu0 0.0
    %1251 = vmatpush2.msra.mxu0 0.0
    %1252 = vmatprep.subr.mxu0 0.0
    %1253 = vmatpush2.msra.mxu0 0.0
    %1254 = vmatprep.subr.mxu0 0.0
    %1255 = vmatpush2.msra.mxu0 0.0
    %1256 = vmatprep.subr.mxu0 0.0
    %1257 = vmatpush2.msra.mxu0 0.0
    %1258 = vmatprep.subr.mxu0 0.0
    %1259 = vmatpush2.msra.mxu0 0.0
    %1260 = vmatprep.subr.mxu0 0.0
    %1261 = vmatpush2.msra.mxu0 0.0
    %1262 = vmatprep.subr.mxu0 0.0
    %1263 = vmatpush2.msra.mxu0 0.0
    %1264 = vmatprep.subr.mxu0 0.0
    %1265 = vmatpush2.msra.mxu0 0.0
    %1266 = vmatprep.subr.mxu0 0.0
    %1267 = vmatpush2.msra.mxu0 0.0
    %1268 = vmatprep.subr.mxu0 0.0
    %1269 = vmatpush2.msra.mxu0 0.0
    %1270 = vmatprep.subr.mxu0 0.0
    %1271 = vmatpush2.msra.mxu0 0.0
    %1272 = vmatprep.subr.mxu0 0.0
    %1273 = vmatpush2.msra.mxu0 0.0
    %1274 = vmatprep.subr.mxu0 0.0
    %1275 = vmatpush2.msra.mxu0 0.0
    %1276 = vmatprep.mubr.f32.mxu0 0.0
    %1277 = vmatmul.mubr.f32.gmra.mxu0 %v961
    %v1278 = vpop.f32.mrf.mxu0
    %v1279 = vadd.f32 %v137, %v1278
    %v1280 = vpop.f32.mrf.mxu0
    %1281 = vdwg.mxu0
    %v1282 = vadd.f32 %v1209, %v1279
    %v1283 = vxor.u32 %v1282, 2147483648
    %v1284 = vmul.f32 %v1283, 1.442695
    %v1285 = vpow.pop %v1284
    %v1286 = vadd.f32 %v1285, 1.0
    %v1287 = vrcp.pop %v1286
    %v1288 = vmul.f32 1.0, %v1287
    %1290 = vrot.lane.b32.xlu0 %v1279, 96
    %v1291 = vpop.permute.xlu0 %1290
    %v1293 = vmul.f32 %v1288, %v1291
    %1295 = vrot.lane.b32.xlu0 %v1293, 32
    %v1296 = vpop.permute.xlu0 %1295
    %v1298 = vadd.f32 %v1209, %v1296
    %v1299 = vtanh.pop %v1298
    %v1300 = vsub.f32 1.0, %v1288
    %1302 = vrot.lane.b32.xlu0 %v1299, 112
    %v1303 = vpop.permute.xlu0 %1302
    %v1305 = vmul.f32 %v1300, %v1303
    %v1306 = vmul.f32 %v1288, %v957
    %v1307 = vadd.f32 %v1305, %v1306
    %1309 = vrot.lane.b32.xlu0 %v1307, 112
    %v1310 = vpop.permute.xlu0 %1309
    %v1311 = vsel %vm139, %v1310, 0
    %1313 = vmatprep.subr.mxu0 0.0
    %1314 = vmatpush1.msra.mxu0 0.0
    %1315 = vmatprep.subr.mxu0 0.0
    %1316 = vmatpush1.msra.mxu0 0.0
    %1317 = vmatprep.subr.mxu0 0.0
    %1318 = vmatpush1.msra.mxu0 0.0
    %1319 = vmatprep.subr.mxu0 0.0
    %1320 = vmatpush1.msra.mxu0 0.0
    %1321 = vmatprep.subr.mxu0 0.0
    %1322 = vmatpush1.msra.mxu0 0.0
    %1323 = vmatprep.subr.mxu0 0.0
    %1324 = vmatpush1.msra.mxu0 0.0
    %1325 = vmatprep.subr.mxu0 0.0
    %1326 = vmatpush1.msra.mxu0 0.0
    %1327 = vmatprep.subr.mxu0 0.0
    %1328 = vmatpush1.msra.mxu0 0.0
    %1329 = vmatprep.subr.mxu0 0.0
    %1330 = vmatpush1.msra.mxu0 0.0
    %1331 = vmatprep.subr.mxu0 0.0
    %1332 = vmatpush1.msra.mxu0 0.0
    %1333 = vmatprep.subr.mxu0 0.0
    %1334 = vmatpush1.msra.mxu0 0.0
    %1335 = vmatprep.subr.mxu0 0.0
    %1336 = vmatpush1.msra.mxu0 0.0
    %1337 = vmatprep.subr.mxu0 0.0
    %1338 = vmatpush1.msra.mxu0 0.0
    %1339 = vmatprep.subr.mxu0 0.0
    %1340 = vmatpush1.msra.mxu0 0.0
    %1341 = vmatprep.subr.mxu0 0.0
    %1342 = vmatpush1.msra.mxu0 %v42
    %1343 = vmatprep.subr.mxu0 0.0
    %1344 = vmatpush1.msra.mxu0 %v41
    %1345 = vmatprep.subr.mxu0 0.0
    %1346 = vmatpush2.msra.mxu0 0.0
    %1347 = vmatprep.subr.mxu0 0.0
    %1348 = vmatpush2.msra.mxu0 0.0
    %1349 = vmatprep.subr.mxu0 0.0
    %1350 = vmatpush2.msra.mxu0 0.0
    %1351 = vmatprep.subr.mxu0 0.0
    %1352 = vmatpush2.msra.mxu0 0.0
    %1353 = vmatprep.subr.mxu0 0.0
    %1354 = vmatpush2.msra.mxu0 0.0
    %1355 = vmatprep.subr.mxu0 0.0
    %1356 = vmatpush2.msra.mxu0 0.0
    %1357 = vmatprep.subr.mxu0 0.0
    %1358 = vmatpush2.msra.mxu0 0.0
    %1359 = vmatprep.subr.mxu0 0.0
    %1360 = vmatpush2.msra.mxu0 0.0
    %1361 = vmatprep.subr.mxu0 0.0
    %1362 = vmatpush2.msra.mxu0 0.0
    %1363 = vmatprep.subr.mxu0 0.0
    %1364 = vmatpush2.msra.mxu0 0.0
    %1365 = vmatprep.subr.mxu0 0.0
    %1366 = vmatpush2.msra.mxu0 0.0
    %1367 = vmatprep.subr.mxu0 0.0
    %1368 = vmatpush2.msra.mxu0 0.0
    %1369 = vmatprep.subr.mxu0 0.0
    %1370 = vmatpush2.msra.mxu0 0.0
    %1371 = vmatprep.subr.mxu0 0.0
    %1372 = vmatpush2.msra.mxu0 0.0
    %1373 = vmatprep.subr.mxu0 0.0
    %1374 = vmatpush2.msra.mxu0 0.0
    %1375 = vmatprep.subr.mxu0 0.0
    %1376 = vmatpush2.msra.mxu0 0.0
    %1377 = vmatprep.mubr.f32.mxu0 0.0
    %1378 = vmatmul.mubr.f32.gmra.mxu0 %v1311
    %v1379 = vpop.f32.mrf.mxu0
    %v1380 = vadd.f32 %v246, %v1379
    %v1381 = vpop.f32.mrf.mxu0
    %1382 = vdwg.mxu0
    %v1383 = vsel %vm139, %v1133, 0
    %1385 = vmatprep.subr.mxu0 0.0
    %1386 = vmatpush1.msra.mxu0 0.0
    %1387 = vmatprep.subr.mxu0 0.0
    %1388 = vmatpush1.msra.mxu0 0.0
    %1389 = vmatprep.subr.mxu0 0.0
    %1390 = vmatpush1.msra.mxu0 0.0
    %1391 = vmatprep.subr.mxu0 0.0
    %1392 = vmatpush1.msra.mxu0 0.0
    %1393 = vmatprep.subr.mxu0 0.0
    %1394 = vmatpush1.msra.mxu0 0.0
    %1395 = vmatprep.subr.mxu0 0.0
    %1396 = vmatpush1.msra.mxu0 0.0
    %1397 = vmatprep.subr.mxu0 0.0
    %1398 = vmatpush1.msra.mxu0 0.0
    %1399 = vmatprep.subr.mxu0 0.0
    %1400 = vmatpush1.msra.mxu0 0.0
    %1401 = vmatprep.subr.mxu0 0.0
    %1402 = vmatpush1.msra.mxu0 0.0
    %1403 = vmatprep.subr.mxu0 0.0
    %1404 = vmatpush1.msra.mxu0 0.0
    %1405 = vmatprep.subr.mxu0 0.0
    %1406 = vmatpush1.msra.mxu0 0.0
    %1407 = vmatprep.subr.mxu0 0.0
    %1408 = vmatpush1.msra.mxu0 0.0
    %1409 = vmatprep.subr.mxu0 0.0
    %1410 = vmatpush1.msra.mxu0 0.0
    %1411 = vmatprep.subr.mxu0 0.0
    %1412 = vmatpush1.msra.mxu0 0.0
    %1413 = vmatprep.subr.mxu0 0.0
    %1414 = vmatpush1.msra.mxu0 %v44
    %1415 = vmatprep.subr.mxu0 0.0
    %1416 = vmatpush1.msra.mxu0 %v43
    %1417 = vmatprep.subr.mxu0 0.0
    %1418 = vmatpush2.msra.mxu0 0.0
    %1419 = vmatprep.subr.mxu0 0.0
    %1420 = vmatpush2.msra.mxu0 0.0
    %1421 = vmatprep.subr.mxu0 0.0
    %1422 = vmatpush2.msra.mxu0 0.0
    %1423 = vmatprep.subr.mxu0 0.0
    %1424 = vmatpush2.msra.mxu0 0.0
    %1425 = vmatprep.subr.mxu0 0.0
    %1426 = vmatpush2.msra.mxu0 0.0
    %1427 = vmatprep.subr.mxu0 0.0
    %1428 = vmatpush2.msra.mxu0 0.0
    %1429 = vmatprep.subr.mxu0 0.0
    %1430 = vmatpush2.msra.mxu0 0.0
    %1431 = vmatprep.subr.mxu0 0.0
    %1432 = vmatpush2.msra.mxu0 0.0
    %1433 = vmatprep.subr.mxu0 0.0
    %1434 = vmatpush2.msra.mxu0 0.0
    %1435 = vmatprep.subr.mxu0 0.0
    %1436 = vmatpush2.msra.mxu0 0.0
    %1437 = vmatprep.subr.mxu0 0.0
    %1438 = vmatpush2.msra.mxu0 0.0
    %1439 = vmatprep.subr.mxu0 0.0
    %1440 = vmatpush2.msra.mxu0 0.0
    %1441 = vmatprep.subr.mxu0 0.0
    %1442 = vmatpush2.msra.mxu0 0.0
    %1443 = vmatprep.subr.mxu0 0.0
    %1444 = vmatpush2.msra.mxu0 0.0
    %1445 = vmatprep.subr.mxu0 0.0
    %1446 = vmatpush2.msra.mxu0 0.0
    %1447 = vmatprep.subr.mxu0 0.0
    %1448 = vmatpush2.msra.mxu0 0.0
    %1449 = vmatprep.mubr.f32.mxu0 0.0
    %1450 = vmatmul.mubr.f32.gmra.mxu0 %v1383
    %v1451 = vpop.f32.mrf.mxu0
    %v1452 = vadd.f32 %v327, %v1451
    %v1453 = vpop.f32.mrf.mxu0
    %1454 = vdwg.mxu0
    %v1455 = vadd.f32 %v1380, %v1452
    %v1456 = vxor.u32 %v1455, 2147483648
    %v1457 = vmul.f32 %v1456, 1.442695
    %v1458 = vpow.pop %v1457
    %v1459 = vadd.f32 %v1458, 1.0
    %v1460 = vrcp.pop %v1459
    %v1461 = vmul.f32 1.0, %v1460
    %1463 = vrot.lane.b32.xlu0 %v1452, 96
    %v1464 = vpop.permute.xlu0 %1463
    %v1466 = vmul.f32 %v1461, %v1464
    %1468 = vrot.lane.b32.xlu0 %v1466, 32
    %v1469 = vpop.permute.xlu0 %1468
    %v1471 = vadd.f32 %v1380, %v1469
    %v1472 = vtanh.pop %v1471
    %v1473 = vsub.f32 1.0, %v1461
    %1475 = vrot.lane.b32.xlu0 %v1472, 112
    %v1476 = vpop.permute.xlu0 %1475
    %v1478 = vmul.f32 %v1473, %v1476
    %v1479 = vmul.f32 %v1461, %v1130
    %v1480 = vadd.f32 %v1478, %v1479
    %1482 = vrot.lane.b32.xlu0 %v1480, 112
    %v1483 = vpop.permute.xlu0 %1482
    %s1485 = scalar_lea.vmem %s10, 6
    %1486 = vst.msk [vmem:[%s1485] sm:$0x3] %vm435, %v1483
    %s1487 = scalar_lea.vmem %s0, 8
    %v1488 = vld [vmem:[%s1487] sm:$0x3]
    %v1490 = vsel %vm59, %v1488, 0
    %1492 = vmatprep.subr.mxu0 0.0
    %1493 = vmatpush1.msra.mxu0 0.0
    %1494 = vmatprep.subr.mxu0 0.0
    %1495 = vmatpush1.msra.mxu0 0.0
    %1496 = vmatprep.subr.mxu0 0.0
    %1497 = vmatpush1.msra.mxu0 0.0
    %1498 = vmatprep.subr.mxu0 0.0
    %1499 = vmatpush1.msra.mxu0 0.0
    %1500 = vmatprep.subr.mxu0 0.0
    %1501 = vmatpush1.msra.mxu0 0.0
    %1502 = vmatprep.subr.mxu0 0.0
    %1503 = vmatpush1.msra.mxu0 0.0
    %1504 = vmatprep.subr.mxu0 0.0
    %1505 = vmatpush1.msra.mxu0 0.0
    %1506 = vmatprep.subr.mxu0 0.0
    %1507 = vmatpush1.msra.mxu0 0.0
    %1508 = vmatprep.subr.mxu0 0.0
    %1509 = vmatpush1.msra.mxu0 0.0
    %1510 = vmatprep.subr.mxu0 0.0
    %1511 = vmatpush1.msra.mxu0 0.0
    %1512 = vmatprep.subr.mxu0 0.0
    %1513 = vmatpush1.msra.mxu0 0.0
    %1514 = vmatprep.subr.mxu0 0.0
    %1515 = vmatpush1.msra.mxu0 0.0
    %1516 = vmatprep.subr.mxu0 0.0
    %1517 = vmatpush1.msra.mxu0 0.0
    %1518 = vmatprep.subr.mxu0 0.0
    %1519 = vmatpush1.msra.mxu0 0.0
    %1520 = vmatprep.subr.mxu0 0.0
    %1521 = vmatpush1.msra.mxu0 0.0
    %1522 = vmatprep.subr.mxu0 0.0
    %1523 = vmatpush1.msra.mxu0 %v38
    %1524 = vmatprep.subr.mxu0 0.0
    %1525 = vmatpush2.msra.mxu0 0.0
    %1526 = vmatprep.subr.mxu0 0.0
    %1527 = vmatpush2.msra.mxu0 0.0
    %1528 = vmatprep.subr.mxu0 0.0
    %1529 = vmatpush2.msra.mxu0 0.0
    %1530 = vmatprep.subr.mxu0 0.0
    %1531 = vmatpush2.msra.mxu0 0.0
    %1532 = vmatprep.subr.mxu0 0.0
    %1533 = vmatpush2.msra.mxu0 0.0
    %1534 = vmatprep.subr.mxu0 0.0
    %1535 = vmatpush2.msra.mxu0 0.0
    %1536 = vmatprep.subr.mxu0 0.0
    %1537 = vmatpush2.msra.mxu0 0.0
    %1538 = vmatprep.subr.mxu0 0.0
    %1539 = vmatpush2.msra.mxu0 0.0
    %1540 = vmatprep.subr.mxu0 0.0
    %1541 = vmatpush2.msra.mxu0 0.0
    %1542 = vmatprep.subr.mxu0 0.0
    %1543 = vmatpush2.msra.mxu0 0.0
    %1544 = vmatprep.subr.mxu0 0.0
    %1545 = vmatpush2.msra.mxu0 0.0
    %1546 = vmatprep.subr.mxu0 0.0
    %1547 = vmatpush2.msra.mxu0 0.0
    %1548 = vmatprep.subr.mxu0 0.0
    %1549 = vmatpush2.msra.mxu0 0.0
    %1550 = vmatprep.subr.mxu0 0.0
    %1551 = vmatpush2.msra.mxu0 0.0
    %1552 = vmatprep.subr.mxu0 0.0
    %1553 = vmatpush2.msra.mxu0 0.0
    %1554 = vmatprep.subr.mxu0 0.0
    %1555 = vmatpush2.msra.mxu0 0.0
    %1556 = vmatprep.mubr.f32.mxu0 0.0
    %1557 = vmatmul.mubr.f32.gmra.mxu0 %v1490
    %v1558 = vpop.f32.mrf.mxu0
    %v1559 = vadd.f32 %v57, %v1558
    %v1560 = vpop.f32.mrf.mxu0
    %1561 = vdwg.mxu0
    %1562 = vmatprep.subr.mxu0 0.0
    %1563 = vmatpush1.msra.mxu0 0.0
    %1564 = vmatprep.subr.mxu0 0.0
    %1565 = vmatpush1.msra.mxu0 0.0
    %1566 = vmatprep.subr.mxu0 0.0
    %1567 = vmatpush1.msra.mxu0 0.0
    %1568 = vmatprep.subr.mxu0 0.0
    %1569 = vmatpush1.msra.mxu0 0.0
    %1570 = vmatprep.subr.mxu0 0.0
    %1571 = vmatpush1.msra.mxu0 0.0
    %1572 = vmatprep.subr.mxu0 0.0
    %1573 = vmatpush1.msra.mxu0 0.0
    %1574 = vmatprep.subr.mxu0 0.0
    %1575 = vmatpush1.msra.mxu0 0.0
    %1576 = vmatprep.subr.mxu0 0.0
    %1577 = vmatpush1.msra.mxu0 0.0
    %1578 = vmatprep.subr.mxu0 0.0
    %1579 = vmatpush1.msra.mxu0 0.0
    %1580 = vmatprep.subr.mxu0 0.0
    %1581 = vmatpush1.msra.mxu0 0.0
    %1582 = vmatprep.subr.mxu0 0.0
    %1583 = vmatpush1.msra.mxu0 0.0
    %1584 = vmatprep.subr.mxu0 0.0
    %1585 = vmatpush1.msra.mxu0 0.0
    %1586 = vmatprep.subr.mxu0 0.0
    %1587 = vmatpush1.msra.mxu0 0.0
    %1588 = vmatprep.subr.mxu0 0.0
    %1589 = vmatpush1.msra.mxu0 0.0
    %1590 = vmatprep.subr.mxu0 0.0
    %1591 = vmatpush1.msra.mxu0 %v40
    %1592 = vmatprep.subr.mxu0 0.0
    %1593 = vmatpush1.msra.mxu0 %v39
    %1594 = vmatprep.subr.mxu0 0.0
    %1595 = vmatpush2.msra.mxu0 0.0
    %1596 = vmatprep.subr.mxu0 0.0
    %1597 = vmatpush2.msra.mxu0 0.0
    %1598 = vmatprep.subr.mxu0 0.0
    %1599 = vmatpush2.msra.mxu0 0.0
    %1600 = vmatprep.subr.mxu0 0.0
    %1601 = vmatpush2.msra.mxu0 0.0
    %1602 = vmatprep.subr.mxu0 0.0
    %1603 = vmatpush2.msra.mxu0 0.0
    %1604 = vmatprep.subr.mxu0 0.0
    %1605 = vmatpush2.msra.mxu0 0.0
    %1606 = vmatprep.subr.mxu0 0.0
    %1607 = vmatpush2.msra.mxu0 0.0
    %1608 = vmatprep.subr.mxu0 0.0
    %1609 = vmatpush2.msra.mxu0 0.0
    %1610 = vmatprep.subr.mxu0 0.0
    %1611 = vmatpush2.msra.mxu0 0.0
    %1612 = vmatprep.subr.mxu0 0.0
    %1613 = vmatpush2.msra.mxu0 0.0
    %1614 = vmatprep.subr.mxu0 0.0
    %1615 = vmatpush2.msra.mxu0 0.0
    %1616 = vmatprep.subr.mxu0 0.0
    %1617 = vmatpush2.msra.mxu0 0.0
    %1618 = vmatprep.subr.mxu0 0.0
    %1619 = vmatpush2.msra.mxu0 0.0
    %1620 = vmatprep.subr.mxu0 0.0
    %1621 = vmatpush2.msra.mxu0 0.0
    %1622 = vmatprep.subr.mxu0 0.0
    %1623 = vmatpush2.msra.mxu0 0.0
    %1624 = vmatprep.subr.mxu0 0.0
    %1625 = vmatpush2.msra.mxu0 0.0
    %1626 = vmatprep.mubr.f32.mxu0 0.0
    %1627 = vmatmul.mubr.f32.gmra.mxu0 %v1311
    %v1628 = vpop.f32.mrf.mxu0
    %v1629 = vadd.f32 %v137, %v1628
    %v1630 = vpop.f32.mrf.mxu0
    %1631 = vdwg.mxu0
    %v1632 = vadd.f32 %v1559, %v1629
    %v1633 = vxor.u32 %v1632, 2147483648
    %v1634 = vmul.f32 %v1633, 1.442695
    %v1635 = vpow.pop %v1634
    %v1636 = vadd.f32 %v1635, 1.0
    %v1637 = vrcp.pop %v1636
    %v1638 = vmul.f32 1.0, %v1637
    %1640 = vrot.lane.b32.xlu0 %v1629, 96
    %v1641 = vpop.permute.xlu0 %1640
    %v1643 = vmul.f32 %v1638, %v1641
    %1645 = vrot.lane.b32.xlu0 %v1643, 32
    %v1646 = vpop.permute.xlu0 %1645
    %v1648 = vadd.f32 %v1559, %v1646
    %v1649 = vtanh.pop %v1648
    %v1650 = vsub.f32 1.0, %v1638
    %1652 = vrot.lane.b32.xlu0 %v1649, 112
    %v1653 = vpop.permute.xlu0 %1652
    %v1655 = vmul.f32 %v1650, %v1653
    %v1656 = vmul.f32 %v1638, %v1307
    %v1657 = vadd.f32 %v1655, %v1656
    %1659 = vrot.lane.b32.xlu0 %v1657, 112
    %v1660 = vpop.permute.xlu0 %1659
    %v1661 = vsel %vm139, %v1660, 0
    %1663 = vmatprep.subr.mxu0 0.0
    %1664 = vmatpush1.msra.mxu0 0.0
    %1665 = vmatprep.subr.mxu0 0.0
    %1666 = vmatpush1.msra.mxu0 0.0
    %1667 = vmatprep.subr.mxu0 0.0
    %1668 = vmatpush1.msra.mxu0 0.0
    %1669 = vmatprep.subr.mxu0 0.0
    %1670 = vmatpush1.msra.mxu0 0.0
    %1671 = vmatprep.subr.mxu0 0.0
    %1672 = vmatpush1.msra.mxu0 0.0
    %1673 = vmatprep.subr.mxu0 0.0
    %1674 = vmatpush1.msra.mxu0 0.0
    %1675 = vmatprep.subr.mxu0 0.0
    %1676 = vmatpush1.msra.mxu0 0.0
    %1677 = vmatprep.subr.mxu0 0.0
    %1678 = vmatpush1.msra.mxu0 0.0
    %1679 = vmatprep.subr.mxu0 0.0
    %1680 = vmatpush1.msra.mxu0 0.0
    %1681 = vmatprep.subr.mxu0 0.0
    %1682 = vmatpush1.msra.mxu0 0.0
    %1683 = vmatprep.subr.mxu0 0.0
    %1684 = vmatpush1.msra.mxu0 0.0
    %1685 = vmatprep.subr.mxu0 0.0
    %1686 = vmatpush1.msra.mxu0 0.0
    %1687 = vmatprep.subr.mxu0 0.0
    %1688 = vmatpush1.msra.mxu0 0.0
    %1689 = vmatprep.subr.mxu0 0.0
    %1690 = vmatpush1.msra.mxu0 0.0
    %1691 = vmatprep.subr.mxu0 0.0
    %1692 = vmatpush1.msra.mxu0 %v42
    %1693 = vmatprep.subr.mxu0 0.0
    %1694 = vmatpush1.msra.mxu0 %v41
    %1695 = vmatprep.subr.mxu0 0.0
    %1696 = vmatpush2.msra.mxu0 0.0
    %1697 = vmatprep.subr.mxu0 0.0
    %1698 = vmatpush2.msra.mxu0 0.0
    %1699 = vmatprep.subr.mxu0 0.0
    %1700 = vmatpush2.msra.mxu0 0.0
    %1701 = vmatprep.subr.mxu0 0.0
    %1702 = vmatpush2.msra.mxu0 0.0
    %1703 = vmatprep.subr.mxu0 0.0
    %1704 = vmatpush2.msra.mxu0 0.0
    %1705 = vmatprep.subr.mxu0 0.0
    %1706 = vmatpush2.msra.mxu0 0.0
    %1707 = vmatprep.subr.mxu0 0.0
    %1708 = vmatpush2.msra.mxu0 0.0
    %1709 = vmatprep.subr.mxu0 0.0
    %1710 = vmatpush2.msra.mxu0 0.0
    %1711 = vmatprep.subr.mxu0 0.0
    %1712 = vmatpush2.msra.mxu0 0.0
    %1713 = vmatprep.subr.mxu0 0.0
    %1714 = vmatpush2.msra.mxu0 0.0
    %1715 = vmatprep.subr.mxu0 0.0
    %1716 = vmatpush2.msra.mxu0 0.0
    %1717 = vmatprep.subr.mxu0 0.0
    %1718 = vmatpush2.msra.mxu0 0.0
    %1719 = vmatprep.subr.mxu0 0.0
    %1720 = vmatpush2.msra.mxu0 0.0
    %1721 = vmatprep.subr.mxu0 0.0
    %1722 = vmatpush2.msra.mxu0 0.0
    %1723 = vmatprep.subr.mxu0 0.0
    %1724 = vmatpush2.msra.mxu0 0.0
    %1725 = vmatprep.subr.mxu0 0.0
    %1726 = vmatpush2.msra.mxu0 0.0
    %1727 = vmatprep.mubr.f32.mxu0 0.0
    %1728 = vmatmul.mubr.f32.gmra.mxu0 %v1661
    %v1729 = vpop.f32.mrf.mxu0
    %v1730 = vadd.f32 %v246, %v1729
    %v1731 = vpop.f32.mrf.mxu0
    %1732 = vdwg.mxu0
    %v1733 = vsel %vm139, %v1483, 0
    %1735 = vmatprep.subr.mxu0 0.0
    %1736 = vmatpush1.msra.mxu0 0.0
    %1737 = vmatprep.subr.mxu0 0.0
    %1738 = vmatpush1.msra.mxu0 0.0
    %1739 = vmatprep.subr.mxu0 0.0
    %1740 = vmatpush1.msra.mxu0 0.0
    %1741 = vmatprep.subr.mxu0 0.0
    %1742 = vmatpush1.msra.mxu0 0.0
    %1743 = vmatprep.subr.mxu0 0.0
    %1744 = vmatpush1.msra.mxu0 0.0
    %1745 = vmatprep.subr.mxu0 0.0
    %1746 = vmatpush1.msra.mxu0 0.0
    %1747 = vmatprep.subr.mxu0 0.0
    %1748 = vmatpush1.msra.mxu0 0.0
    %1749 = vmatprep.subr.mxu0 0.0
    %1750 = vmatpush1.msra.mxu0 0.0
    %1751 = vmatprep.subr.mxu0 0.0
    %1752 = vmatpush1.msra.mxu0 0.0
    %1753 = vmatprep.subr.mxu0 0.0
    %1754 = vmatpush1.msra.mxu0 0.0
    %1755 = vmatprep.subr.mxu0 0.0
    %1756 = vmatpush1.msra.mxu0 0.0
    %1757 = vmatprep.subr.mxu0 0.0
    %1758 = vmatpush1.msra.mxu0 0.0
    %1759 = vmatprep.subr.mxu0 0.0
    %1760 = vmatpush1.msra.mxu0 0.0
    %1761 = vmatprep.subr.mxu0 0.0
    %1762 = vmatpush1.msra.mxu0 0.0
    %1763 = vmatprep.subr.mxu0 0.0
    %1764 = vmatpush1.msra.mxu0 %v44
    %1765 = vmatprep.subr.mxu0 0.0
    %1766 = vmatpush1.msra.mxu0 %v43
    %1767 = vmatprep.subr.mxu0 0.0
    %1768 = vmatpush2.msra.mxu0 0.0
    %1769 = vmatprep.subr.mxu0 0.0
    %1770 = vmatpush2.msra.mxu0 0.0
    %1771 = vmatprep.subr.mxu0 0.0
    %1772 = vmatpush2.msra.mxu0 0.0
    %1773 = vmatprep.subr.mxu0 0.0
    %1774 = vmatpush2.msra.mxu0 0.0
    %1775 = vmatprep.subr.mxu0 0.0
    %1776 = vmatpush2.msra.mxu0 0.0
    %1777 = vmatprep.subr.mxu0 0.0
    %1778 = vmatpush2.msra.mxu0 0.0
    %1779 = vmatprep.subr.mxu0 0.0
    %1780 = vmatpush2.msra.mxu0 0.0
    %1781 = vmatprep.subr.mxu0 0.0
    %1782 = vmatpush2.msra.mxu0 0.0
    %1783 = vmatprep.subr.mxu0 0.0
    %1784 = vmatpush2.msra.mxu0 0.0
    %1785 = vmatprep.subr.mxu0 0.0
    %1786 = vmatpush2.msra.mxu0 0.0
    %1787 = vmatprep.subr.mxu0 0.0
    %1788 = vmatpush2.msra.mxu0 0.0
    %1789 = vmatprep.subr.mxu0 0.0
    %1790 = vmatpush2.msra.mxu0 0.0
    %1791 = vmatprep.subr.mxu0 0.0
    %1792 = vmatpush2.msra.mxu0 0.0
    %1793 = vmatprep.subr.mxu0 0.0
    %1794 = vmatpush2.msra.mxu0 0.0
    %1795 = vmatprep.subr.mxu0 0.0
    %1796 = vmatpush2.msra.mxu0 0.0
    %1797 = vmatprep.subr.mxu0 0.0
    %1798 = vmatpush2.msra.mxu0 0.0
    %1799 = vmatprep.mubr.f32.mxu0 0.0
    %1800 = vmatmul.mubr.f32.gmra.mxu0 %v1733
    %v1801 = vpop.f32.mrf.mxu0
    %v1802 = vadd.f32 %v327, %v1801
    %v1803 = vpop.f32.mrf.mxu0
    %1804 = vdwg.mxu0
    %v1805 = vadd.f32 %v1730, %v1802
    %v1806 = vxor.u32 %v1805, 2147483648
    %v1807 = vmul.f32 %v1806, 1.442695
    %v1808 = vpow.pop %v1807
    %v1809 = vadd.f32 %v1808, 1.0
    %v1810 = vrcp.pop %v1809
    %v1811 = vmul.f32 1.0, %v1810
    %1813 = vrot.lane.b32.xlu0 %v1802, 96
    %v1814 = vpop.permute.xlu0 %1813
    %v1816 = vmul.f32 %v1811, %v1814
    %1818 = vrot.lane.b32.xlu0 %v1816, 32
    %v1819 = vpop.permute.xlu0 %1818
    %v1821 = vadd.f32 %v1730, %v1819
    %v1822 = vtanh.pop %v1821
    %v1823 = vsub.f32 1.0, %v1811
    %1825 = vrot.lane.b32.xlu0 %v1822, 112
    %v1826 = vpop.permute.xlu0 %1825
    %v1828 = vmul.f32 %v1823, %v1826
    %v1829 = vmul.f32 %v1811, %v1480
    %v1830 = vadd.f32 %v1828, %v1829
    %1832 = vrot.lane.b32.xlu0 %v1830, 112
    %v1833 = vpop.permute.xlu0 %1832
    %s1835 = scalar_lea.vmem %s10, 8
    %1836 = vst.msk [vmem:[%s1835] sm:$0x3] %vm435, %v1833
    %1838 = vst.msk [vmem:[#allocation2] sm:$0x3] %vm435, %v1660
    %s1839 = scalar_lea.vmem [#allocation2], 2
    %1840 = vst.msk [vmem:[%s1839] sm:$0x3] %vm435, %v1833
    // Predicated region
    $region42: #{gnn_forward.5} parent=1 // pred_check
      _
    $region43: #{gnn_forward.5} parent=1 // pred_check_branch
      %1842 = sbr.rel (0) target = $region45
    $region44: #{gnn_forward.5} parent=1 // pred_region
      _
    $region45: #{gnn_forward.5} parent=1 // pred_fallthru
      _
    // Predicated region
    $region46: #{gnn_forward.5} parent=1 // pred_check
      _
    $region47: #{gnn_forward.5} parent=1 // pred_check_branch
      %1844 = sbr.rel (0) target = $region49
    $region48: #{gnn_forward.5} parent=1 // pred_region
      %s1846 = ssub.s32 64, 64
      %1847 = vsyncadd [#allocation3], %s1846
      %s1848 = sshll.u32 [#allocation2], 4
      %s1849 = int_to_ptr.vmem [resolvable:$true] %s1848
      %1854 = dma.vmem_to_hbm [thread:$0]  %s1849, 64, %s11, [#allocation3], 32, 32, 2
    $region49: #{gnn_forward.5} parent=1 // pred_fallthru
      _
    // Predicated region
    $region50: #{gnn_forward.5} parent=1 // pred_check
      _
    $region51: #{gnn_forward.5} parent=1 // pred_check_branch
      %1856 = sbr.rel (0) target = $region53
    $region52: #{gnn_forward.5} parent=1 // pred_region
      _
    $region53: #{gnn_forward.5} parent=1 // pred_fallthru
      _
    // Predicated region
    $region54: #{gnn_forward.5} parent=1 // pred_check
      _
    $region55: #{gnn_forward.5} parent=1 // pred_check_branch
      %1858 = sbr.rel (0) target = $region57
    $region56: #{gnn_forward.5} parent=1 // pred_region
      %1859 = dma.done [#allocation3], 64
    $region57: #{gnn_forward.5} parent=1 // pred_fallthru
      _
    %1860 = vsyncpa [#allocation3], 1

// kernel: gnn_forward.7
$region0: #{gnn_forward.7}
  #allocation0 [shape = 'u32[]', space=smem, size = 0x4, offset = 0x4, fixed_abs, tag = 'smem constant byte address 0x4 - core index']
  #allocation1 [shape = 'u32[144,128]{1,0:T(1,128)}', space=vmem, size = 0x12000, scoped, tag = 'internal scratch']
  #allocation2 [shape = 'f32[1]{0:T(128)S(6)}', space=smem, size = 0x200, scoped, tag = 'scoped memory for gnn_forward.7']
  %s0 = inlined_call_operand.vmem [shape: f32[2,80], index: 0, kind: input, shape index: {}]
  %s1 = inlined_call_operand.vmem [shape: f32[80,256], index: 1, kind: input, shape index: {}]
  %s2 = inlined_call_operand.vmem [shape: f32[1,256], index: 2, kind: input, shape index: {}]
  %s3 = inlined_call_operand.vmem [shape: f32[256,64], index: 3, kind: input, shape index: {}]
  %s4 = inlined_call_operand.vmem [shape: f32[1,64], index: 4, kind: input, shape index: {}]
  %s5 = inlined_call_operand.vmem [shape: f32[64,2], index: 5, kind: input, shape index: {}]
  %s6 = inlined_call_operand.vmem [shape: f32[1,2], index: 6, kind: input, shape index: {}]
  %s7 = inlined_call_operand.vmem [shape: f32[2,10,8], index: 7, kind: input, shape index: {}]
  %s8 = inlined_call_operand.vmem [shape: f32[1,8], index: 8, kind: input, shape index: {}]
  %s9 = inlined_call_operand.vmem [shape: f32[10,2], index: 9, kind: input, shape index: {}]
  %s10 = inlined_call_operand.vmem [shape: f32[1,2], index: 10, kind: input, shape index: {}]
  %s11 = inlined_call_operand.<no memory space> [shape: f32[1], index: 11, kind: input, shape index: {}]
  %s12 = inlined_call_operand.vmem [shape: f32[2], index: 12, kind: input, shape index: {}]
  %s13 = inlined_call_operand.hbm [shape: f32[2,2], index: 13, kind: output, shape index: {}]
  %s14 = sld [smem:[#allocation0]]
  $region66: #{gnn_forward.7} parent=0
    _
  %s16 = ssub.s32 1, %s14
  %s17 = scalar_select 0, %s16, %s14
  %18 = sst [smem:[#allocation2]] %s11
  $region1: #{gnn_forward.7} parent=0
    #allocation3 [shape = 'u8[512]{0}', space=smem, size = 0x200, scoped, tag = 'input window, operand 12, single buffered']
    #allocation4 [shape = 's32[1]{0}', space=sflag, size = 0x4, scoped, tag = 'scoped memory for gnn_forward.7']
    #allocation5 [shape = 's32[1]{0}', space=sflag, size = 0x4, scoped, tag = 'scoped memory for gnn_forward.7']
    #allocation6 [shape = 'u8[1024]{0}', space=vmem, size = 0x400, scoped, tag = 'output window, operand 0, single buffered']
    %19 = vsyncpa [#allocation5], 0
    %20 = vsyncpa [#allocation4], 0
    // Predicated region
    $region2: #{gnn_forward.7} parent=1 // pred_check
      _
    $region3: #{gnn_forward.7} parent=1 // pred_check_branch
      %22 = sbr.rel (0) target = $region5
    $region4: #{gnn_forward.7} parent=1 // pred_region
      _
    $region5: #{gnn_forward.7} parent=1 // pred_fallthru
      _
    // Predicated region
    $region6: #{gnn_forward.7} parent=1 // pred_check
      _
    $region7: #{gnn_forward.7} parent=1 // pred_check_branch
      %24 = sbr.rel (0) target = $region9
    $region8: #{gnn_forward.7} parent=1 // pred_region
      _
    $region9: #{gnn_forward.7} parent=1 // pred_fallthru
      _
    // Predicated region
    $region10: #{gnn_forward.7} parent=1 // pred_check
      _
    $region11: #{gnn_forward.7} parent=1 // pred_check_branch
      %26 = sbr.rel (0) target = $region13
    $region12: #{gnn_forward.7} parent=1 // pred_region
      _
    $region13: #{gnn_forward.7} parent=1 // pred_fallthru
      _
    // Predicated region
    $region14: #{gnn_forward.7} parent=1 // pred_check
      _
    $region15: #{gnn_forward.7} parent=1 // pred_check_branch
      %28 = sbr.rel (0) target = $region17
    $region16: #{gnn_forward.7} parent=1 // pred_region
      _
    $region17: #{gnn_forward.7} parent=1 // pred_fallthru
      _
    // Predicated region
    $region18: #{gnn_forward.7} parent=1 // pred_check
      _
    $region19: #{gnn_forward.7} parent=1 // pred_check_branch
      %30 = sbr.rel (0) target = $region21
    $region20: #{gnn_forward.7} parent=1 // pred_region
      _
    $region21: #{gnn_forward.7} parent=1 // pred_fallthru
      _
    // Predicated region
    $region22: #{gnn_forward.7} parent=1 // pred_check
      _
    $region23: #{gnn_forward.7} parent=1 // pred_check_branch
      %32 = sbr.rel (0) target = $region25
    $region24: #{gnn_forward.7} parent=1 // pred_region
      _
    $region25: #{gnn_forward.7} parent=1 // pred_fallthru
      _
    // Predicated region
    $region26: #{gnn_forward.7} parent=1 // pred_check
      _
    $region27: #{gnn_forward.7} parent=1 // pred_check_branch
      %34 = sbr.rel (0) target = $region29
    $region28: #{gnn_forward.7} parent=1 // pred_region
      _
    $region29: #{gnn_forward.7} parent=1 // pred_fallthru
      _
    // Predicated region
    $region30: #{gnn_forward.7} parent=1 // pred_check
      _
    $region31: #{gnn_forward.7} parent=1 // pred_check_branch
      %36 = sbr.rel (0) target = $region33
    $region32: #{gnn_forward.7} parent=1 // pred_region
      _
    $region33: #{gnn_forward.7} parent=1 // pred_fallthru
      _
    // Predicated region
    $region34: #{gnn_forward.7} parent=1 // pred_check
      _
    $region35: #{gnn_forward.7} parent=1 // pred_check_branch
      %38 = sbr.rel (0) target = $region37
    $region36: #{gnn_forward.7} parent=1 // pred_region
      _
    $region37: #{gnn_forward.7} parent=1 // pred_fallthru
      _
    // Predicated region
    $region38: #{gnn_forward.7} parent=1 // pred_check
      _
    $region39: #{gnn_forward.7} parent=1 // pred_check_branch
      %40 = sbr.rel (0) target = $region41
    $region40: #{gnn_forward.7} parent=1 // pred_region
      _
    $region41: #{gnn_forward.7} parent=1 // pred_fallthru
      _
    // Predicated region
    $region42: #{gnn_forward.7} parent=1 // pred_check
      _
    $region43: #{gnn_forward.7} parent=1 // pred_check_branch
      %42 = sbr.rel (0) target = $region45
    $region44: #{gnn_forward.7} parent=1 // pred_region
      _
    $region45: #{gnn_forward.7} parent=1 // pred_fallthru
      _
    // Predicated region
    $region46: #{gnn_forward.7} parent=1 // pred_check
      _
    $region47: #{gnn_forward.7} parent=1 // pred_check_branch
      %44 = sbr.rel (0) target = $region49
    $region48: #{gnn_forward.7} parent=1 // pred_region
      _
    $region49: #{gnn_forward.7} parent=1 // pred_fallthru
      _
    // Predicated region
    $region50: #{gnn_forward.7} parent=1 // pred_check
      _
    $region51: #{gnn_forward.7} parent=1 // pred_check_branch
      %46 = sbr.rel (0) target = $region53
    $region52: #{gnn_forward.7} parent=1 // pred_region
      %s48 = ssub.s32 16, 16
      %49 = vsyncadd [#allocation5], %s48
      %s51 = sshll.u32 %s12, 4
      %s52 = int_to_ptr.vmem [resolvable:$true] %s51
      %54 = dma.vmem_to_smem %s52, 16, [#allocation3], [#allocation5]
    $region53: #{gnn_forward.7} parent=1 // pred_fallthru
      _
    // Predicated region
    $region54: #{gnn_forward.7} parent=1 // pred_check
      _
    $region55: #{gnn_forward.7} parent=1 // pred_check_branch
      %56 = sbr.rel (0) target = $region57
    $region56: #{gnn_forward.7} parent=1 // pred_region
      %57 = dma.done [#allocation5], 16
    $region57: #{gnn_forward.7} parent=1 // pred_fallthru
      _
    %58 = sfence
    %v60 = vld [vmem:[%s0] sm:$0x3]
    %v61 = vld [vmem:[%s1] sm:$0xff]
    %v62 = vld [vmem:[%s1 + $0x8] sm:$0xff]
    %v63 = vld [vmem:[%s1 + $0x10] sm:$0xff]
    %v64 = vld [vmem:[%s1 + $0x18] sm:$0xff]
    %v65 = vld [vmem:[%s1 + $0x20] sm:$0xff]
    %v66 = vld [vmem:[%s1 + $0x28] sm:$0xff]
    %v67 = vld [vmem:[%s1 + $0x30] sm:$0xff]
    %v68 = vld [vmem:[%s1 + $0x38] sm:$0xff]
    %v69 = vld [vmem:[%s1 + $0x40] sm:$0xff]
    %v70 = vld [vmem:[%s1 + $0x48] sm:$0xff]
    %v71 = vld [vmem:[%s1 + $0x50] sm:$0xff]
    %v72 = vld [vmem:[%s1 + $0x58] sm:$0xff]
    %v73 = vld [vmem:[%s1 + $0x60] sm:$0xff]
    %v74 = vld [vmem:[%s1 + $0x68] sm:$0xff]
    %v75 = vld [vmem:[%s1 + $0x70] sm:$0xff]
    %v76 = vld [vmem:[%s1 + $0x78] sm:$0xff]
    %v77 = vld [vmem:[%s1 + $0x80] sm:$0xff]
    %v78 = vld [vmem:[%s1 + $0x88] sm:$0xff]
    %v79 = vld [vmem:[%s1 + $0x90] sm:$0xff]
    %v80 = vld [vmem:[%s1 + $0x98] sm:$0xff]
    %v81 = vpack.c.bf16 %v60, %v60
    %v82 = vpack.c.bf16 %v63, %v61
    %v83 = vpack.c.bf16 %v64, %v62
    %v84 = vpack.c.bf16 %v67, %v65
    %v85 = vpack.c.bf16 %v68, %v66
    %v86 = vpack.c.bf16 %v71, %v69
    %v87 = vpack.c.bf16 %v72, %v70
    %v88 = vpack.c.bf16 %v75, %v73
    %v89 = vpack.c.bf16 %v76, %v74
    %v90 = vpack.c.bf16 %v79, %v77
    %v91 = vpack.c.bf16 %v80, %v78
    %v92 = vld [vmem:[%s2] sm:$0x3]
    %v94 = vlaneseq
    %v95 = vshrl.u32 %v94, 7
    %v96 = vsub.s32 0, %v95
    %v97 = vrot.slane %v92, %v96
    %v98 = vlaneseq
    %v99 = vshrl.u32 %v98, 7
    %v100 = vsub.s32 1, %v99
    %v101 = vrot.slane %v92, %v100
    %vm104 = vcmask 654336
    %v106 = vsel %vm104, %v81, 0
    %108 = vmatprep.subr.bf16.mxu0 0
    %109 = vmatpush1.bf16.msra.mxu0 0
    %110 = vmatprep.subr.bf16.mxu0 0
    %111 = vmatpush1.bf16.msra.mxu0 0
    %112 = vmatprep.subr.bf16.mxu0 0
    %113 = vmatpush1.bf16.msra.mxu0 0
    %114 = vmatprep.subr.bf16.mxu0 %v91
    %115 = vmatpush1.bf16.msra.mxu0 %v90
    %116 = vmatprep.subr.bf16.mxu0 %v89
    %117 = vmatpush1.bf16.msra.mxu0 %v88
    %118 = vmatprep.subr.bf16.mxu0 %v87
    %119 = vmatpush1.bf16.msra.mxu0 %v86
    %120 = vmatprep.subr.bf16.mxu0 %v85
    %121 = vmatpush1.bf16.msra.mxu0 %v84
    %122 = vmatprep.subr.bf16.mxu0 %v83
    %123 = vmatpush1.bf16.msra.mxu0 %v82
    %124 = vmatprep.subr.bf16.mxu0 0
    %125 = vmatpush2.bf16.msra.mxu0 0
    %126 = vmatprep.subr.bf16.mxu0 0
    %127 = vmatpush2.bf16.msra.mxu0 0
    %128 = vmatprep.subr.bf16.mxu0 0
    %129 = vmatpush2.bf16.msra.mxu0 0
    %130 = vmatprep.subr.bf16.mxu0 0
    %131 = vmatpush2.bf16.msra.mxu0 0
    %132 = vmatprep.subr.bf16.mxu0 0
    %133 = vmatpush2.bf16.msra.mxu0 0
    %134 = vmatprep.subr.bf16.mxu0 0
    %135 = vmatpush2.bf16.msra.mxu0 0
    %136 = vmatprep.subr.bf16.mxu0 0
    %137 = vmatpush2.bf16.msra.mxu0 0
    %138 = vmatprep.subr.bf16.mxu0 0
    %139 = vmatpush2.bf16.msra.mxu0 0
    %140 = vmatprep.mubr.bf16.mxu0 0
    %141 = vmatmul.mubr.bf16.gmra.mxu0 %v106
    %v142 = vpop.f32.mrf.mxu0
    %v143 = vadd.f32 %v97, %v142
    %v144 = vpop.f32.mrf.mxu0
    %v145 = vadd.f32 %v101, %v144
    %v146 = vpop.f32.mrf.mxu0
    %v147 = vpop.f32.mrf.mxu0
    %148 = vdwg.mxu0
    %v149 = vmax.f32 %v143, 0.0
    %v150 = vmax.f32 %v145, 0.0
    %v151 = vld [vmem:[%s3] sm:$0xff]
    %v152 = vld [vmem:[%s3 + $0x8] sm:$0xff]
    %v153 = vld [vmem:[%s3 + $0x10] sm:$0xff]
    %v154 = vld [vmem:[%s3 + $0x18] sm:$0xff]
    %v155 = vld [vmem:[%s3 + $0x20] sm:$0xff]
    %v156 = vld [vmem:[%s3 + $0x28] sm:$0xff]
    %v157 = vld [vmem:[%s3 + $0x30] sm:$0xff]
    %v158 = vld [vmem:[%s3 + $0x38] sm:$0xff]
    %v159 = vld [vmem:[%s3 + $0x40] sm:$0xff]
    %v160 = vld [vmem:[%s3 + $0x48] sm:$0xff]
    %v161 = vld [vmem:[%s3 + $0x50] sm:$0xff]
    %v162 = vld [vmem:[%s3 + $0x58] sm:$0xff]
    %v163 = vld [vmem:[%s3 + $0x60] sm:$0xff]
    %v164 = vld [vmem:[%s3 + $0x68] sm:$0xff]
    %v165 = vld [vmem:[%s3 + $0x70] sm:$0xff]
    %v166 = vld [vmem:[%s3 + $0x78] sm:$0xff]
    %v167 = vld [vmem:[%s3 + $0x80] sm:$0xff]
    %v168 = vld [vmem:[%s3 + $0x88] sm:$0xff]
    %v169 = vld [vmem:[%s3 + $0x90] sm:$0xff]
    %v170 = vld [vmem:[%s3 + $0x98] sm:$0xff]
    %v171 = vld [vmem:[%s3 + $0xa0] sm:$0xff]
    %v172 = vld [vmem:[%s3 + $0xa8] sm:$0xff]
    %v173 = vld [vmem:[%s3 + $0xb0] sm:$0xff]
    %v174 = vld [vmem:[%s3 + $0xb8] sm:$0xff]
    %v175 = vld [vmem:[%s3 + $0xc0] sm:$0xff]
    %v176 = vld [vmem:[%s3 + $0xc8] sm:$0xff]
    %v177 = vld [vmem:[%s3 + $0xd0] sm:$0xff]
    %v178 = vld [vmem:[%s3 + $0xd8] sm:$0xff]
    %v179 = vld [vmem:[%s3 + $0xe0] sm:$0xff]
    %v180 = vld [vmem:[%s3 + $0xe8] sm:$0xff]
    %v181 = vld [vmem:[%s3 + $0xf0] sm:$0xff]
    %v182 = vld [vmem:[%s3 + $0xf8] sm:$0xff]
    %v183 = vpack.c.bf16 %v149, %v149
    %v184 = vpack.c.bf16 %v150, %v150
    %v185 = vpack.c.bf16 %v152, %v151
    %v186 = vpack.c.bf16 %v154, %v153
    %v187 = vpack.c.bf16 %v156, %v155
    %v188 = vpack.c.bf16 %v158, %v157
    %v189 = vpack.c.bf16 %v160, %v159
    %v190 = vpack.c.bf16 %v162, %v161
    %v191 = vpack.c.bf16 %v164, %v163
    %v192 = vpack.c.bf16 %v166, %v165
    %v193 = vpack.c.bf16 %v168, %v167
    %v194 = vpack.c.bf16 %v170, %v169
    %v195 = vpack.c.bf16 %v172, %v171
    %v196 = vpack.c.bf16 %v174, %v173
    %v197 = vpack.c.bf16 %v176, %v175
    %v198 = vpack.c.bf16 %v178, %v177
    %v199 = vpack.c.bf16 %v180, %v179
    %v200 = vpack.c.bf16 %v182, %v181
    %v201 = vld [vmem:[%s4] sm:$0x1]
    %v203 = vlaneseq
    %v204 = vshrl.u32 %v203, 7
    %v205 = vsub.s32 0, %v204
    %v206 = vrot.slane %v201, %v205
    %208 = vmatprep.subr.bf16.mxu0 0
    %209 = vmatpush1.bf16.msra.mxu0 %v192
    %210 = vmatprep.subr.bf16.mxu0 0
    %211 = vmatpush1.bf16.msra.mxu0 %v191
    %212 = vmatprep.subr.bf16.mxu0 0
    %213 = vmatpush1.bf16.msra.mxu0 %v190
    %214 = vmatprep.subr.bf16.mxu0 0
    %215 = vmatpush1.bf16.msra.mxu0 %v189
    %216 = vmatprep.subr.bf16.mxu0 0
    %217 = vmatpush1.bf16.msra.mxu0 %v188
    %218 = vmatprep.subr.bf16.mxu0 0
    %219 = vmatpush1.bf16.msra.mxu0 %v187
    %220 = vmatprep.subr.bf16.mxu0 0
    %221 = vmatpush1.bf16.msra.mxu0 %v186
    %222 = vmatprep.subr.bf16.mxu0 0
    %223 = vmatpush1.bf16.msra.mxu0 %v185
    %224 = vmatprep.subr.bf16.mxu0 0
    %225 = vmatpush2.bf16.msra.mxu0 %v200
    %226 = vmatprep.subr.bf16.mxu0 0
    %227 = vmatpush2.bf16.msra.mxu0 %v199
    %228 = vmatprep.subr.bf16.mxu0 0
    %229 = vmatpush2.bf16.msra.mxu0 %v198
    %230 = vmatprep.subr.bf16.mxu0 0
    %231 = vmatpush2.bf16.msra.mxu0 %v197
    %232 = vmatprep.subr.bf16.mxu0 0
    %233 = vmatpush2.bf16.msra.mxu0 %v196
    %234 = vmatprep.subr.bf16.mxu0 0
    %235 = vmatpush2.bf16.msra.mxu0 %v195
    %236 = vmatprep.subr.bf16.mxu0 0
    %237 = vmatpush2.bf16.msra.mxu0 %v194
    %238 = vmatprep.subr.bf16.mxu0 0
    %239 = vmatpush2.bf16.msra.mxu0 %v193
    %240 = vmatprep.mubr.bf16.mxu0 %v184
    %241 = vmatmul.mubr.bf16.gmra.mxu0 %v183
    %v242 = vpop.f32.mrf.mxu0
    %v243 = vadd.f32 %v206, %v242
    %v244 = vpop.f32.mrf.mxu0
    %v245 = vpop.f32.mrf.mxu0
    %v246 = vpop.f32.mrf.mxu0
    %247 = vdwg.mxu0
    %v248 = vmax.f32 %v243, 0.0
    %v249 = vld [vmem:[%s5] sm:$0xff]
    %v250 = vld [vmem:[%s5 + $0x8] sm:$0xff]
    %v251 = vld [vmem:[%s5 + $0x10] sm:$0xff]
    %v252 = vld [vmem:[%s5 + $0x18] sm:$0xff]
    %v253 = vld [vmem:[%s5 + $0x20] sm:$0xff]
    %v254 = vld [vmem:[%s5 + $0x28] sm:$0xff]
    %v255 = vld [vmem:[%s5 + $0x30] sm:$0xff]
    %v256 = vld [vmem:[%s5 + $0x38] sm:$0xff]
    %v257 = vld [vmem:[%s6] sm:$0x1]
    %v259 = vlaneseq
    %v260 = vshrl.u32 %v259, 7
    %v261 = vsub.s32 0, %v260
    %v262 = vrot.slane %v257, %v261
    %vm264 = vcmask 523264
    %v266 = vsel %vm264, %v248, 0
    %268 = vmatprep.subr.mxu0 0.0
    %269 = vmatpush1.msra.mxu0 0.0
    %270 = vmatprep.subr.mxu0 0.0
    %271 = vmatpush1.msra.mxu0 0.0
    %272 = vmatprep.subr.mxu0 0.0
    %273 = vmatpush1.msra.mxu0 0.0
    %274 = vmatprep.subr.mxu0 0.0
    %275 = vmatpush1.msra.mxu0 0.0
    %276 = vmatprep.subr.mxu0 0.0
    %277 = vmatpush1.msra.mxu0 0.0
    %278 = vmatprep.subr.mxu0 0.0
    %279 = vmatpush1.msra.mxu0 0.0
    %280 = vmatprep.subr.mxu0 0.0
    %281 = vmatpush1.msra.mxu0 0.0
    %282 = vmatprep.subr.mxu0 0.0
    %283 = vmatpush1.msra.mxu0 0.0
    %284 = vmatprep.subr.mxu0 0.0
    %285 = vmatpush1.msra.mxu0 %v256
    %286 = vmatprep.subr.mxu0 0.0
    %287 = vmatpush1.msra.mxu0 %v255
    %288 = vmatprep.subr.mxu0 0.0
    %289 = vmatpush1.msra.mxu0 %v254
    %290 = vmatprep.subr.mxu0 0.0
    %291 = vmatpush1.msra.mxu0 %v253
    %292 = vmatprep.subr.mxu0 0.0
    %293 = vmatpush1.msra.mxu0 %v252
    %294 = vmatprep.subr.mxu0 0.0
    %295 = vmatpush1.msra.mxu0 %v251
    %296 = vmatprep.subr.mxu0 0.0
    %297 = vmatpush1.msra.mxu0 %v250
    %298 = vmatprep.subr.mxu0 0.0
    %299 = vmatpush1.msra.mxu0 %v249
    %300 = vmatprep.subr.mxu0 0.0
    %301 = vmatpush2.msra.mxu0 0.0
    %302 = vmatprep.subr.mxu0 0.0
    %303 = vmatpush2.msra.mxu0 0.0
    %304 = vmatprep.subr.mxu0 0.0
    %305 = vmatpush2.msra.mxu0 0.0
    %306 = vmatprep.subr.mxu0 0.0
    %307 = vmatpush2.msra.mxu0 0.0
    %308 = vmatprep.subr.mxu0 0.0
    %309 = vmatpush2.msra.mxu0 0.0
    %310 = vmatprep.subr.mxu0 0.0
    %311 = vmatpush2.msra.mxu0 0.0
    %312 = vmatprep.subr.mxu0 0.0
    %313 = vmatpush2.msra.mxu0 0.0
    %314 = vmatprep.subr.mxu0 0.0
    %315 = vmatpush2.msra.mxu0 0.0
    %316 = vmatprep.subr.mxu0 0.0
    %317 = vmatpush2.msra.mxu0 0.0
    %318 = vmatprep.subr.mxu0 0.0
    %319 = vmatpush2.msra.mxu0 0.0
    %320 = vmatprep.subr.mxu0 0.0
    %321 = vmatpush2.msra.mxu0 0.0
    %322 = vmatprep.subr.mxu0 0.0
    %323 = vmatpush2.msra.mxu0 0.0
    %324 = vmatprep.subr.mxu0 0.0
    %325 = vmatpush2.msra.mxu0 0.0
    %326 = vmatprep.subr.mxu0 0.0
    %327 = vmatpush2.msra.mxu0 0.0
    %328 = vmatprep.subr.mxu0 0.0
    %329 = vmatpush2.msra.mxu0 0.0
    %330 = vmatprep.subr.mxu0 0.0
    %331 = vmatpush2.msra.mxu0 0.0
    %332 = vmatprep.mubr.f32.mxu0 0.0
    %333 = vmatmul.mubr.f32.gmra.mxu0 %v266
    %v334 = vpop.f32.mrf.mxu0
    %v335 = vadd.f32 %v262, %v334
    %v336 = vpop.f32.mrf.mxu0
    %337 = vdwg.mxu0
    %v338 = vld [vmem:[%s7] sm:$0xff]
    %v339 = vld [vmem:[%s7 + $0x8] sm:$0x3]
    %v340 = vld [vmem:[%s7 + $0x10] sm:$0xff]
    %v341 = vld [vmem:[%s7 + $0x18] sm:$0x3]
    %v342 = vld [vmem:[%s8] sm:$0x1]
    %v344 = vlaneseq
    %v345 = vshrl.u32 %v344, 7
    %v346 = vsub.s32 0, %v345
    %v347 = vrot.slane %v342, %v346
    %v349 = vmul.f32 %v338, %v347
    %v350 = vmul.f32 %v339, %v347
    %v351 = vmul.f32 %v340, %v347
    %v352 = vmul.f32 %v341, %v347
    %vm353 = vcmask 64512
    %v354 = vsel %vm353, %v349, 0.0
    %355 = vadd.xlane.f32.xlu0 %v354
    %v356 = vpop.xlane.xlu0 %355
    %vm357 = vcmask 58368
    %v358 = vsel %vm357, %v350, 0.0
    %359 = vadd.xlane.f32.xlu0 %v358
    %v360 = vpop.xlane.xlu0 %359
    %v361 = vsel %vm353, %v351, 0.0
    %362 = vadd.xlane.f32.xlu0 %v361
    %v363 = vpop.xlane.xlu0 %362
    %v364 = vsel %vm357, %v352, 0.0
    %365 = vadd.xlane.f32.xlu0 %v364
    %v366 = vpop.xlane.xlu0 %365
    %s367 = sld [smem:[#allocation2]]
    %v368 = vstv %s367
    %v369 = vadd.f32 %v356, %v368
    %v370 = vadd.f32 %v360, %v368
    %v371 = vadd.f32 %v363, %v368
    %v372 = vadd.f32 %v366, %v368
    %v373 = vld [vmem:[%s9] sm:$0xff]
    %v374 = vld [vmem:[%s9 + $0x8] sm:$0x3]
    %v375 = vld [vmem:[%s10] sm:$0x1]
    %v377 = vlaneseq
    %v378 = vshrl.u32 %v377, 7
    %v379 = vsub.s32 0, %v378
    %v380 = vrot.slane %v375, %v379
    %v386 = vlaneseq
    %v387 = vand.u32 %v386, 127
    %v388 = vlaneseq
    %v389 = vshrl.u32 %v388, 7
    %v390 = vsub.s32 %v387, %v389
    %v391 = vrot.slane %v369, %v390
    %v392 = vadd.s32 %v387, 4294967288
    %v393 = vlaneseq
    %v394 = vshrl.u32 %v393, 7
    %v395 = vsub.s32 %v392, %v394
    %v396 = vrot.slane %v370, %v395
    %vm397 = vcmask 130112
    %v398 = vsel %vm397, %v396, %v391
    %v399 = vlaneseq
    %v400 = vshrl.u32 %v399, 7
    %v401 = vsub.s32 %v387, %v400
    %v402 = vrot.slane %v371, %v401
    %v403 = vlaneseq
    %v404 = vshrl.u32 %v403, 7
    %v405 = vsub.s32 %v392, %v404
    %v406 = vrot.slane %v372, %v405
    %v407 = vsel %vm397, %v406, %v402
    %vm408 = vcmask 1041409
    %v409 = vsel %vm408, %v407, %v398
    %vm410 = vcmask 80896
    %v411 = vsel %vm410, %v409, 0
    %vm413 = vcmask 1041408
    %v415 = vsel %vm413, %v374, 0
    %417 = vmatprep.subr.mxu0 0.0
    %418 = vmatpush1.msra.mxu0 0.0
    %419 = vmatprep.subr.mxu0 0.0
    %420 = vmatpush1.msra.mxu0 0.0
    %421 = vmatprep.subr.mxu0 0.0
    %422 = vmatpush1.msra.mxu0 0.0
    %423 = vmatprep.subr.mxu0 0.0
    %424 = vmatpush1.msra.mxu0 0.0
    %425 = vmatprep.subr.mxu0 0.0
    %426 = vmatpush1.msra.mxu0 0.0
    %427 = vmatprep.subr.mxu0 0.0
    %428 = vmatpush1.msra.mxu0 0.0
    %429 = vmatprep.subr.mxu0 0.0
    %430 = vmatpush1.msra.mxu0 0.0
    %431 = vmatprep.subr.mxu0 0.0
    %432 = vmatpush1.msra.mxu0 0.0
    %433 = vmatprep.subr.mxu0 0.0
    %434 = vmatpush1.msra.mxu0 0.0
    %435 = vmatprep.subr.mxu0 0.0
    %436 = vmatpush1.msra.mxu0 0.0
    %437 = vmatprep.subr.mxu0 0.0
    %438 = vmatpush1.msra.mxu0 0.0
    %439 = vmatprep.subr.mxu0 0.0
    %440 = vmatpush1.msra.mxu0 0.0
    %441 = vmatprep.subr.mxu0 0.0
    %442 = vmatpush1.msra.mxu0 0.0
    %443 = vmatprep.subr.mxu0 0.0
    %444 = vmatpush1.msra.mxu0 0.0
    %445 = vmatprep.subr.mxu0 0.0
    %446 = vmatpush1.msra.mxu0 %v415
    %447 = vmatprep.subr.mxu0 0.0
    %448 = vmatpush1.msra.mxu0 %v373
    %449 = vmatprep.subr.mxu0 0.0
    %450 = vmatpush2.msra.mxu0 0.0
    %451 = vmatprep.subr.mxu0 0.0
    %452 = vmatpush2.msra.mxu0 0.0
    %453 = vmatprep.subr.mxu0 0.0
    %454 = vmatpush2.msra.mxu0 0.0
    %455 = vmatprep.subr.mxu0 0.0
    %456 = vmatpush2.msra.mxu0 0.0
    %457 = vmatprep.subr.mxu0 0.0
    %458 = vmatpush2.msra.mxu0 0.0
    %459 = vmatprep.subr.mxu0 0.0
    %460 = vmatpush2.msra.mxu0 0.0
    %461 = vmatprep.subr.mxu0 0.0
    %462 = vmatpush2.msra.mxu0 0.0
    %463 = vmatprep.subr.mxu0 0.0
    %464 = vmatpush2.msra.mxu0 0.0
    %465 = vmatprep.subr.mxu0 0.0
    %466 = vmatpush2.msra.mxu0 0.0
    %467 = vmatprep.subr.mxu0 0.0
    %468 = vmatpush2.msra.mxu0 0.0
    %469 = vmatprep.subr.mxu0 0.0
    %470 = vmatpush2.msra.mxu0 0.0
    %471 = vmatprep.subr.mxu0 0.0
    %472 = vmatpush2.msra.mxu0 0.0
    %473 = vmatprep.subr.mxu0 0.0
    %474 = vmatpush2.msra.mxu0 0.0
    %475 = vmatprep.subr.mxu0 0.0
    %476 = vmatpush2.msra.mxu0 0.0
    %477 = vmatprep.subr.mxu0 0.0
    %478 = vmatpush2.msra.mxu0 0.0
    %479 = vmatprep.subr.mxu0 0.0
    %480 = vmatpush2.msra.mxu0 0.0
    %481 = vmatprep.mubr.f32.mxu0 0.0
    %482 = vmatmul.mubr.f32.gmra.mxu0 %v411
    %v483 = vpop.f32.mrf.mxu0
    %v484 = vadd.f32 %v380, %v483
    %v485 = vpop.f32.mrf.mxu0
    %486 = vdwg.mxu0
    %s487 = sld [smem:[#allocation3]]
    %v488 = vstv %s487
    %v489 = vmul.f32 %v335, %v488
    %s490 = sld [smem:[#allocation3 + $0x1]]
    %v491 = vstv %s490
    %v492 = vmul.f32 %v484, %v491
    %v493 = vadd.f32 %v489, %v492
    %v494 = vxor.u32 %v493, 2147483648
    %v495 = vmul.f32 %v494, 1.442695
    %v496 = vpow.pop %v495
    %v497 = vadd.f32 %v496, 1.0
    %v498 = vrcp.pop %v497
    %v499 = vmul.f32 1.0, %v498
    %vm500 = vcmask 9216
    %501 = vst.msk [vmem:[#allocation6] sm:$0x3] %vm500, %v499
    // Predicated region
    $region58: #{gnn_forward.7} parent=1 // pred_check
      _
    $region59: #{gnn_forward.7} parent=1 // pred_check_branch
      %503 = sbr.rel (0) target = $region61
    $region60: #{gnn_forward.7} parent=1 // pred_region
      %s505 = ssub.s32 32, 32
      %506 = vsyncadd [#allocation4], %s505
      %s508 = sshll.u32 [#allocation6], 4
      %s509 = int_to_ptr.vmem [resolvable:$true] %s508
      %511 = dma.vmem_to_hbm [thread:$0]  %s509, 32, %s13, [#allocation4]
    $region61: #{gnn_forward.7} parent=1 // pred_fallthru
      _
    // Predicated region
    $region62: #{gnn_forward.7} parent=1 // pred_check
      _
    $region63: #{gnn_forward.7} parent=1 // pred_check_branch
      %513 = sbr.rel (0) target = $region65
    $region64: #{gnn_forward.7} parent=1 // pred_region
      %514 = dma.done [#allocation4], 32
    $region65: #{gnn_forward.7} parent=1 // pred_fallthru
      _
    %515 = vsyncpa [#allocation4], 1
    %516 = vsyncpa [#allocation5], 1

</llo_original>
